<compile_context>
chip_gen: v7x
topology: tpu7x:2x2x1
jax: 0.10.0
libtpu: 0.0.40
codegen_flags: <defaults>
</compile_context>

<pallas_src>
import numpy as np
import jax
import jax.numpy as jnp
from jax.experimental import pallas as pl
from jax.experimental.pallas import tpu as pltpu

IN_CH = 48           # in_channels
HID = 96             # round(48 * expand_ratio=2)
OUT_CH = 3           # out_channels
H = W = 3
P = H * W            # 9 spatial positions
FLAT = IN_CH * P     # 432 (NCHW channel-major flatten length)
LANE = 128           # TPU lane width
EXP = P * LANE       # 1152: expanded pw1 output (9 positions x 128 lanes)
EPS = 1e-5           # BatchNorm2d default eps


def _cdiv(a, b):
    return -(-a // b)


def _round_up(n, m):
    return ((n + m - 1) // m) * m


def _half_v2_act(x):
    # TODO(synk): easycv's 'half_v2' activation is defined in face_keypoint_utils
    # (not in the provided module); approximated here with ReLU.
    return jnp.maximum(x, 0.0)


def face_pose_head_kernel(
    x_ref,        # (TB, 432)    f32  raw NCHW flatten, element [b, c*9 + p]
    w1e_ref,      # (432, 1152)  bf16 expanded pw1, s_pw1 folded into columns
    wdw_ref,      # (9, 128)     f32  depthwise taps (row k = kh*3+kw), s_dw folded
    wfc1x_ref,    # (432, 48)    bf16 fc1 on raw x (residual path), s_fc1 folded
    wcomb_ref,    # (9, 128, 48) bf16 fused (pw2*s_pw2) @ fc1[p], s_fc1 folded
    wfc2_ref,     # (48, 48)     bf16 s_fc2 folded
    wfc3_ref,     # (48, 128)    bf16 s_fc3 folded, zero-padded lanes 3:128
    shift1_ref,   # (1, 1152)    f32  pw1 BN shift tiled per position
    shifts_ref,   # (4, 128)     f32  rows: t_dw, shift_fc1, t_fc2, t_fc3
    out_ref,      # (TB, 128)    f32  lane-dense output (lanes 0:3 valid)
):
    x_f32 = x_ref[...]                                               # (TB, 432)
    x_bf = x_f32.astype(jnp.bfloat16)                                # MXU operand

    # ---- InvertedResidual: pointwise expand (1x1 conv, scale folded) + shift + act
    h1 = jnp.dot(x_bf, w1e_ref[...], preferred_element_type=jnp.float32)
    h1 = _half_v2_act(h1 + shift1_ref[...])                          # (TB, 1152) f32

    shifts = shifts_ref[...]
    t_dw = shifts[0:1, :]                                            # (1, 128)
    t_f1 = shifts[1:2, :IN_CH]                                       # (1, 48)
    t_f2 = shifts[2:3, :IN_CH]                                       # (1, 48)
    t_f3 = shifts[3:4, :]                                            # (1, 128)

    wdw = wdw_ref[...]                                               # (9, 128) f32

    # 128-lane-aligned per-position slabs of the expanded activation.
    slabs = [h1[:, p * LANE:(p + 1) * LANE] for p in range(P)]       # 9 x (TB,128)

    # ---- fc1 accumulator: residual (raw x) contribution ----------------------
    y = jnp.dot(x_bf, wfc1x_ref[...],
                preferred_element_type=jnp.float32)                  # (TB, 48) f32

    # ---- depthwise 3x3 (pad 1, scale folded) + act, fused pw2∘fc1 matmul -----
    for p in range(P):
        oh, ow = divmod(p, W)
        acc = None
        for kh in range(3):
            ih = oh + kh - 1
            if not (0 <= ih < H):
                continue
            for kw in range(3):
                iw = ow + kw - 1
                if not (0 <= iw < W):
                    continue
                k = kh * 3 + kw
                term = slabs[ih * W + iw] * wdw[k:k + 1, :]          # (TB,128) VPU f32
                acc = term if acc is None else acc + term
        d_p = _half_v2_act(acc + t_dw)                               # (TB, 128) f32
        # fused pw2 (+BN scale) -> fc1 at position p: one (TB,128)x(128,48) matmul
        y = y + jnp.dot(d_p.astype(jnp.bfloat16), wcomb_ref[p],
                        preferred_element_type=jnp.float32)

    # ---- conv_bn(432, 48): shift (pw2-bias constant folded in) + ReLU --------
    y = jnp.maximum(y + t_f1, 0.0)

    # ---- conv_bn(48, 48) ------------------------------------------------------
    y = jnp.dot(y.astype(jnp.bfloat16), wfc2_ref[...],
                preferred_element_type=jnp.float32)
    y = jnp.maximum(y + t_f2, 0.0)

    # ---- conv_no_relu(48, 3), lane-dense (padded to 128) ----------------------
    y = jnp.dot(y.astype(jnp.bfloat16), wfc3_ref[...],
                preferred_element_type=jnp.float32)                  # (TB, 128)
    out_ref[...] = y + t_f3


def face_pose_head(x_nchw, params, *, block_b=128):
    """x_nchw: (B, 48, 3, 3) float32 -> (B, 3) float32."""
    B = x_nchw.shape[0]
    x2 = x_nchw.reshape(B, FLAT)          # free reshape: NCHW channel-major flatten

    # Tiling: bound padding to <8 rows per tile, and give the "parallel" grid
    # axis >=2 steps whenever B allows so v7x's two TensorCores both get work.
    ntiles = max(_cdiv(B, block_b), 2 if B > 8 else 1)
    tb = _round_up(_cdiv(B, ntiles), 8)   # batch tile (multiple of 8 sublanes)
    b_pad = ntiles * tb
    if b_pad != B:
        x2 = jnp.pad(x2, ((0, b_pad - B), (0, 0)))

    kparams = [params['w1e'], params['wdw'], params['wfc1x'], params['wcomb'],
               params['wfc2'], params['wfc3'], params['shift1'], params['shifts']]

    in_specs = [pl.BlockSpec((tb, FLAT), lambda i: (i, 0))]
    for a in kparams:  # weights/shifts: whole array, same block every grid step
        in_specs.append(pl.BlockSpec(a.shape, lambda i, _nd=a.ndim: (0,) * _nd))
    out_specs = pl.BlockSpec((tb, LANE), lambda i: (i, 0))

    out_pad = pl.pallas_call(
        face_pose_head_kernel,
        out_shape=jax.ShapeDtypeStruct((b_pad, LANE), jnp.float32),
        grid=(ntiles,),
        in_specs=in_specs,
        out_specs=out_specs,
        compiler_params=pltpu.CompilerParams(
            dimension_semantics=("parallel",),
            vmem_limit_bytes=32 * 1024 * 1024),
    )(x2, *kparams)

    return out_pad[:B, :OUT_CH]


def _pad_lanes(v, width=LANE):
    v = jnp.asarray(v, jnp.float32)
    return jnp.pad(v, (0, width - v.shape[0]))


def pack_kernel_params(p):
    """Derive kernel-layout params: BN scales folded into weights, pw2∘fc1 fused,
    lane padding, bf16 storage for MXU weights."""
    bf16 = jnp.bfloat16

    # pw1 expanded weight (scale folded): (432, 1152);
    # [c*9+q, pp*128+m] = W1[m,c]*s_pw1[m] if q == pp.
    w1_scaled = p['w_pw1_pt'].reshape(HID, IN_CH) * p['s_pw1'][:, None]   # (96, 48)
    w1_cm = w1_scaled.T                                                   # (48, 96)
    w1_cm_pad = jnp.pad(w1_cm, ((0, 0), (0, LANE - HID)))                 # (48, 128)
    w1e = jnp.einsum('cm,qp->cqpm', w1_cm_pad,
                     jnp.eye(P, dtype=jnp.float32)).reshape(FLAT, EXP).astype(bf16)
    shift1 = jnp.tile(_pad_lanes(p['b_pw1']), P)[None, :]                 # (1, 1152)

    # depthwise taps (scale folded), row = kh*3+kw
    wdw = (p['w_dw_pt'].reshape(HID, P) * p['s_dw'][:, None]).T           # (9, 96)
    wdw = jnp.pad(wdw, ((0, 0), (0, LANE - HID)))                         # (9, 128) f32

    # pw2 with its BN scale folded into output channels
    w2s = p['w_pw2_pt'].reshape(IN_CH, HID).T * p['s_pw2'][None, :]       # (96, 48)
    w2s = jnp.pad(w2s, ((0, LANE - HID), (0, 0)))                         # (128, 48)

    # fc1 weight split: raw-x (residual) part + per-position part, then fuse
    # the per-position part with pw2: wcomb[p] = (w2*s_pw2) @ wfc1h[p].
    f1 = p['w_fc1_pt'].reshape(IN_CH, FLAT)                               # (48, 432): F1[o, c*9+p]
    wfc1h = f1.reshape(IN_CH, IN_CH, P).transpose(2, 1, 0)                # (9, 48, 48): [p, c, o]
    wcomb = jnp.einsum('mc,pco->pmo', w2s, wfc1h) * p['s_fc1'][None, None, :]
    wcomb = wcomb.astype(bf16)                                            # (9, 128, 48)
    wfc1x = (f1.T * p['s_fc1'][None, :]).astype(bf16)                     # (432, 48)
    # constant pw2-shift contribution to fc1, folded into the fc1 shift
    c_fc1 = jnp.einsum('c,pco->o', p['b_pw2'], wfc1h)                     # (48,)
    shift_f1 = c_fc1 * p['s_fc1'] + p['b_fc1']

    wfc2 = (p['w_fc2_pt'].reshape(IN_CH, IN_CH).T * p['s_fc2'][None, :]).astype(bf16)
    wfc3 = p['w_fc3_pt'].reshape(OUT_CH, IN_CH).T * p['s_fc3'][None, :]   # (48, 3)
    wfc3 = jnp.pad(wfc3, ((0, 0), (0, LANE - OUT_CH))).astype(bf16)       # (48, 128)

    shifts = jnp.stack([_pad_lanes(p['b_dw']), _pad_lanes(shift_f1),
                        _pad_lanes(p['b_fc2']), _pad_lanes(p['b_fc3'])])  # (4, 128)

    return dict(w1e=w1e, wdw=wdw, wfc1x=wfc1x, wcomb=wcomb,
                wfc2=wfc2, wfc3=wfc3, shift1=shift1, shifts=shifts)


def init_params(key):
    """Deterministic synthetic parameters (PyTorch OIHW layout + kernel layout)."""
    keys = jax.random.split(key, 12)

    def cw(k, shape, fan_in):
        return (jax.random.normal(k, shape, jnp.float32) / np.sqrt(fan_in)).astype(jnp.float32)

    def bn(k, c):  # folded inference-mode BatchNorm -> per-channel scale/shift
        k1, k2, k3, k4 = jax.random.split(k, 4)
        gamma = 1.0 + 0.1 * jax.random.normal(k1, (c,), jnp.float32)
        beta = 0.1 * jax.random.normal(k2, (c,), jnp.float32)
        mean = 0.1 * jax.random.normal(k3, (c,), jnp.float32)
        var = jnp.abs(jax.random.normal(k4, (c,), jnp.float32)) + 0.5
        scale = gamma / jnp.sqrt(var + EPS)
        shift = beta - mean * scale
        return scale, shift

    pt = dict(
        w_pw1_pt=cw(keys[0], (HID, IN_CH, 1, 1), IN_CH),
        w_dw_pt=cw(keys[1], (HID, 1, 3, 3), 9),
        w_pw2_pt=cw(keys[2], (IN_CH, HID, 1, 1), HID),
        w_fc1_pt=cw(keys[3], (IN_CH, FLAT, 1, 1), FLAT),
        w_fc2_pt=cw(keys[4], (IN_CH, IN_CH, 1, 1), IN_CH),
        w_fc3_pt=cw(keys[5], (OUT_CH, IN_CH, 1, 1), IN_CH),
    )
    pt['s_pw1'], pt['b_pw1'] = bn(keys[6], HID)
    pt['s_dw'], pt['b_dw'] = bn(keys[7], HID)
    pt['s_pw2'], pt['b_pw2'] = bn(keys[8], IN_CH)
    pt['s_fc1'], pt['b_fc1'] = bn(keys[9], IN_CH)
    pt['s_fc2'], pt['b_fc2'] = bn(keys[10], IN_CH)
    pt['s_fc3'], pt['b_fc3'] = bn(keys[11], OUT_CH)

    return {**pt, **pack_kernel_params(pt)}


def torch_style_reference(x, p):
    """Plain-JAX NCHW reference replicating the PyTorch graph (fp32, for validation)."""
    prec = jax.lax.Precision.HIGHEST

    def conv(a, w, pad=0, groups=1):
        return jax.lax.conv_general_dilated(
            a, w, (1, 1), [(pad, pad), (pad, pad)],
            dimension_numbers=('NCHW', 'OIHW', 'NCHW'),
            feature_group_count=groups, precision=prec)

    def bn(a, scale, shift):
        return a * scale[None, :, None, None] + shift[None, :, None, None]

    h = _half_v2_act(bn(conv(x, p['w_pw1_pt']), p['s_pw1'], p['b_pw1']))
    h = _half_v2_act(bn(conv(h, p['w_dw_pt'], pad=1, groups=HID), p['s_dw'], p['b_dw']))
    h = bn(conv(h, p['w_pw2_pt']), p['s_pw2'], p['b_pw2'])
    h = x + h
    h = h.reshape(-1, FLAT, 1, 1)
    h = jnp.maximum(bn(conv(h, p['w_fc1_pt']), p['s_fc1'], p['b_fc1']), 0.0)
    h = jnp.maximum(bn(conv(h, p['w_fc2_pt']), p['s_fc2'], p['b_fc2']), 0.0)
    h = bn(conv(h, p['w_fc3_pt']), p['s_fc3'], p['b_fc3'])
    return h.reshape(-1, OUT_CH)


if __name__ == "__main__":
    key = jax.random.PRNGKey(0)
    kx, kp = jax.random.split(key)
    B = 2
    x = jax.random.normal(kx, (B, IN_CH, H, W), jnp.float32)   # NCHW, as in PyTorch
    params = init_params(kp)

    out = face_pose_head(x, params)
    out = jax.block_until_ready(out)
    assert out.shape == (B, OUT_CH)

    ref = torch_style_reference(x, params)
    # Tolerance is bf16-MXU level: the kernel runs bf16 matmuls with BN scales
    # folded into (and pw2/fc1 composed into) the weights at pack time, while
    # the reference is layer-by-layer fp32.  Structural bugs produce O(1) errors.
    np.testing.assert_allclose(np.asarray(out), np.asarray(ref), rtol=2e-2, atol=2e-2)
    print("KERNEL_OK")
</pallas_src>

<mosaic_0001>
module attributes {stable_mosaic.version = 11 : i64} {
  func.func @face_pose_head_kernel(%arg0: i32, %arg1: memref<8x432xf32, #tpu.memory_space<vmem>>, %arg2: memref<432x1152xbf16, #tpu.memory_space<vmem>>, %arg3: memref<9x128xf32, #tpu.memory_space<vmem>>, %arg4: memref<432x48xbf16, #tpu.memory_space<vmem>>, %arg5: memref<9x128x48xbf16, #tpu.memory_space<vmem>>, %arg6: memref<48x48xbf16, #tpu.memory_space<vmem>>, %arg7: memref<48x128xbf16, #tpu.memory_space<vmem>>, %arg8: memref<1x1152xf32, #tpu.memory_space<vmem>>, %arg9: memref<4x128xf32, #tpu.memory_space<vmem>>, %arg10: memref<8x128xf32, #tpu.memory_space<vmem>>) attributes {dimension_semantics = [#tpu.dimension_semantics<parallel>], iteration_bounds = array<i64: 1>, scalar_prefetch = 0 : i64, scratch_operands = 0 : i64, tpu.core_type = #tpu.core_type<tc>, window_params = [{transform_indices = @transform_0, window_bounds = array<i64: 8, 432>}, {pipeline_mode = #tpu.pipeline_mode<synchronous>, transform_indices = @transform_1, window_bounds = array<i64: 432, 1152>}, {pipeline_mode = #tpu.pipeline_mode<synchronous>, transform_indices = @transform_2, window_bounds = array<i64: 9, 128>}, {pipeline_mode = #tpu.pipeline_mode<synchronous>, transform_indices = @transform_3, window_bounds = array<i64: 432, 48>}, {pipeline_mode = #tpu.pipeline_mode<synchronous>, transform_indices = @transform_4, window_bounds = array<i64: 9, 128, 48>}, {pipeline_mode = #tpu.pipeline_mode<synchronous>, transform_indices = @transform_5, window_bounds = array<i64: 48, 48>}, {pipeline_mode = #tpu.pipeline_mode<synchronous>, transform_indices = @transform_6, window_bounds = array<i64: 48, 128>}, {pipeline_mode = #tpu.pipeline_mode<synchronous>, transform_indices = @transform_7, window_bounds = array<i64: 1, 1152>}, {pipeline_mode = #tpu.pipeline_mode<synchronous>, transform_indices = @transform_8, window_bounds = array<i64: 4, 128>}, {transform_indices = @transform_9, window_bounds = array<i64: 8, 128>}]} {
    %c0 = arith.constant 0 : index
    %c0_0 = arith.constant 0 : index
    %0 = vector.load %arg1[%c0, %c0_0] : memref<8x432xf32, #tpu.memory_space<vmem>>, vector<8x432xf32>
    %1 = arith.truncf %0 : vector<8x432xf32> to vector<8x432xbf16>
    %c0_1 = arith.constant 0 : index
    %c0_2 = arith.constant 0 : index
    %2 = vector.load %arg2[%c0_1, %c0_2] : memref<432x1152xbf16, #tpu.memory_space<vmem>>, vector<432x1152xbf16>
    %cst = arith.constant dense<0.000000e+00> : vector<8x1152xf32>
    %3 = tpu.matmul %1, %2, %cst {dimension_numbers = #tpu.dot_dimension_numbers<[1], [0], [0], [1], [0, 0, 1, 1], [], []>} : vector<8x432xbf16>, vector<432x1152xbf16>, vector<8x1152xf32> -> vector<8x1152xf32>
    %c0_3 = arith.constant 0 : index
    %c0_4 = arith.constant 0 : index
    %4 = vector.load %arg8[%c0_3, %c0_4] : memref<1x1152xf32, #tpu.memory_space<vmem>>, vector<1x1152xf32>
    %5 = vector.broadcast %4 : vector<1x1152xf32> to vector<8x1152xf32>
    %6 = arith.addf %3, %5 : vector<8x1152xf32>
    %cst_5 = arith.constant 0.000000e+00 : f32
    %7 = vector.broadcast %cst_5 : f32 to vector<8x1152xf32>
    %8 = arith.maximumf %6, %7 : vector<8x1152xf32>
    %c0_6 = arith.constant 0 : index
    %c0_7 = arith.constant 0 : index
    %9 = vector.load %arg9[%c0_6, %c0_7] : memref<4x128xf32, #tpu.memory_space<vmem>>, vector<4x128xf32>
    %10 = vector.extract_strided_slice %9 {offsets = [0, 0], sizes = [1, 128], strides = [1, 1]} : vector<4x128xf32> to vector<1x128xf32>
    %11 = vector.extract_strided_slice %9 {offsets = [1, 0], sizes = [1, 48], strides = [1, 1]} : vector<4x128xf32> to vector<1x48xf32>
    %12 = vector.extract_strided_slice %9 {offsets = [2, 0], sizes = [1, 48], strides = [1, 1]} : vector<4x128xf32> to vector<1x48xf32>
    %13 = vector.extract_strided_slice %9 {offsets = [3, 0], sizes = [1, 128], strides = [1, 1]} : vector<4x128xf32> to vector<1x128xf32>
    %c0_8 = arith.constant 0 : index
    %c0_9 = arith.constant 0 : index
    %14 = vector.load %arg3[%c0_8, %c0_9] : memref<9x128xf32, #tpu.memory_space<vmem>>, vector<9x128xf32>
    %15 = vector.extract_strided_slice %8 {offsets = [0, 0], sizes = [8, 128], strides = [1, 1]} : vector<8x1152xf32> to vector<8x128xf32>
    %16 = vector.extract_strided_slice %8 {offsets = [0, 128], sizes = [8, 128], strides = [1, 1]} : vector<8x1152xf32> to vector<8x128xf32>
    %17 = vector.extract_strided_slice %8 {offsets = [0, 256], sizes = [8, 128], strides = [1, 1]} : vector<8x1152xf32> to vector<8x128xf32>
    %18 = vector.extract_strided_slice %8 {offsets = [0, 384], sizes = [8, 128], strides = [1, 1]} : vector<8x1152xf32> to vector<8x128xf32>
    %19 = vector.extract_strided_slice %8 {offsets = [0, 512], sizes = [8, 128], strides = [1, 1]} : vector<8x1152xf32> to vector<8x128xf32>
    %20 = vector.extract_strided_slice %8 {offsets = [0, 640], sizes = [8, 128], strides = [1, 1]} : vector<8x1152xf32> to vector<8x128xf32>
    %21 = vector.extract_strided_slice %8 {offsets = [0, 768], sizes = [8, 128], strides = [1, 1]} : vector<8x1152xf32> to vector<8x128xf32>
    %22 = vector.extract_strided_slice %8 {offsets = [0, 896], sizes = [8, 128], strides = [1, 1]} : vector<8x1152xf32> to vector<8x128xf32>
    %23 = vector.extract_strided_slice %8 {offsets = [0, 1024], sizes = [8, 128], strides = [1, 1]} : vector<8x1152xf32> to vector<8x128xf32>
    %c0_10 = arith.constant 0 : index
    %c0_11 = arith.constant 0 : index
    %24 = vector.load %arg4[%c0_10, %c0_11] : memref<432x48xbf16, #tpu.memory_space<vmem>>, vector<432x48xbf16>
    %cst_12 = arith.constant dense<0.000000e+00> : vector<8x48xf32>
    %25 = tpu.matmul %1, %24, %cst_12 {dimension_numbers = #tpu.dot_dimension_numbers<[1], [0], [0], [1], [0, 0, 1, 1], [], []>} : vector<8x432xbf16>, vector<432x48xbf16>, vector<8x48xf32> -> vector<8x48xf32>
    %26 = vector.extract_strided_slice %14 {offsets = [4, 0], sizes = [1, 128], strides = [1, 1]} : vector<9x128xf32> to vector<1x128xf32>
    %27 = vector.broadcast %26 : vector<1x128xf32> to vector<8x128xf32>
    %28 = arith.mulf %15, %27 : vector<8x128xf32>
    %29 = vector.extract_strided_slice %14 {offsets = [5, 0], sizes = [1, 128], strides = [1, 1]} : vector<9x128xf32> to vector<1x128xf32>
    %30 = vector.broadcast %29 : vector<1x128xf32> to vector<8x128xf32>
    %31 = arith.mulf %16, %30 : vector<8x128xf32>
    %32 = arith.addf %28, %31 : vector<8x128xf32>
    %33 = vector.extract_strided_slice %14 {offsets = [7, 0], sizes = [1, 128], strides = [1, 1]} : vector<9x128xf32> to vector<1x128xf32>
    %34 = vector.broadcast %33 : vector<1x128xf32> to vector<8x128xf32>
    %35 = arith.mulf %18, %34 : vector<8x128xf32>
    %36 = arith.addf %32, %35 : vector<8x128xf32>
    %37 = vector.extract_strided_slice %14 {offsets = [8, 0], sizes = [1, 128], strides = [1, 1]} : vector<9x128xf32> to vector<1x128xf32>
    %38 = vector.broadcast %37 : vector<1x128xf32> to vector<8x128xf32>
    %39 = arith.mulf %19, %38 : vector<8x128xf32>
    %40 = arith.addf %36, %39 : vector<8x128xf32>
    %41 = vector.broadcast %10 : vector<1x128xf32> to vector<8x128xf32>
    %42 = arith.addf %40, %41 : vector<8x128xf32>
    %cst_13 = arith.constant 0.000000e+00 : f32
    %43 = vector.broadcast %cst_13 : f32 to vector<8x128xf32>
    %44 = arith.maximumf %42, %43 : vector<8x128xf32>
    %45 = arith.truncf %44 : vector<8x128xf32> to vector<8x128xbf16>
    %c0_14 = arith.constant 0 : index
    %c0_15 = arith.constant 0 : index
    %c0_16 = arith.constant 0 : index
    %46 = vector.load %arg5[%c0_14, %c0_15, %c0_16] : memref<9x128x48xbf16, #tpu.memory_space<vmem>>, vector<1x128x48xbf16>
    %47 = vector.shape_cast %46 : vector<1x128x48xbf16> to vector<128x48xbf16>
    %cst_17 = arith.constant dense<0.000000e+00> : vector<8x48xf32>
    %48 = tpu.matmul %45, %47, %cst_17 {dimension_numbers = #tpu.dot_dimension_numbers<[1], [0], [0], [1], [0, 0, 1, 1], [], []>} : vector<8x128xbf16>, vector<128x48xbf16>, vector<8x48xf32> -> vector<8x48xf32>
    %49 = arith.addf %25, %48 : vector<8x48xf32>
    %50 = vector.extract_strided_slice %14 {offsets = [3, 0], sizes = [1, 128], strides = [1, 1]} : vector<9x128xf32> to vector<1x128xf32>
    %51 = vector.broadcast %50 : vector<1x128xf32> to vector<8x128xf32>
    %52 = arith.mulf %15, %51 : vector<8x128xf32>
    %53 = vector.extract_strided_slice %14 {offsets = [4, 0], sizes = [1, 128], strides = [1, 1]} : vector<9x128xf32> to vector<1x128xf32>
    %54 = vector.broadcast %53 : vector<1x128xf32> to vector<8x128xf32>
    %55 = arith.mulf %16, %54 : vector<8x128xf32>
    %56 = arith.addf %52, %55 : vector<8x128xf32>
    %57 = vector.extract_strided_slice %14 {offsets = [5, 0], sizes = [1, 128], strides = [1, 1]} : vector<9x128xf32> to vector<1x128xf32>
    %58 = vector.broadcast %57 : vector<1x128xf32> to vector<8x128xf32>
    %59 = arith.mulf %17, %58 : vector<8x128xf32>
    %60 = arith.addf %56, %59 : vector<8x128xf32>
    %61 = vector.extract_strided_slice %14 {offsets = [6, 0], sizes = [1, 128], strides = [1, 1]} : vector<9x128xf32> to vector<1x128xf32>
    %62 = vector.broadcast %61 : vector<1x128xf32> to vector<8x128xf32>
    %63 = arith.mulf %18, %62 : vector<8x128xf32>
    %64 = arith.addf %60, %63 : vector<8x128xf32>
    %65 = vector.extract_strided_slice %14 {offsets = [7, 0], sizes = [1, 128], strides = [1, 1]} : vector<9x128xf32> to vector<1x128xf32>
    %66 = vector.broadcast %65 : vector<1x128xf32> to vector<8x128xf32>
    %67 = arith.mulf %19, %66 : vector<8x128xf32>
    %68 = arith.addf %64, %67 : vector<8x128xf32>
    %69 = vector.extract_strided_slice %14 {offsets = [8, 0], sizes = [1, 128], strides = [1, 1]} : vector<9x128xf32> to vector<1x128xf32>
    %70 = vector.broadcast %69 : vector<1x128xf32> to vector<8x128xf32>
    %71 = arith.mulf %20, %70 : vector<8x128xf32>
    %72 = arith.addf %68, %71 : vector<8x128xf32>
    %73 = vector.broadcast %10 : vector<1x128xf32> to vector<8x128xf32>
    %74 = arith.addf %72, %73 : vector<8x128xf32>
    %cst_18 = arith.constant 0.000000e+00 : f32
    %75 = vector.broadcast %cst_18 : f32 to vector<8x128xf32>
    %76 = arith.maximumf %74, %75 : vector<8x128xf32>
    %77 = arith.truncf %76 : vector<8x128xf32> to vector<8x128xbf16>
    %c1 = arith.constant 1 : index
    %c0_19 = arith.constant 0 : index
    %c0_20 = arith.constant 0 : index
    %78 = vector.load %arg5[%c1, %c0_19, %c0_20] : memref<9x128x48xbf16, #tpu.memory_space<vmem>>, vector<1x128x48xbf16>
    %79 = vector.shape_cast %78 : vector<1x128x48xbf16> to vector<128x48xbf16>
    %cst_21 = arith.constant dense<0.000000e+00> : vector<8x48xf32>
    %80 = tpu.matmul %77, %79, %cst_21 {dimension_numbers = #tpu.dot_dimension_numbers<[1], [0], [0], [1], [0, 0, 1, 1], [], []>} : vector<8x128xbf16>, vector<128x48xbf16>, vector<8x48xf32> -> vector<8x48xf32>
    %81 = arith.addf %49, %80 : vector<8x48xf32>
    %82 = vector.extract_strided_slice %14 {offsets = [3, 0], sizes = [1, 128], strides = [1, 1]} : vector<9x128xf32> to vector<1x128xf32>
    %83 = vector.broadcast %82 : vector<1x128xf32> to vector<8x128xf32>
    %84 = arith.mulf %16, %83 : vector<8x128xf32>
    %85 = vector.extract_strided_slice %14 {offsets = [4, 0], sizes = [1, 128], strides = [1, 1]} : vector<9x128xf32> to vector<1x128xf32>
    %86 = vector.broadcast %85 : vector<1x128xf32> to vector<8x128xf32>
    %87 = arith.mulf %17, %86 : vector<8x128xf32>
    %88 = arith.addf %84, %87 : vector<8x128xf32>
    %89 = vector.extract_strided_slice %14 {offsets = [6, 0], sizes = [1, 128], strides = [1, 1]} : vector<9x128xf32> to vector<1x128xf32>
    %90 = vector.broadcast %89 : vector<1x128xf32> to vector<8x128xf32>
    %91 = arith.mulf %19, %90 : vector<8x128xf32>
    %92 = arith.addf %88, %91 : vector<8x128xf32>
    %93 = vector.extract_strided_slice %14 {offsets = [7, 0], sizes = [1, 128], strides = [1, 1]} : vector<9x128xf32> to vector<1x128xf32>
    %94 = vector.broadcast %93 : vector<1x128xf32> to vector<8x128xf32>
    %95 = arith.mulf %20, %94 : vector<8x128xf32>
    %96 = arith.addf %92, %95 : vector<8x128xf32>
    %97 = vector.broadcast %10 : vector<1x128xf32> to vector<8x128xf32>
    %98 = arith.addf %96, %97 : vector<8x128xf32>
    %cst_22 = arith.constant 0.000000e+00 : f32
    %99 = vector.broadcast %cst_22 : f32 to vector<8x128xf32>
    %100 = arith.maximumf %98, %99 : vector<8x128xf32>
    %101 = arith.truncf %100 : vector<8x128xf32> to vector<8x128xbf16>
    %c2 = arith.constant 2 : index
    %c0_23 = arith.constant 0 : index
    %c0_24 = arith.constant 0 : index
    %102 = vector.load %arg5[%c2, %c0_23, %c0_24] : memref<9x128x48xbf16, #tpu.memory_space<vmem>>, vector<1x128x48xbf16>
    %103 = vector.shape_cast %102 : vector<1x128x48xbf16> to vector<128x48xbf16>
    %cst_25 = arith.constant dense<0.000000e+00> : vector<8x48xf32>
    %104 = tpu.matmul %101, %103, %cst_25 {dimension_numbers = #tpu.dot_dimension_numbers<[1], [0], [0], [1], [0, 0, 1, 1], [], []>} : vector<8x128xbf16>, vector<128x48xbf16>, vector<8x48xf32> -> vector<8x48xf32>
    %105 = arith.addf %81, %104 : vector<8x48xf32>
    %106 = vector.extract_strided_slice %14 {offsets = [1, 0], sizes = [1, 128], strides = [1, 1]} : vector<9x128xf32> to vector<1x128xf32>
    %107 = vector.broadcast %106 : vector<1x128xf32> to vector<8x128xf32>
    %108 = arith.mulf %15, %107 : vector<8x128xf32>
    %109 = vector.extract_strided_slice %14 {offsets = [2, 0], sizes = [1, 128], strides = [1, 1]} : vector<9x128xf32> to vector<1x128xf32>
    %110 = vector.broadcast %109 : vector<1x128xf32> to vector<8x128xf32>
    %111 = arith.mulf %16, %110 : vector<8x128xf32>
    %112 = arith.addf %108, %111 : vector<8x128xf32>
    %113 = vector.extract_strided_slice %14 {offsets = [4, 0], sizes = [1, 128], strides = [1, 1]} : vector<9x128xf32> to vector<1x128xf32>
    %114 = vector.broadcast %113 : vector<1x128xf32> to vector<8x128xf32>
    %115 = arith.mulf %18, %114 : vector<8x128xf32>
    %116 = arith.addf %112, %115 : vector<8x128xf32>
    %117 = vector.extract_strided_slice %14 {offsets = [5, 0], sizes = [1, 128], strides = [1, 1]} : vector<9x128xf32> to vector<1x128xf32>
    %118 = vector.broadcast %117 : vector<1x128xf32> to vector<8x128xf32>
    %119 = arith.mulf %19, %118 : vector<8x128xf32>
    %120 = arith.addf %116, %119 : vector<8x128xf32>
    %121 = vector.extract_strided_slice %14 {offsets = [7, 0], sizes = [1, 128], strides = [1, 1]} : vector<9x128xf32> to vector<1x128xf32>
    %122 = vector.broadcast %121 : vector<1x128xf32> to vector<8x128xf32>
    %123 = arith.mulf %21, %122 : vector<8x128xf32>
    %124 = arith.addf %120, %123 : vector<8x128xf32>
    %125 = vector.extract_strided_slice %14 {offsets = [8, 0], sizes = [1, 128], strides = [1, 1]} : vector<9x128xf32> to vector<1x128xf32>
    %126 = vector.broadcast %125 : vector<1x128xf32> to vector<8x128xf32>
    %127 = arith.mulf %22, %126 : vector<8x128xf32>
    %128 = arith.addf %124, %127 : vector<8x128xf32>
    %129 = vector.broadcast %10 : vector<1x128xf32> to vector<8x128xf32>
    %130 = arith.addf %128, %129 : vector<8x128xf32>
    %cst_26 = arith.constant 0.000000e+00 : f32
    %131 = vector.broadcast %cst_26 : f32 to vector<8x128xf32>
    %132 = arith.maximumf %130, %131 : vector<8x128xf32>
    %133 = arith.truncf %132 : vector<8x128xf32> to vector<8x128xbf16>
    %c3 = arith.constant 3 : index
    %c0_27 = arith.constant 0 : index
    %c0_28 = arith.constant 0 : index
    %134 = vector.load %arg5[%c3, %c0_27, %c0_28] : memref<9x128x48xbf16, #tpu.memory_space<vmem>>, vector<1x128x48xbf16>
    %135 = vector.shape_cast %134 : vector<1x128x48xbf16> to vector<128x48xbf16>
    %cst_29 = arith.constant dense<0.000000e+00> : vector<8x48xf32>
    %136 = tpu.matmul %133, %135, %cst_29 {dimension_numbers = #tpu.dot_dimension_numbers<[1], [0], [0], [1], [0, 0, 1, 1], [], []>} : vector<8x128xbf16>, vector<128x48xbf16>, vector<8x48xf32> -> vector<8x48xf32>
    %137 = arith.addf %105, %136 : vector<8x48xf32>
    %138 = vector.extract_strided_slice %14 {offsets = [0, 0], sizes = [1, 128], strides = [1, 1]} : vector<9x128xf32> to vector<1x128xf32>
    %139 = vector.broadcast %138 : vector<1x128xf32> to vector<8x128xf32>
    %140 = arith.mulf %15, %139 : vector<8x128xf32>
    %141 = vector.extract_strided_slice %14 {offsets = [1, 0], sizes = [1, 128], strides = [1, 1]} : vector<9x128xf32> to vector<1x128xf32>
    %142 = vector.broadcast %141 : vector<1x128xf32> to vector<8x128xf32>
    %143 = arith.mulf %16, %142 : vector<8x128xf32>
    %144 = arith.addf %140, %143 : vector<8x128xf32>
    %145 = vector.extract_strided_slice %14 {offsets = [2, 0], sizes = [1, 128], strides = [1, 1]} : vector<9x128xf32> to vector<1x128xf32>
    %146 = vector.broadcast %145 : vector<1x128xf32> to vector<8x128xf32>
    %147 = arith.mulf %17, %146 : vector<8x128xf32>
    %148 = arith.addf %144, %147 : vector<8x128xf32>
    %149 = vector.extract_strided_slice %14 {offsets = [3, 0], sizes = [1, 128], strides = [1, 1]} : vector<9x128xf32> to vector<1x128xf32>
    %150 = vector.broadcast %149 : vector<1x128xf32> to vector<8x128xf32>
    %151 = arith.mulf %18, %150 : vector<8x128xf32>
    %152 = arith.addf %148, %151 : vector<8x128xf32>
    %153 = vector.extract_strided_slice %14 {offsets = [4, 0], sizes = [1, 128], strides = [1, 1]} : vector<9x128xf32> to vector<1x128xf32>
    %154 = vector.broadcast %153 : vector<1x128xf32> to vector<8x128xf32>
    %155 = arith.mulf %19, %154 : vector<8x128xf32>
    %156 = arith.addf %152, %155 : vector<8x128xf32>
    %157 = vector.extract_strided_slice %14 {offsets = [5, 0], sizes = [1, 128], strides = [1, 1]} : vector<9x128xf32> to vector<1x128xf32>
    %158 = vector.broadcast %157 : vector<1x128xf32> to vector<8x128xf32>
    %159 = arith.mulf %20, %158 : vector<8x128xf32>
    %160 = arith.addf %156, %159 : vector<8x128xf32>
    %161 = vector.extract_strided_slice %14 {offsets = [6, 0], sizes = [1, 128], strides = [1, 1]} : vector<9x128xf32> to vector<1x128xf32>
    %162 = vector.broadcast %161 : vector<1x128xf32> to vector<8x128xf32>
    %163 = arith.mulf %21, %162 : vector<8x128xf32>
    %164 = arith.addf %160, %163 : vector<8x128xf32>
    %165 = vector.extract_strided_slice %14 {offsets = [7, 0], sizes = [1, 128], strides = [1, 1]} : vector<9x128xf32> to vector<1x128xf32>
    %166 = vector.broadcast %165 : vector<1x128xf32> to vector<8x128xf32>
    %167 = arith.mulf %22, %166 : vector<8x128xf32>
    %168 = arith.addf %164, %167 : vector<8x128xf32>
    %169 = vector.extract_strided_slice %14 {offsets = [8, 0], sizes = [1, 128], strides = [1, 1]} : vector<9x128xf32> to vector<1x128xf32>
    %170 = vector.broadcast %169 : vector<1x128xf32> to vector<8x128xf32>
    %171 = arith.mulf %23, %170 : vector<8x128xf32>
    %172 = arith.addf %168, %171 : vector<8x128xf32>
    %173 = vector.broadcast %10 : vector<1x128xf32> to vector<8x128xf32>
    %174 = arith.addf %172, %173 : vector<8x128xf32>
    %cst_30 = arith.constant 0.000000e+00 : f32
    %175 = vector.broadcast %cst_30 : f32 to vector<8x128xf32>
    %176 = arith.maximumf %174, %175 : vector<8x128xf32>
    %177 = arith.truncf %176 : vector<8x128xf32> to vector<8x128xbf16>
    %c4 = arith.constant 4 : index
    %c0_31 = arith.constant 0 : index
    %c0_32 = arith.constant 0 : index
    %178 = vector.load %arg5[%c4, %c0_31, %c0_32] : memref<9x128x48xbf16, #tpu.memory_space<vmem>>, vector<1x128x48xbf16>
    %179 = vector.shape_cast %178 : vector<1x128x48xbf16> to vector<128x48xbf16>
    %cst_33 = arith.constant dense<0.000000e+00> : vector<8x48xf32>
    %180 = tpu.matmul %177, %179, %cst_33 {dimension_numbers = #tpu.dot_dimension_numbers<[1], [0], [0], [1], [0, 0, 1, 1], [], []>} : vector<8x128xbf16>, vector<128x48xbf16>, vector<8x48xf32> -> vector<8x48xf32>
    %181 = arith.addf %137, %180 : vector<8x48xf32>
    %182 = vector.extract_strided_slice %14 {offsets = [0, 0], sizes = [1, 128], strides = [1, 1]} : vector<9x128xf32> to vector<1x128xf32>
    %183 = vector.broadcast %182 : vector<1x128xf32> to vector<8x128xf32>
    %184 = arith.mulf %16, %183 : vector<8x128xf32>
    %185 = vector.extract_strided_slice %14 {offsets = [1, 0], sizes = [1, 128], strides = [1, 1]} : vector<9x128xf32> to vector<1x128xf32>
    %186 = vector.broadcast %185 : vector<1x128xf32> to vector<8x128xf32>
    %187 = arith.mulf %17, %186 : vector<8x128xf32>
    %188 = arith.addf %184, %187 : vector<8x128xf32>
    %189 = vector.extract_strided_slice %14 {offsets = [3, 0], sizes = [1, 128], strides = [1, 1]} : vector<9x128xf32> to vector<1x128xf32>
    %190 = vector.broadcast %189 : vector<1x128xf32> to vector<8x128xf32>
    %191 = arith.mulf %19, %190 : vector<8x128xf32>
    %192 = arith.addf %188, %191 : vector<8x128xf32>
    %193 = vector.extract_strided_slice %14 {offsets = [4, 0], sizes = [1, 128], strides = [1, 1]} : vector<9x128xf32> to vector<1x128xf32>
    %194 = vector.broadcast %193 : vector<1x128xf32> to vector<8x128xf32>
    %195 = arith.mulf %20, %194 : vector<8x128xf32>
    %196 = arith.addf %192, %195 : vector<8x128xf32>
    %197 = vector.extract_strided_slice %14 {offsets = [6, 0], sizes = [1, 128], strides = [1, 1]} : vector<9x128xf32> to vector<1x128xf32>
    %198 = vector.broadcast %197 : vector<1x128xf32> to vector<8x128xf32>
    %199 = arith.mulf %22, %198 : vector<8x128xf32>
    %200 = arith.addf %196, %199 : vector<8x128xf32>
    %201 = vector.extract_strided_slice %14 {offsets = [7, 0], sizes = [1, 128], strides = [1, 1]} : vector<9x128xf32> to vector<1x128xf32>
    %202 = vector.broadcast %201 : vector<1x128xf32> to vector<8x128xf32>
    %203 = arith.mulf %23, %202 : vector<8x128xf32>
    %204 = arith.addf %200, %203 : vector<8x128xf32>
    %205 = vector.broadcast %10 : vector<1x128xf32> to vector<8x128xf32>
    %206 = arith.addf %204, %205 : vector<8x128xf32>
    %cst_34 = arith.constant 0.000000e+00 : f32
    %207 = vector.broadcast %cst_34 : f32 to vector<8x128xf32>
    %208 = arith.maximumf %206, %207 : vector<8x128xf32>
    %209 = arith.truncf %208 : vector<8x128xf32> to vector<8x128xbf16>
    %c5 = arith.constant 5 : index
    %c0_35 = arith.constant 0 : index
    %c0_36 = arith.constant 0 : index
    %210 = vector.load %arg5[%c5, %c0_35, %c0_36] : memref<9x128x48xbf16, #tpu.memory_space<vmem>>, vector<1x128x48xbf16>
    %211 = vector.shape_cast %210 : vector<1x128x48xbf16> to vector<128x48xbf16>
    %cst_37 = arith.constant dense<0.000000e+00> : vector<8x48xf32>
    %212 = tpu.matmul %209, %211, %cst_37 {dimension_numbers = #tpu.dot_dimension_numbers<[1], [0], [0], [1], [0, 0, 1, 1], [], []>} : vector<8x128xbf16>, vector<128x48xbf16>, vector<8x48xf32> -> vector<8x48xf32>
    %213 = arith.addf %181, %212 : vector<8x48xf32>
    %214 = vector.extract_strided_slice %14 {offsets = [1, 0], sizes = [1, 128], strides = [1, 1]} : vector<9x128xf32> to vector<1x128xf32>
    %215 = vector.broadcast %214 : vector<1x128xf32> to vector<8x128xf32>
    %216 = arith.mulf %18, %215 : vector<8x128xf32>
    %217 = vector.extract_strided_slice %14 {offsets = [2, 0], sizes = [1, 128], strides = [1, 1]} : vector<9x128xf32> to vector<1x128xf32>
    %218 = vector.broadcast %217 : vector<1x128xf32> to vector<8x128xf32>
    %219 = arith.mulf %19, %218 : vector<8x128xf32>
    %220 = arith.addf %216, %219 : vector<8x128xf32>
    %221 = vector.extract_strided_slice %14 {offsets = [4, 0], sizes = [1, 128], strides = [1, 1]} : vector<9x128xf32> to vector<1x128xf32>
    %222 = vector.broadcast %221 : vector<1x128xf32> to vector<8x128xf32>
    %223 = arith.mulf %21, %222 : vector<8x128xf32>
    %224 = arith.addf %220, %223 : vector<8x128xf32>
    %225 = vector.extract_strided_slice %14 {offsets = [5, 0], sizes = [1, 128], strides = [1, 1]} : vector<9x128xf32> to vector<1x128xf32>
    %226 = vector.broadcast %225 : vector<1x128xf32> to vector<8x128xf32>
    %227 = arith.mulf %22, %226 : vector<8x128xf32>
    %228 = arith.addf %224, %227 : vector<8x128xf32>
    %229 = vector.broadcast %10 : vector<1x128xf32> to vector<8x128xf32>
    %230 = arith.addf %228, %229 : vector<8x128xf32>
    %cst_38 = arith.constant 0.000000e+00 : f32
    %231 = vector.broadcast %cst_38 : f32 to vector<8x128xf32>
    %232 = arith.maximumf %230, %231 : vector<8x128xf32>
    %233 = arith.truncf %232 : vector<8x128xf32> to vector<8x128xbf16>
    %c6 = arith.constant 6 : index
    %c0_39 = arith.constant 0 : index
    %c0_40 = arith.constant 0 : index
    %234 = vector.load %arg5[%c6, %c0_39, %c0_40] : memref<9x128x48xbf16, #tpu.memory_space<vmem>>, vector<1x128x48xbf16>
    %235 = vector.shape_cast %234 : vector<1x128x48xbf16> to vector<128x48xbf16>
    %cst_41 = arith.constant dense<0.000000e+00> : vector<8x48xf32>
    %236 = tpu.matmul %233, %235, %cst_41 {dimension_numbers = #tpu.dot_dimension_numbers<[1], [0], [0], [1], [0, 0, 1, 1], [], []>} : vector<8x128xbf16>, vector<128x48xbf16>, vector<8x48xf32> -> vector<8x48xf32>
    %237 = arith.addf %213, %236 : vector<8x48xf32>
    %238 = vector.extract_strided_slice %14 {offsets = [0, 0], sizes = [1, 128], strides = [1, 1]} : vector<9x128xf32> to vector<1x128xf32>
    %239 = vector.broadcast %238 : vector<1x128xf32> to vector<8x128xf32>
    %240 = arith.mulf %18, %239 : vector<8x128xf32>
    %241 = vector.extract_strided_slice %14 {offsets = [1, 0], sizes = [1, 128], strides = [1, 1]} : vector<9x128xf32> to vector<1x128xf32>
    %242 = vector.broadcast %241 : vector<1x128xf32> to vector<8x128xf32>
    %243 = arith.mulf %19, %242 : vector<8x128xf32>
    %244 = arith.addf %240, %243 : vector<8x128xf32>
    %245 = vector.extract_strided_slice %14 {offsets = [2, 0], sizes = [1, 128], strides = [1, 1]} : vector<9x128xf32> to vector<1x128xf32>
    %246 = vector.broadcast %245 : vector<1x128xf32> to vector<8x128xf32>
    %247 = arith.mulf %20, %246 : vector<8x128xf32>
    %248 = arith.addf %244, %247 : vector<8x128xf32>
    %249 = vector.extract_strided_slice %14 {offsets = [3, 0], sizes = [1, 128], strides = [1, 1]} : vector<9x128xf32> to vector<1x128xf32>
    %250 = vector.broadcast %249 : vector<1x128xf32> to vector<8x128xf32>
    %251 = arith.mulf %21, %250 : vector<8x128xf32>
    %252 = arith.addf %248, %251 : vector<8x128xf32>
    %253 = vector.extract_strided_slice %14 {offsets = [4, 0], sizes = [1, 128], strides = [1, 1]} : vector<9x128xf32> to vector<1x128xf32>
    %254 = vector.broadcast %253 : vector<1x128xf32> to vector<8x128xf32>
    %255 = arith.mulf %22, %254 : vector<8x128xf32>
    %256 = arith.addf %252, %255 : vector<8x128xf32>
    %257 = vector.extract_strided_slice %14 {offsets = [5, 0], sizes = [1, 128], strides = [1, 1]} : vector<9x128xf32> to vector<1x128xf32>
    %258 = vector.broadcast %257 : vector<1x128xf32> to vector<8x128xf32>
    %259 = arith.mulf %23, %258 : vector<8x128xf32>
    %260 = arith.addf %256, %259 : vector<8x128xf32>
    %261 = vector.broadcast %10 : vector<1x128xf32> to vector<8x128xf32>
    %262 = arith.addf %260, %261 : vector<8x128xf32>
    %cst_42 = arith.constant 0.000000e+00 : f32
    %263 = vector.broadcast %cst_42 : f32 to vector<8x128xf32>
    %264 = arith.maximumf %262, %263 : vector<8x128xf32>
    %265 = arith.truncf %264 : vector<8x128xf32> to vector<8x128xbf16>
    %c7 = arith.constant 7 : index
    %c0_43 = arith.constant 0 : index
    %c0_44 = arith.constant 0 : index
    %266 = vector.load %arg5[%c7, %c0_43, %c0_44] : memref<9x128x48xbf16, #tpu.memory_space<vmem>>, vector<1x128x48xbf16>
    %267 = vector.shape_cast %266 : vector<1x128x48xbf16> to vector<128x48xbf16>
    %cst_45 = arith.constant dense<0.000000e+00> : vector<8x48xf32>
    %268 = tpu.matmul %265, %267, %cst_45 {dimension_numbers = #tpu.dot_dimension_numbers<[1], [0], [0], [1], [0, 0, 1, 1], [], []>} : vector<8x128xbf16>, vector<128x48xbf16>, vector<8x48xf32> -> vector<8x48xf32>
    %269 = arith.addf %237, %268 : vector<8x48xf32>
    %270 = vector.extract_strided_slice %14 {offsets = [0, 0], sizes = [1, 128], strides = [1, 1]} : vector<9x128xf32> to vector<1x128xf32>
    %271 = vector.broadcast %270 : vector<1x128xf32> to vector<8x128xf32>
    %272 = arith.mulf %19, %271 : vector<8x128xf32>
    %273 = vector.extract_strided_slice %14 {offsets = [1, 0], sizes = [1, 128], strides = [1, 1]} : vector<9x128xf32> to vector<1x128xf32>
    %274 = vector.broadcast %273 : vector<1x128xf32> to vector<8x128xf32>
    %275 = arith.mulf %20, %274 : vector<8x128xf32>
    %276 = arith.addf %272, %275 : vector<8x128xf32>
    %277 = vector.extract_strided_slice %14 {offsets = [3, 0], sizes = [1, 128], strides = [1, 1]} : vector<9x128xf32> to vector<1x128xf32>
    %278 = vector.broadcast %277 : vector<1x128xf32> to vector<8x128xf32>
    %279 = arith.mulf %22, %278 : vector<8x128xf32>
    %280 = arith.addf %276, %279 : vector<8x128xf32>
    %281 = vector.extract_strided_slice %14 {offsets = [4, 0], sizes = [1, 128], strides = [1, 1]} : vector<9x128xf32> to vector<1x128xf32>
    %282 = vector.broadcast %281 : vector<1x128xf32> to vector<8x128xf32>
    %283 = arith.mulf %23, %282 : vector<8x128xf32>
    %284 = arith.addf %280, %283 : vector<8x128xf32>
    %285 = vector.broadcast %10 : vector<1x128xf32> to vector<8x128xf32>
    %286 = arith.addf %284, %285 : vector<8x128xf32>
    %cst_46 = arith.constant 0.000000e+00 : f32
    %287 = vector.broadcast %cst_46 : f32 to vector<8x128xf32>
    %288 = arith.maximumf %286, %287 : vector<8x128xf32>
    %289 = arith.truncf %288 : vector<8x128xf32> to vector<8x128xbf16>
    %c8 = arith.constant 8 : index
    %c0_47 = arith.constant 0 : index
    %c0_48 = arith.constant 0 : index
    %290 = vector.load %arg5[%c8, %c0_47, %c0_48] : memref<9x128x48xbf16, #tpu.memory_space<vmem>>, vector<1x128x48xbf16>
    %291 = vector.shape_cast %290 : vector<1x128x48xbf16> to vector<128x48xbf16>
    %cst_49 = arith.constant dense<0.000000e+00> : vector<8x48xf32>
    %292 = tpu.matmul %289, %291, %cst_49 {dimension_numbers = #tpu.dot_dimension_numbers<[1], [0], [0], [1], [0, 0, 1, 1], [], []>} : vector<8x128xbf16>, vector<128x48xbf16>, vector<8x48xf32> -> vector<8x48xf32>
    %293 = arith.addf %269, %292 : vector<8x48xf32>
    %294 = vector.broadcast %11 : vector<1x48xf32> to vector<8x48xf32>
    %295 = arith.addf %293, %294 : vector<8x48xf32>
    %cst_50 = arith.constant 0.000000e+00 : f32
    %296 = vector.broadcast %cst_50 : f32 to vector<8x48xf32>
    %297 = arith.maximumf %295, %296 : vector<8x48xf32>
    %298 = arith.truncf %297 : vector<8x48xf32> to vector<8x48xbf16>
    %c0_51 = arith.constant 0 : index
    %c0_52 = arith.constant 0 : index
    %299 = vector.load %arg6[%c0_51, %c0_52] : memref<48x48xbf16, #tpu.memory_space<vmem>>, vector<48x48xbf16>
    %cst_53 = arith.constant dense<0.000000e+00> : vector<8x48xf32>
    %300 = tpu.matmul %298, %299, %cst_53 {dimension_numbers = #tpu.dot_dimension_numbers<[1], [0], [0], [1], [0, 0, 1, 1], [], []>} : vector<8x48xbf16>, vector<48x48xbf16>, vector<8x48xf32> -> vector<8x48xf32>
    %301 = vector.broadcast %12 : vector<1x48xf32> to vector<8x48xf32>
    %302 = arith.addf %300, %301 : vector<8x48xf32>
    %cst_54 = arith.constant 0.000000e+00 : f32
    %303 = vector.broadcast %cst_54 : f32 to vector<8x48xf32>
    %304 = arith.maximumf %302, %303 : vector<8x48xf32>
    %305 = arith.truncf %304 : vector<8x48xf32> to vector<8x48xbf16>
    %c0_55 = arith.constant 0 : index
    %c0_56 = arith.constant 0 : index
    %306 = vector.load %arg7[%c0_55, %c0_56] : memref<48x128xbf16, #tpu.memory_space<vmem>>, vector<48x128xbf16>
    %cst_57 = arith.constant dense<0.000000e+00> : vector<8x128xf32>
    %307 = tpu.matmul %305, %306, %cst_57 {dimension_numbers = #tpu.dot_dimension_numbers<[1], [0], [0], [1], [0, 0, 1, 1], [], []>} : vector<8x48xbf16>, vector<48x128xbf16>, vector<8x128xf32> -> vector<8x128xf32>
    %308 = vector.broadcast %13 : vector<1x128xf32> to vector<8x128xf32>
    %309 = arith.addf %307, %308 : vector<8x128xf32>
    %c0_58 = arith.constant 0 : index
    %c0_59 = arith.constant 0 : index
    %310 = vector.load %arg10[%c0_58, %c0_59] : memref<8x128xf32, #tpu.memory_space<vmem>>, vector<8x128xf32>
    tpu.vector_store %arg10[%c0_58, %c0_59], %309 {strides = array<i32>} : memref<8x128xf32, #tpu.memory_space<vmem>>, vector<8x128xf32>,
    return
  }
  func.func @transform_0(%arg0: i32) -> (i32, i32) {
    %c0_i32 = arith.constant 0 : i32
    %c0_i32_0 = arith.constant 0 : i32
    return %arg0, %c0_i32 : i32, i32
  }
  func.func @transform_1(%arg0: i32) -> (i32, i32) {
    %c0_i32 = arith.constant 0 : i32
    %c0_i32_0 = arith.constant 0 : i32
    %c0_i32_1 = arith.constant 0 : i32
    return %c0_i32, %c0_i32_0 : i32, i32
  }
  func.func @transform_2(%arg0: i32) -> (i32, i32) {
    %c0_i32 = arith.constant 0 : i32
    %c0_i32_0 = arith.constant 0 : i32
    %c0_i32_1 = arith.constant 0 : i32
    return %c0_i32, %c0_i32_0 : i32, i32
  }
  func.func @transform_3(%arg0: i32) -> (i32, i32) {
    %c0_i32 = arith.constant 0 : i32
    %c0_i32_0 = arith.constant 0 : i32
    %c0_i32_1 = arith.constant 0 : i32
    return %c0_i32, %c0_i32_0 : i32, i32
  }
  func.func @transform_4(%arg0: i32) -> (i32, i32, i32) {
    %c0_i32 = arith.constant 0 : i32
    %c0_i32_0 = arith.constant 0 : i32
    %c0_i32_1 = arith.constant 0 : i32
    %c0_i32_2 = arith.constant 0 : i32
    return %c0_i32, %c0_i32_0, %c0_i32_1 : i32, i32, i32
  }
  func.func @transform_5(%arg0: i32) -> (i32, i32) {
    %c0_i32 = arith.constant 0 : i32
    %c0_i32_0 = arith.constant 0 : i32
    %c0_i32_1 = arith.constant 0 : i32
    return %c0_i32, %c0_i32_0 : i32, i32
  }
  func.func @transform_6(%arg0: i32) -> (i32, i32) {
    %c0_i32 = arith.constant 0 : i32
    %c0_i32_0 = arith.constant 0 : i32
    %c0_i32_1 = arith.constant 0 : i32
    return %c0_i32, %c0_i32_0 : i32, i32
  }
  func.func @transform_7(%arg0: i32) -> (i32, i32) {
    %c0_i32 = arith.constant 0 : i32
    %c0_i32_0 = arith.constant 0 : i32
    %c0_i32_1 = arith.constant 0 : i32
    return %c0_i32, %c0_i32_0 : i32, i32
  }
  func.func @transform_8(%arg0: i32) -> (i32, i32) {
    %c0_i32 = arith.constant 0 : i32
    %c0_i32_0 = arith.constant 0 : i32
    %c0_i32_1 = arith.constant 0 : i32
    return %c0_i32, %c0_i32_0 : i32, i32
  }
  func.func @transform_9(%arg0: i32) -> (i32, i32) {
    %c0_i32 = arith.constant 0 : i32
    %c0_i32_0 = arith.constant 0 : i32
    return %arg0, %c0_i32 : i32, i32
  }
}

</mosaic_0001>

<llo_original>
// kernel: tpu_custom_call.1
$region0: #{tpu_custom_call.1}
  #allocation0 [shape = 'u32[]', space=smem, size = 0x4, offset = 0x4, fixed_abs, tag = 'smem constant byte address 0x4 - core index']
  #allocation1 [shape = 'u32[144,128]{1,0:T(1,128)}', space=vmem, size = 0x12000, scoped, tag = 'internal scratch']
  %s0 = inlined_call_operand.vmem [shape: f32[8,432], index: 0, kind: input, shape index: {}]
  %s1 = inlined_call_operand.hbm [shape: bf16[432,1152], index: 1, kind: input, shape index: {}]
  %s2 = inlined_call_operand.vmem [shape: f32[9,128], index: 2, kind: input, shape index: {}]
  %s3 = inlined_call_operand.vmem [shape: bf16[432,48], index: 3, kind: input, shape index: {}]
  %s4 = inlined_call_operand.vmem [shape: bf16[9,128,48], index: 4, kind: input, shape index: {}]
  %s5 = inlined_call_operand.vmem [shape: bf16[48,48], index: 5, kind: input, shape index: {}]
  %s6 = inlined_call_operand.vmem [shape: bf16[48,128], index: 6, kind: input, shape index: {}]
  %s7 = inlined_call_operand.vmem [shape: f32[1,1152], index: 7, kind: input, shape index: {}]
  %s8 = inlined_call_operand.vmem [shape: f32[4,128], index: 8, kind: input, shape index: {}]
  %s9 = inlined_call_operand.hbm [shape: f32[8,128], index: 9, kind: output, shape index: {}]
  %s10 = sld [smem:[#allocation0]]
  $region50: #{tpu_custom_call.1} parent=0
    _
  %s12 = ssub.s32 1, %s10
  %s13 = scalar_select 0, %s12, %s10
  $region1: #{tpu_custom_call.1} parent=0
    #allocation2 [shape = 'u8[995328]{0}', space=vmem, size = 0xf3000, scoped, tag = 'input window, operand 1, single buffered']
    #allocation3 [shape = 's32[1]{0}', space=sflag, size = 0x4, scoped, tag = 'scoped memory for tpu_custom_call.1']
    #allocation4 [shape = 's32[1]{0}', space=sflag, size = 0x4, scoped, tag = 'scoped memory for tpu_custom_call.1']
    #allocation5 [shape = 'u8[4096]{0}', space=vmem, size = 0x1000, scoped, tag = 'output window, operand 0, single buffered']
    %14 = vsyncpa [#allocation3], 0
    %15 = vsyncpa [#allocation4], 0
    // Predicated region
    $region2: #{tpu_custom_call.1} parent=1 // pred_check
      _
    $region3: #{tpu_custom_call.1} parent=1 // pred_check_branch
      %17 = sbr.rel (0) target = $region5
    $region4: #{tpu_custom_call.1} parent=1 // pred_region
      _
    $region5: #{tpu_custom_call.1} parent=1 // pred_fallthru
      _
    // Predicated region
    $region6: #{tpu_custom_call.1} parent=1 // pred_check
      _
    $region7: #{tpu_custom_call.1} parent=1 // pred_check_branch
      %19 = sbr.rel (0) target = $region9
    $region8: #{tpu_custom_call.1} parent=1 // pred_region
      %s21 = ssub.s32 31104, 31104
      %22 = vsyncadd [#allocation3], %s21
      %s23 = sshll.u32 [#allocation2], 4
      %s24 = int_to_ptr.vmem [resolvable:$true] %s23
      %29 = dma.hbm_to_vmem [thread:$0]  %s1, 31104, %s24, [#allocation3], 576, 576, 36
    $region9: #{tpu_custom_call.1} parent=1 // pred_fallthru
      _
    // Predicated region
    $region10: #{tpu_custom_call.1} parent=1 // pred_check
      _
    $region11: #{tpu_custom_call.1} parent=1 // pred_check_branch
      %31 = sbr.rel (0) target = $region13
    $region12: #{tpu_custom_call.1} parent=1 // pred_region
      _
    $region13: #{tpu_custom_call.1} parent=1 // pred_fallthru
      _
    // Predicated region
    $region14: #{tpu_custom_call.1} parent=1 // pred_check
      _
    $region15: #{tpu_custom_call.1} parent=1 // pred_check_branch
      %33 = sbr.rel (0) target = $region17
    $region16: #{tpu_custom_call.1} parent=1 // pred_region
      _
    $region17: #{tpu_custom_call.1} parent=1 // pred_fallthru
      _
    // Predicated region
    $region18: #{tpu_custom_call.1} parent=1 // pred_check
      _
    $region19: #{tpu_custom_call.1} parent=1 // pred_check_branch
      %35 = sbr.rel (0) target = $region21
    $region20: #{tpu_custom_call.1} parent=1 // pred_region
      _
    $region21: #{tpu_custom_call.1} parent=1 // pred_fallthru
      _
    // Predicated region
    $region22: #{tpu_custom_call.1} parent=1 // pred_check
      _
    $region23: #{tpu_custom_call.1} parent=1 // pred_check_branch
      %37 = sbr.rel (0) target = $region25
    $region24: #{tpu_custom_call.1} parent=1 // pred_region
      _
    $region25: #{tpu_custom_call.1} parent=1 // pred_fallthru
      _
    // Predicated region
    $region26: #{tpu_custom_call.1} parent=1 // pred_check
      _
    $region27: #{tpu_custom_call.1} parent=1 // pred_check_branch
      %39 = sbr.rel (0) target = $region29
    $region28: #{tpu_custom_call.1} parent=1 // pred_region
      _
    $region29: #{tpu_custom_call.1} parent=1 // pred_fallthru
      _
    // Predicated region
    $region30: #{tpu_custom_call.1} parent=1 // pred_check
      _
    $region31: #{tpu_custom_call.1} parent=1 // pred_check_branch
      %41 = sbr.rel (0) target = $region33
    $region32: #{tpu_custom_call.1} parent=1 // pred_region
      _
    $region33: #{tpu_custom_call.1} parent=1 // pred_fallthru
      _
    // Predicated region
    $region34: #{tpu_custom_call.1} parent=1 // pred_check
      _
    $region35: #{tpu_custom_call.1} parent=1 // pred_check_branch
      %43 = sbr.rel (0) target = $region37
    $region36: #{tpu_custom_call.1} parent=1 // pred_region
      _
    $region37: #{tpu_custom_call.1} parent=1 // pred_fallthru
      _
    // Predicated region
    $region38: #{tpu_custom_call.1} parent=1 // pred_check
      _
    $region39: #{tpu_custom_call.1} parent=1 // pred_check_branch
      %45 = sbr.rel (0) target = $region41
    $region40: #{tpu_custom_call.1} parent=1 // pred_region
      %46 = dma.done [#allocation3], 31104
    $region41: #{tpu_custom_call.1} parent=1 // pred_fallthru
      _
    %v48 = vld [vmem:[%s0] sm:$0xff]
    %v49 = vld [vmem:[%s0 + $0x8] sm:$0xff]
    %v50 = vld [vmem:[%s0 + $0x10] sm:$0xff]
    %v51 = vld [vmem:[%s0 + $0x18] sm:$0xff]
    %v52 = vpack.c.bf16 %v48, %v48
    %v53 = vpack.c.bf16 %v49, %v49
    %v54 = vpack.c.bf16 %v50, %v50
    %v55 = vpack.c.bf16 %v51, %v51
    %v56 = vld [vmem:[#allocation2] sm:$0xff]
    %v57 = vld [vmem:[#allocation2 + $0x8] sm:$0xff]
    %v58 = vld [vmem:[#allocation2 + $0x10] sm:$0xff]
    %v59 = vld [vmem:[#allocation2 + $0x18] sm:$0xff]
    %v60 = vld [vmem:[#allocation2 + $0x20] sm:$0xf]
    %v61 = vld [vmem:[#allocation2 + $0x24] sm:$0xff]
    %v62 = vld [vmem:[#allocation2 + $0x2c] sm:$0xff]
    %v63 = vld [vmem:[#allocation2 + $0x34] sm:$0xff]
    %v64 = vld [vmem:[#allocation2 + $0x3c] sm:$0xff]
    %v65 = vld [vmem:[#allocation2 + $0x44] sm:$0xf]
    %v66 = vld [vmem:[#allocation2 + $0x48] sm:$0xff]
    %v67 = vld [vmem:[#allocation2 + $0x50] sm:$0xff]
    %v68 = vld [vmem:[#allocation2 + $0x58] sm:$0xff]
    %v69 = vld [vmem:[#allocation2 + $0x60] sm:$0xff]
    %v70 = vld [vmem:[#allocation2 + $0x68] sm:$0xf]
    %v71 = vld [vmem:[#allocation2 + $0x6c] sm:$0xff]
    %v72 = vld [vmem:[#allocation2 + $0x74] sm:$0xff]
    %v73 = vld [vmem:[#allocation2 + $0x7c] sm:$0xff]
    %v74 = vld [vmem:[#allocation2 + $0x84] sm:$0xff]
    %v75 = vld [vmem:[#allocation2 + $0x8c] sm:$0xf]
    %v76 = vld [vmem:[#allocation2 + $0x90] sm:$0xff]
    %v77 = vld [vmem:[#allocation2 + $0x98] sm:$0xff]
    %v78 = vld [vmem:[#allocation2 + $0xa0] sm:$0xff]
    %v79 = vld [vmem:[#allocation2 + $0xa8] sm:$0xff]
    %v80 = vld [vmem:[#allocation2 + $0xb0] sm:$0xf]
    %v81 = vld [vmem:[#allocation2 + $0xb4] sm:$0xff]
    %v82 = vld [vmem:[#allocation2 + $0xbc] sm:$0xff]
    %v83 = vld [vmem:[#allocation2 + $0xc4] sm:$0xff]
    %v84 = vld [vmem:[#allocation2 + $0xcc] sm:$0xff]
    %v85 = vld [vmem:[#allocation2 + $0xd4] sm:$0xf]
    %v86 = vld [vmem:[#allocation2 + $0xd8] sm:$0xff]
    %v87 = vld [vmem:[#allocation2 + $0xe0] sm:$0xff]
    %v88 = vld [vmem:[#allocation2 + $0xe8] sm:$0xff]
    %v89 = vld [vmem:[#allocation2 + $0xf0] sm:$0xff]
    %v90 = vld [vmem:[#allocation2 + $0xf8] sm:$0xf]
    %v91 = vld [vmem:[#allocation2 + $0xfc] sm:$0xff]
    %v92 = vld [vmem:[#allocation2 + $0x104] sm:$0xff]
    %v93 = vld [vmem:[#allocation2 + $0x10c] sm:$0xff]
    %v94 = vld [vmem:[#allocation2 + $0x114] sm:$0xff]
    %v95 = vld [vmem:[#allocation2 + $0x11c] sm:$0xf]
    %v96 = vld [vmem:[#allocation2 + $0x120] sm:$0xff]
    %v97 = vld [vmem:[#allocation2 + $0x128] sm:$0xff]
    %v98 = vld [vmem:[#allocation2 + $0x130] sm:$0xff]
    %v99 = vld [vmem:[#allocation2 + $0x138] sm:$0xff]
    %v100 = vld [vmem:[#allocation2 + $0x140] sm:$0xf]
    %v101 = vld [vmem:[#allocation2 + $0x144] sm:$0xff]
    %v102 = vld [vmem:[#allocation2 + $0x14c] sm:$0xff]
    %v103 = vld [vmem:[#allocation2 + $0x154] sm:$0xff]
    %v104 = vld [vmem:[#allocation2 + $0x15c] sm:$0xff]
    %v105 = vld [vmem:[#allocation2 + $0x164] sm:$0xf]
    %v106 = vld [vmem:[#allocation2 + $0x168] sm:$0xff]
    %v107 = vld [vmem:[#allocation2 + $0x170] sm:$0xff]
    %v108 = vld [vmem:[#allocation2 + $0x178] sm:$0xff]
    %v109 = vld [vmem:[#allocation2 + $0x180] sm:$0xff]
    %v110 = vld [vmem:[#allocation2 + $0x188] sm:$0xf]
    %v111 = vld [vmem:[#allocation2 + $0x18c] sm:$0xff]
    %v112 = vld [vmem:[#allocation2 + $0x194] sm:$0xff]
    %v113 = vld [vmem:[#allocation2 + $0x19c] sm:$0xff]
    %v114 = vld [vmem:[#allocation2 + $0x1a4] sm:$0xff]
    %v115 = vld [vmem:[#allocation2 + $0x1ac] sm:$0xf]
    %v116 = vld [vmem:[#allocation2 + $0x1b0] sm:$0xff]
    %v117 = vld [vmem:[#allocation2 + $0x1b8] sm:$0xff]
    %v118 = vld [vmem:[#allocation2 + $0x1c0] sm:$0xff]
    %v119 = vld [vmem:[#allocation2 + $0x1c8] sm:$0xff]
    %v120 = vld [vmem:[#allocation2 + $0x1d0] sm:$0xf]
    %v121 = vld [vmem:[#allocation2 + $0x1d4] sm:$0xff]
    %v122 = vld [vmem:[#allocation2 + $0x1dc] sm:$0xff]
    %v123 = vld [vmem:[#allocation2 + $0x1e4] sm:$0xff]
    %v124 = vld [vmem:[#allocation2 + $0x1ec] sm:$0xff]
    %v125 = vld [vmem:[#allocation2 + $0x1f4] sm:$0xf]
    %v126 = vld [vmem:[#allocation2 + $0x1f8] sm:$0xff]
    %v127 = vld [vmem:[#allocation2 + $0x200] sm:$0xff]
    %v128 = vld [vmem:[#allocation2 + $0x208] sm:$0xff]
    %v129 = vld [vmem:[#allocation2 + $0x210] sm:$0xff]
    %v130 = vld [vmem:[#allocation2 + $0x218] sm:$0xf]
    %v131 = vld [vmem:[#allocation2 + $0x21c] sm:$0xff]
    %v132 = vld [vmem:[#allocation2 + $0x224] sm:$0xff]
    %v133 = vld [vmem:[#allocation2 + $0x22c] sm:$0xff]
    %v134 = vld [vmem:[#allocation2 + $0x234] sm:$0xff]
    %v135 = vld [vmem:[#allocation2 + $0x23c] sm:$0xf]
    %v136 = vld [vmem:[#allocation2 + $0x240] sm:$0xff]
    %v137 = vld [vmem:[#allocation2 + $0x248] sm:$0xff]
    %v138 = vld [vmem:[#allocation2 + $0x250] sm:$0xff]
    %v139 = vld [vmem:[#allocation2 + $0x258] sm:$0xff]
    %v140 = vld [vmem:[#allocation2 + $0x260] sm:$0xf]
    %v141 = vld [vmem:[#allocation2 + $0x264] sm:$0xff]
    %v142 = vld [vmem:[#allocation2 + $0x26c] sm:$0xff]
    %v143 = vld [vmem:[#allocation2 + $0x274] sm:$0xff]
    %v144 = vld [vmem:[#allocation2 + $0x27c] sm:$0xff]
    %v145 = vld [vmem:[#allocation2 + $0x284] sm:$0xf]
    %v146 = vld [vmem:[#allocation2 + $0x288] sm:$0xff]
    %v147 = vld [vmem:[#allocation2 + $0x290] sm:$0xff]
    %v148 = vld [vmem:[#allocation2 + $0x298] sm:$0xff]
    %v149 = vld [vmem:[#allocation2 + $0x2a0] sm:$0xff]
    %v150 = vld [vmem:[#allocation2 + $0x2a8] sm:$0xf]
    %v151 = vld [vmem:[#allocation2 + $0x2ac] sm:$0xff]
    %v152 = vld [vmem:[#allocation2 + $0x2b4] sm:$0xff]
    %v153 = vld [vmem:[#allocation2 + $0x2bc] sm:$0xff]
    %v154 = vld [vmem:[#allocation2 + $0x2c4] sm:$0xff]
    %v155 = vld [vmem:[#allocation2 + $0x2cc] sm:$0xf]
    %v156 = vld [vmem:[#allocation2 + $0x2d0] sm:$0xff]
    %v157 = vld [vmem:[#allocation2 + $0x2d8] sm:$0xff]
    %v158 = vld [vmem:[#allocation2 + $0x2e0] sm:$0xff]
    %v159 = vld [vmem:[#allocation2 + $0x2e8] sm:$0xff]
    %v160 = vld [vmem:[#allocation2 + $0x2f0] sm:$0xf]
    %v161 = vld [vmem:[#allocation2 + $0x2f4] sm:$0xff]
    %v162 = vld [vmem:[#allocation2 + $0x2fc] sm:$0xff]
    %v163 = vld [vmem:[#allocation2 + $0x304] sm:$0xff]
    %v164 = vld [vmem:[#allocation2 + $0x30c] sm:$0xff]
    %v165 = vld [vmem:[#allocation2 + $0x314] sm:$0xf]
    %v166 = vld [vmem:[#allocation2 + $0x318] sm:$0xff]
    %v167 = vld [vmem:[#allocation2 + $0x320] sm:$0xff]
    %v168 = vld [vmem:[#allocation2 + $0x328] sm:$0xff]
    %v169 = vld [vmem:[#allocation2 + $0x330] sm:$0xff]
    %v170 = vld [vmem:[#allocation2 + $0x338] sm:$0xf]
    %v171 = vld [vmem:[#allocation2 + $0x33c] sm:$0xff]
    %v172 = vld [vmem:[#allocation2 + $0x344] sm:$0xff]
    %v173 = vld [vmem:[#allocation2 + $0x34c] sm:$0xff]
    %v174 = vld [vmem:[#allocation2 + $0x354] sm:$0xff]
    %v175 = vld [vmem:[#allocation2 + $0x35c] sm:$0xf]
    %v176 = vld [vmem:[#allocation2 + $0x360] sm:$0xff]
    %v177 = vld [vmem:[#allocation2 + $0x368] sm:$0xff]
    %v178 = vld [vmem:[#allocation2 + $0x370] sm:$0xff]
    %v179 = vld [vmem:[#allocation2 + $0x378] sm:$0xff]
    %v180 = vld [vmem:[#allocation2 + $0x380] sm:$0xf]
    %v181 = vld [vmem:[#allocation2 + $0x384] sm:$0xff]
    %v182 = vld [vmem:[#allocation2 + $0x38c] sm:$0xff]
    %v183 = vld [vmem:[#allocation2 + $0x394] sm:$0xff]
    %v184 = vld [vmem:[#allocation2 + $0x39c] sm:$0xff]
    %v185 = vld [vmem:[#allocation2 + $0x3a4] sm:$0xf]
    %v186 = vld [vmem:[#allocation2 + $0x3a8] sm:$0xff]
    %v187 = vld [vmem:[#allocation2 + $0x3b0] sm:$0xff]
    %v188 = vld [vmem:[#allocation2 + $0x3b8] sm:$0xff]
    %v189 = vld [vmem:[#allocation2 + $0x3c0] sm:$0xff]
    %v190 = vld [vmem:[#allocation2 + $0x3c8] sm:$0xf]
    %v191 = vld [vmem:[#allocation2 + $0x3cc] sm:$0xff]
    %v192 = vld [vmem:[#allocation2 + $0x3d4] sm:$0xff]
    %v193 = vld [vmem:[#allocation2 + $0x3dc] sm:$0xff]
    %v194 = vld [vmem:[#allocation2 + $0x3e4] sm:$0xff]
    %v195 = vld [vmem:[#allocation2 + $0x3ec] sm:$0xf]
    %v196 = vld [vmem:[#allocation2 + $0x3f0] sm:$0xff]
    %v197 = vld [vmem:[#allocation2 + $0x3f8] sm:$0xff]
    %v198 = vld [vmem:[#allocation2 + $0x400] sm:$0xff]
    %v199 = vld [vmem:[#allocation2 + $0x408] sm:$0xff]
    %v200 = vld [vmem:[#allocation2 + $0x410] sm:$0xf]
    %v201 = vld [vmem:[#allocation2 + $0x414] sm:$0xff]
    %v202 = vld [vmem:[#allocation2 + $0x41c] sm:$0xff]
    %v203 = vld [vmem:[#allocation2 + $0x424] sm:$0xff]
    %v204 = vld [vmem:[#allocation2 + $0x42c] sm:$0xff]
    %v205 = vld [vmem:[#allocation2 + $0x434] sm:$0xf]
    %v206 = vld [vmem:[#allocation2 + $0x438] sm:$0xff]
    %v207 = vld [vmem:[#allocation2 + $0x440] sm:$0xff]
    %v208 = vld [vmem:[#allocation2 + $0x448] sm:$0xff]
    %v209 = vld [vmem:[#allocation2 + $0x450] sm:$0xff]
    %v210 = vld [vmem:[#allocation2 + $0x458] sm:$0xf]
    %v211 = vld [vmem:[#allocation2 + $0x45c] sm:$0xff]
    %v212 = vld [vmem:[#allocation2 + $0x464] sm:$0xff]
    %v213 = vld [vmem:[#allocation2 + $0x46c] sm:$0xff]
    %v214 = vld [vmem:[#allocation2 + $0x474] sm:$0xff]
    %v215 = vld [vmem:[#allocation2 + $0x47c] sm:$0xf]
    %v216 = vld [vmem:[#allocation2 + $0x480] sm:$0xff]
    %v217 = vld [vmem:[#allocation2 + $0x488] sm:$0xff]
    %v218 = vld [vmem:[#allocation2 + $0x490] sm:$0xff]
    %v219 = vld [vmem:[#allocation2 + $0x498] sm:$0xff]
    %v220 = vld [vmem:[#allocation2 + $0x4a0] sm:$0xf]
    %v221 = vld [vmem:[#allocation2 + $0x4a4] sm:$0xff]
    %v222 = vld [vmem:[#allocation2 + $0x4ac] sm:$0xff]
    %v223 = vld [vmem:[#allocation2 + $0x4b4] sm:$0xff]
    %v224 = vld [vmem:[#allocation2 + $0x4bc] sm:$0xff]
    %v225 = vld [vmem:[#allocation2 + $0x4c4] sm:$0xf]
    %v226 = vld [vmem:[#allocation2 + $0x4c8] sm:$0xff]
    %v227 = vld [vmem:[#allocation2 + $0x4d0] sm:$0xff]
    %v228 = vld [vmem:[#allocation2 + $0x4d8] sm:$0xff]
    %v229 = vld [vmem:[#allocation2 + $0x4e0] sm:$0xff]
    %v230 = vld [vmem:[#allocation2 + $0x4e8] sm:$0xf]
    %v231 = vld [vmem:[#allocation2 + $0x4ec] sm:$0xff]
    %v232 = vld [vmem:[#allocation2 + $0x4f4] sm:$0xff]
    %v233 = vld [vmem:[#allocation2 + $0x4fc] sm:$0xff]
    %v234 = vld [vmem:[#allocation2 + $0x504] sm:$0xff]
    %v235 = vld [vmem:[#allocation2 + $0x50c] sm:$0xf]
    %v236 = vld [vmem:[#allocation2 + $0x510] sm:$0xff]
    %v237 = vld [vmem:[#allocation2 + $0x518] sm:$0xff]
    %v238 = vld [vmem:[#allocation2 + $0x520] sm:$0xff]
    %v239 = vld [vmem:[#allocation2 + $0x528] sm:$0xff]
    %v240 = vld [vmem:[#allocation2 + $0x530] sm:$0xf]
    %v241 = vld [vmem:[#allocation2 + $0x534] sm:$0xff]
    %v242 = vld [vmem:[#allocation2 + $0x53c] sm:$0xff]
    %v243 = vld [vmem:[#allocation2 + $0x544] sm:$0xff]
    %v244 = vld [vmem:[#allocation2 + $0x54c] sm:$0xff]
    %v245 = vld [vmem:[#allocation2 + $0x554] sm:$0xf]
    %v246 = vld [vmem:[#allocation2 + $0x558] sm:$0xff]
    %v247 = vld [vmem:[#allocation2 + $0x560] sm:$0xff]
    %v248 = vld [vmem:[#allocation2 + $0x568] sm:$0xff]
    %v249 = vld [vmem:[#allocation2 + $0x570] sm:$0xff]
    %v250 = vld [vmem:[#allocation2 + $0x578] sm:$0xf]
    %v251 = vld [vmem:[#allocation2 + $0x57c] sm:$0xff]
    %v252 = vld [vmem:[#allocation2 + $0x584] sm:$0xff]
    %v253 = vld [vmem:[#allocation2 + $0x58c] sm:$0xff]
    %v254 = vld [vmem:[#allocation2 + $0x594] sm:$0xff]
    %v255 = vld [vmem:[#allocation2 + $0x59c] sm:$0xf]
    %v256 = vld [vmem:[#allocation2 + $0x5a0] sm:$0xff]
    %v257 = vld [vmem:[#allocation2 + $0x5a8] sm:$0xff]
    %v258 = vld [vmem:[#allocation2 + $0x5b0] sm:$0xff]
    %v259 = vld [vmem:[#allocation2 + $0x5b8] sm:$0xff]
    %v260 = vld [vmem:[#allocation2 + $0x5c0] sm:$0xf]
    %v261 = vld [vmem:[#allocation2 + $0x5c4] sm:$0xff]
    %v262 = vld [vmem:[#allocation2 + $0x5cc] sm:$0xff]
    %v263 = vld [vmem:[#allocation2 + $0x5d4] sm:$0xff]
    %v264 = vld [vmem:[#allocation2 + $0x5dc] sm:$0xff]
    %v265 = vld [vmem:[#allocation2 + $0x5e4] sm:$0xf]
    %v266 = vld [vmem:[#allocation2 + $0x5e8] sm:$0xff]
    %v267 = vld [vmem:[#allocation2 + $0x5f0] sm:$0xff]
    %v268 = vld [vmem:[#allocation2 + $0x5f8] sm:$0xff]
    %v269 = vld [vmem:[#allocation2 + $0x600] sm:$0xff]
    %v270 = vld [vmem:[#allocation2 + $0x608] sm:$0xf]
    %v271 = vld [vmem:[#allocation2 + $0x60c] sm:$0xff]
    %v272 = vld [vmem:[#allocation2 + $0x614] sm:$0xff]
    %v273 = vld [vmem:[#allocation2 + $0x61c] sm:$0xff]
    %v274 = vld [vmem:[#allocation2 + $0x624] sm:$0xff]
    %v275 = vld [vmem:[#allocation2 + $0x62c] sm:$0xf]
    %v276 = vld [vmem:[#allocation2 + $0x630] sm:$0xff]
    %v277 = vld [vmem:[#allocation2 + $0x638] sm:$0xff]
    %v278 = vld [vmem:[#allocation2 + $0x640] sm:$0xff]
    %v279 = vld [vmem:[#allocation2 + $0x648] sm:$0xff]
    %v280 = vld [vmem:[#allocation2 + $0x650] sm:$0xf]
    %v281 = vld [vmem:[#allocation2 + $0x654] sm:$0xff]
    %v282 = vld [vmem:[#allocation2 + $0x65c] sm:$0xff]
    %v283 = vld [vmem:[#allocation2 + $0x664] sm:$0xff]
    %v284 = vld [vmem:[#allocation2 + $0x66c] sm:$0xff]
    %v285 = vld [vmem:[#allocation2 + $0x674] sm:$0xf]
    %v286 = vld [vmem:[#allocation2 + $0x678] sm:$0xff]
    %v287 = vld [vmem:[#allocation2 + $0x680] sm:$0xff]
    %v288 = vld [vmem:[#allocation2 + $0x688] sm:$0xff]
    %v289 = vld [vmem:[#allocation2 + $0x690] sm:$0xff]
    %v290 = vld [vmem:[#allocation2 + $0x698] sm:$0xf]
    %v291 = vld [vmem:[#allocation2 + $0x69c] sm:$0xff]
    %v292 = vld [vmem:[#allocation2 + $0x6a4] sm:$0xff]
    %v293 = vld [vmem:[#allocation2 + $0x6ac] sm:$0xff]
    %v294 = vld [vmem:[#allocation2 + $0x6b4] sm:$0xff]
    %v295 = vld [vmem:[#allocation2 + $0x6bc] sm:$0xf]
    %v296 = vld [vmem:[#allocation2 + $0x6c0] sm:$0xff]
    %v297 = vld [vmem:[#allocation2 + $0x6c8] sm:$0xff]
    %v298 = vld [vmem:[#allocation2 + $0x6d0] sm:$0xff]
    %v299 = vld [vmem:[#allocation2 + $0x6d8] sm:$0xff]
    %v300 = vld [vmem:[#allocation2 + $0x6e0] sm:$0xf]
    %v301 = vld [vmem:[#allocation2 + $0x6e4] sm:$0xff]
    %v302 = vld [vmem:[#allocation2 + $0x6ec] sm:$0xff]
    %v303 = vld [vmem:[#allocation2 + $0x6f4] sm:$0xff]
    %v304 = vld [vmem:[#allocation2 + $0x6fc] sm:$0xff]
    %v305 = vld [vmem:[#allocation2 + $0x704] sm:$0xf]
    %v306 = vld [vmem:[#allocation2 + $0x708] sm:$0xff]
    %v307 = vld [vmem:[#allocation2 + $0x710] sm:$0xff]
    %v308 = vld [vmem:[#allocation2 + $0x718] sm:$0xff]
    %v309 = vld [vmem:[#allocation2 + $0x720] sm:$0xff]
    %v310 = vld [vmem:[#allocation2 + $0x728] sm:$0xf]
    %v311 = vld [vmem:[#allocation2 + $0x72c] sm:$0xff]
    %v312 = vld [vmem:[#allocation2 + $0x734] sm:$0xff]
    %v313 = vld [vmem:[#allocation2 + $0x73c] sm:$0xff]
    %v314 = vld [vmem:[#allocation2 + $0x744] sm:$0xff]
    %v315 = vld [vmem:[#allocation2 + $0x74c] sm:$0xf]
    %v316 = vld [vmem:[#allocation2 + $0x750] sm:$0xff]
    %v317 = vld [vmem:[#allocation2 + $0x758] sm:$0xff]
    %v318 = vld [vmem:[#allocation2 + $0x760] sm:$0xff]
    %v319 = vld [vmem:[#allocation2 + $0x768] sm:$0xff]
    %v320 = vld [vmem:[#allocation2 + $0x770] sm:$0xf]
    %v321 = vld [vmem:[#allocation2 + $0x774] sm:$0xff]
    %v322 = vld [vmem:[#allocation2 + $0x77c] sm:$0xff]
    %v323 = vld [vmem:[#allocation2 + $0x784] sm:$0xff]
    %v324 = vld [vmem:[#allocation2 + $0x78c] sm:$0xff]
    %v325 = vld [vmem:[#allocation2 + $0x794] sm:$0xf]
    %v326 = vld [vmem:[%s7] sm:$0xff]
    %v327 = vld [vmem:[%s7 + $0x8] sm:$0x1]
    %v330 = vlaneseq
    %v331 = vshrl.u32 %v330, 7
    %v332 = vsub.s32 0, %v331
    %v333 = vrot.slane %v326, %v332
    %v334 = vlaneseq
    %v335 = vshrl.u32 %v334, 7
    %v336 = vsub.s32 1, %v335
    %v337 = vrot.slane %v326, %v336
    %v338 = vlaneseq
    %v339 = vshrl.u32 %v338, 7
    %v340 = vsub.s32 2, %v339
    %v341 = vrot.slane %v326, %v340
    %v342 = vlaneseq
    %v343 = vshrl.u32 %v342, 7
    %v344 = vsub.s32 3, %v343
    %v345 = vrot.slane %v326, %v344
    %v346 = vlaneseq
    %v347 = vshrl.u32 %v346, 7
    %v348 = vsub.s32 4, %v347
    %v349 = vrot.slane %v326, %v348
    %v350 = vlaneseq
    %v351 = vshrl.u32 %v350, 7
    %v352 = vsub.s32 5, %v351
    %v353 = vrot.slane %v326, %v352
    %v354 = vlaneseq
    %v355 = vshrl.u32 %v354, 7
    %v356 = vsub.s32 6, %v355
    %v357 = vrot.slane %v326, %v356
    %v358 = vlaneseq
    %v359 = vshrl.u32 %v358, 7
    %v360 = vsub.s32 7, %v359
    %v361 = vrot.slane %v326, %v360
    %v362 = vlaneseq
    %v363 = vshrl.u32 %v362, 7
    %v364 = vsub.s32 0, %v363
    %v365 = vrot.slane %v327, %v364
    %v645 = vunpack.c.l.b16 %v56
    %v646 = vunpack.c.h.b16 %v56
    %v647 = vunpack.c.l.b16 %v57
    %v648 = vunpack.c.h.b16 %v57
    %v649 = vunpack.c.l.b16 %v58
    %v650 = vunpack.c.h.b16 %v58
    %v651 = vunpack.c.l.b16 %v59
    %v652 = vunpack.c.h.b16 %v59
    %v653 = vunpack.c.l.b16 %v60
    %v654 = vunpack.c.l.b16 %v61
    %v655 = vunpack.c.h.b16 %v61
    %v656 = vunpack.c.l.b16 %v62
    %v657 = vunpack.c.h.b16 %v62
    %v658 = vunpack.c.l.b16 %v63
    %v659 = vunpack.c.h.b16 %v63
    %v660 = vunpack.c.l.b16 %v64
    %v661 = vunpack.c.h.b16 %v64
    %v662 = vunpack.c.l.b16 %v65
    %v663 = vunpack.c.l.b16 %v66
    %v664 = vunpack.c.h.b16 %v66
    %v665 = vunpack.c.l.b16 %v67
    %v666 = vunpack.c.h.b16 %v67
    %v667 = vunpack.c.l.b16 %v68
    %v668 = vunpack.c.h.b16 %v68
    %v669 = vunpack.c.l.b16 %v69
    %v670 = vunpack.c.h.b16 %v69
    %v671 = vunpack.c.l.b16 %v70
    %v672 = vunpack.c.l.b16 %v71
    %v673 = vunpack.c.h.b16 %v71
    %v674 = vunpack.c.l.b16 %v72
    %v675 = vunpack.c.h.b16 %v72
    %v676 = vunpack.c.l.b16 %v73
    %v677 = vunpack.c.h.b16 %v73
    %v678 = vunpack.c.l.b16 %v74
    %v679 = vunpack.c.h.b16 %v74
    %v680 = vunpack.c.l.b16 %v75
    %v681 = vunpack.c.l.b16 %v76
    %v682 = vunpack.c.h.b16 %v76
    %v683 = vunpack.c.l.b16 %v77
    %v684 = vunpack.c.h.b16 %v77
    %v685 = vunpack.c.l.b16 %v78
    %v686 = vunpack.c.h.b16 %v78
    %v687 = vunpack.c.l.b16 %v79
    %v688 = vunpack.c.h.b16 %v79
    %v689 = vunpack.c.l.b16 %v80
    %v690 = vunpack.c.l.b16 %v81
    %v691 = vunpack.c.h.b16 %v81
    %v692 = vunpack.c.l.b16 %v82
    %v693 = vunpack.c.h.b16 %v82
    %v694 = vunpack.c.l.b16 %v83
    %v695 = vunpack.c.h.b16 %v83
    %v696 = vunpack.c.l.b16 %v84
    %v697 = vunpack.c.h.b16 %v84
    %v698 = vunpack.c.l.b16 %v85
    %v699 = vunpack.c.l.b16 %v86
    %v700 = vunpack.c.h.b16 %v86
    %v701 = vunpack.c.l.b16 %v87
    %v702 = vunpack.c.h.b16 %v87
    %v703 = vunpack.c.l.b16 %v88
    %v704 = vunpack.c.h.b16 %v88
    %v705 = vunpack.c.l.b16 %v89
    %v706 = vunpack.c.h.b16 %v89
    %v707 = vunpack.c.l.b16 %v90
    %v708 = vunpack.c.l.b16 %v91
    %v709 = vunpack.c.h.b16 %v91
    %v710 = vunpack.c.l.b16 %v92
    %v711 = vunpack.c.h.b16 %v92
    %v712 = vunpack.c.l.b16 %v93
    %v713 = vunpack.c.h.b16 %v93
    %v714 = vunpack.c.l.b16 %v94
    %v715 = vunpack.c.h.b16 %v94
    %v716 = vunpack.c.l.b16 %v95
    %v717 = vunpack.c.l.b16 %v96
    %v718 = vunpack.c.h.b16 %v96
    %v719 = vunpack.c.l.b16 %v97
    %v720 = vunpack.c.h.b16 %v97
    %v721 = vunpack.c.l.b16 %v98
    %v722 = vunpack.c.h.b16 %v98
    %v723 = vunpack.c.l.b16 %v99
    %v724 = vunpack.c.h.b16 %v99
    %v725 = vunpack.c.l.b16 %v100
    %v726 = vunpack.c.l.b16 %v101
    %v727 = vunpack.c.h.b16 %v101
    %v728 = vunpack.c.l.b16 %v102
    %v729 = vunpack.c.h.b16 %v102
    %v730 = vunpack.c.l.b16 %v103
    %v731 = vunpack.c.h.b16 %v103
    %v732 = vunpack.c.l.b16 %v104
    %v733 = vunpack.c.h.b16 %v104
    %v734 = vunpack.c.l.b16 %v105
    %v735 = vunpack.c.l.b16 %v106
    %v736 = vunpack.c.h.b16 %v106
    %v737 = vunpack.c.l.b16 %v107
    %v738 = vunpack.c.h.b16 %v107
    %v739 = vunpack.c.l.b16 %v108
    %v740 = vunpack.c.h.b16 %v108
    %v741 = vunpack.c.l.b16 %v109
    %v742 = vunpack.c.h.b16 %v109
    %v743 = vunpack.c.l.b16 %v110
    %v744 = vunpack.c.l.b16 %v111
    %v745 = vunpack.c.h.b16 %v111
    %v746 = vunpack.c.l.b16 %v112
    %v747 = vunpack.c.h.b16 %v112
    %v748 = vunpack.c.l.b16 %v113
    %v749 = vunpack.c.h.b16 %v113
    %v750 = vunpack.c.l.b16 %v114
    %v751 = vunpack.c.h.b16 %v114
    %v752 = vunpack.c.l.b16 %v115
    %v753 = vunpack.c.l.b16 %v116
    %v754 = vunpack.c.h.b16 %v116
    %v755 = vunpack.c.l.b16 %v117
    %v756 = vunpack.c.h.b16 %v117
    %v757 = vunpack.c.l.b16 %v118
    %v758 = vunpack.c.h.b16 %v118
    %v759 = vunpack.c.l.b16 %v119
    %v760 = vunpack.c.h.b16 %v119
    %v761 = vunpack.c.l.b16 %v120
    %v762 = vunpack.c.l.b16 %v121
    %v763 = vunpack.c.h.b16 %v121
    %v764 = vunpack.c.l.b16 %v122
    %v765 = vunpack.c.h.b16 %v122
    %v766 = vunpack.c.l.b16 %v123
    %v767 = vunpack.c.h.b16 %v123
    %v768 = vunpack.c.l.b16 %v124
    %v769 = vunpack.c.h.b16 %v124
    %v770 = vunpack.c.l.b16 %v125
    %v771 = vunpack.c.l.b16 %v126
    %v772 = vunpack.c.h.b16 %v126
    %v773 = vunpack.c.l.b16 %v127
    %v774 = vunpack.c.h.b16 %v127
    %v775 = vunpack.c.l.b16 %v128
    %v776 = vunpack.c.h.b16 %v128
    %v777 = vunpack.c.l.b16 %v129
    %v778 = vunpack.c.h.b16 %v129
    %v779 = vunpack.c.l.b16 %v130
    %v780 = vunpack.c.l.b16 %v131
    %v781 = vunpack.c.h.b16 %v131
    %v782 = vunpack.c.l.b16 %v132
    %v783 = vunpack.c.h.b16 %v132
    %v784 = vunpack.c.l.b16 %v133
    %v785 = vunpack.c.h.b16 %v133
    %v786 = vunpack.c.l.b16 %v134
    %v787 = vunpack.c.h.b16 %v134
    %v788 = vunpack.c.l.b16 %v135
    %v789 = vunpack.c.l.b16 %v136
    %v790 = vunpack.c.h.b16 %v136
    %v791 = vunpack.c.l.b16 %v137
    %v792 = vunpack.c.h.b16 %v137
    %v793 = vunpack.c.l.b16 %v138
    %v794 = vunpack.c.h.b16 %v138
    %v795 = vunpack.c.l.b16 %v139
    %v796 = vunpack.c.h.b16 %v139
    %v797 = vunpack.c.l.b16 %v140
    %v798 = vunpack.c.l.b16 %v141
    %v799 = vunpack.c.h.b16 %v141
    %v800 = vunpack.c.l.b16 %v142
    %v801 = vunpack.c.h.b16 %v142
    %v802 = vunpack.c.l.b16 %v143
    %v803 = vunpack.c.h.b16 %v143
    %v804 = vunpack.c.l.b16 %v144
    %v805 = vunpack.c.h.b16 %v144
    %v806 = vunpack.c.l.b16 %v145
    %v807 = vunpack.c.l.b16 %v146
    %v808 = vunpack.c.h.b16 %v146
    %v809 = vunpack.c.l.b16 %v147
    %v810 = vunpack.c.h.b16 %v147
    %v811 = vunpack.c.l.b16 %v148
    %v812 = vunpack.c.h.b16 %v148
    %v813 = vunpack.c.l.b16 %v149
    %v814 = vunpack.c.h.b16 %v149
    %v815 = vunpack.c.l.b16 %v150
    %v816 = vunpack.c.l.b16 %v151
    %v817 = vunpack.c.h.b16 %v151
    %v818 = vunpack.c.l.b16 %v152
    %v819 = vunpack.c.h.b16 %v152
    %v820 = vunpack.c.l.b16 %v153
    %v821 = vunpack.c.h.b16 %v153
    %v822 = vunpack.c.l.b16 %v154
    %v823 = vunpack.c.h.b16 %v154
    %v824 = vunpack.c.l.b16 %v155
    %v825 = vunpack.c.l.b16 %v156
    %v826 = vunpack.c.h.b16 %v156
    %v827 = vunpack.c.l.b16 %v157
    %v828 = vunpack.c.h.b16 %v157
    %v829 = vunpack.c.l.b16 %v158
    %v830 = vunpack.c.h.b16 %v158
    %v831 = vunpack.c.l.b16 %v159
    %v832 = vunpack.c.h.b16 %v159
    %v833 = vunpack.c.l.b16 %v160
    %v834 = vunpack.c.l.b16 %v161
    %v835 = vunpack.c.h.b16 %v161
    %v836 = vunpack.c.l.b16 %v162
    %v837 = vunpack.c.h.b16 %v162
    %v838 = vunpack.c.l.b16 %v163
    %v839 = vunpack.c.h.b16 %v163
    %v840 = vunpack.c.l.b16 %v164
    %v841 = vunpack.c.h.b16 %v164
    %v842 = vunpack.c.l.b16 %v165
    %v843 = vunpack.c.l.b16 %v166
    %v844 = vunpack.c.h.b16 %v166
    %v845 = vunpack.c.l.b16 %v167
    %v846 = vunpack.c.h.b16 %v167
    %v847 = vunpack.c.l.b16 %v168
    %v848 = vunpack.c.h.b16 %v168
    %v849 = vunpack.c.l.b16 %v169
    %v850 = vunpack.c.h.b16 %v169
    %v851 = vunpack.c.l.b16 %v170
    %v852 = vunpack.c.l.b16 %v171
    %v853 = vunpack.c.h.b16 %v171
    %v854 = vunpack.c.l.b16 %v172
    %v855 = vunpack.c.h.b16 %v172
    %v856 = vunpack.c.l.b16 %v173
    %v857 = vunpack.c.h.b16 %v173
    %v858 = vunpack.c.l.b16 %v174
    %v859 = vunpack.c.h.b16 %v174
    %v860 = vunpack.c.l.b16 %v175
    %v861 = vunpack.c.l.b16 %v176
    %v862 = vunpack.c.h.b16 %v176
    %v863 = vunpack.c.l.b16 %v177
    %v864 = vunpack.c.h.b16 %v177
    %v865 = vunpack.c.l.b16 %v178
    %v866 = vunpack.c.h.b16 %v178
    %v867 = vunpack.c.l.b16 %v179
    %v868 = vunpack.c.h.b16 %v179
    %v869 = vunpack.c.l.b16 %v180
    %v870 = vunpack.c.l.b16 %v181
    %v871 = vunpack.c.h.b16 %v181
    %v872 = vunpack.c.l.b16 %v182
    %v873 = vunpack.c.h.b16 %v182
    %v874 = vunpack.c.l.b16 %v183
    %v875 = vunpack.c.h.b16 %v183
    %v876 = vunpack.c.l.b16 %v184
    %v877 = vunpack.c.h.b16 %v184
    %v878 = vunpack.c.l.b16 %v185
    %v879 = vunpack.c.l.b16 %v186
    %v880 = vunpack.c.h.b16 %v186
    %v881 = vunpack.c.l.b16 %v187
    %v882 = vunpack.c.h.b16 %v187
    %v883 = vunpack.c.l.b16 %v188
    %v884 = vunpack.c.h.b16 %v188
    %v885 = vunpack.c.l.b16 %v189
    %v886 = vunpack.c.h.b16 %v189
    %v887 = vunpack.c.l.b16 %v190
    %v888 = vunpack.c.l.b16 %v191
    %v889 = vunpack.c.h.b16 %v191
    %v890 = vunpack.c.l.b16 %v192
    %v891 = vunpack.c.h.b16 %v192
    %v892 = vunpack.c.l.b16 %v193
    %v893 = vunpack.c.h.b16 %v193
    %v894 = vunpack.c.l.b16 %v194
    %v895 = vunpack.c.h.b16 %v194
    %v896 = vunpack.c.l.b16 %v195
    %v897 = vunpack.c.l.b16 %v196
    %v898 = vunpack.c.h.b16 %v196
    %v899 = vunpack.c.l.b16 %v197
    %v900 = vunpack.c.h.b16 %v197
    %v901 = vunpack.c.l.b16 %v198
    %v902 = vunpack.c.h.b16 %v198
    %v903 = vunpack.c.l.b16 %v199
    %v904 = vunpack.c.h.b16 %v199
    %v905 = vunpack.c.l.b16 %v200
    %v906 = vunpack.c.l.b16 %v201
    %v907 = vunpack.c.h.b16 %v201
    %v908 = vunpack.c.l.b16 %v202
    %v909 = vunpack.c.h.b16 %v202
    %v910 = vunpack.c.l.b16 %v203
    %v911 = vunpack.c.h.b16 %v203
    %v912 = vunpack.c.l.b16 %v204
    %v913 = vunpack.c.h.b16 %v204
    %v914 = vunpack.c.l.b16 %v205
    %v915 = vunpack.c.l.b16 %v206
    %v916 = vunpack.c.h.b16 %v206
    %v917 = vunpack.c.l.b16 %v207
    %v918 = vunpack.c.h.b16 %v207
    %v919 = vunpack.c.l.b16 %v208
    %v920 = vunpack.c.h.b16 %v208
    %v921 = vunpack.c.l.b16 %v209
    %v922 = vunpack.c.h.b16 %v209
    %v923 = vunpack.c.l.b16 %v210
    %v924 = vunpack.c.l.b16 %v211
    %v925 = vunpack.c.h.b16 %v211
    %v926 = vunpack.c.l.b16 %v212
    %v927 = vunpack.c.h.b16 %v212
    %v928 = vunpack.c.l.b16 %v213
    %v929 = vunpack.c.h.b16 %v213
    %v930 = vunpack.c.l.b16 %v214
    %v931 = vunpack.c.h.b16 %v214
    %v932 = vunpack.c.l.b16 %v215
    %v933 = vunpack.c.l.b16 %v216
    %v934 = vunpack.c.h.b16 %v216
    %v935 = vunpack.c.l.b16 %v217
    %v936 = vunpack.c.h.b16 %v217
    %v937 = vunpack.c.l.b16 %v218
    %v938 = vunpack.c.h.b16 %v218
    %v939 = vunpack.c.l.b16 %v219
    %v940 = vunpack.c.h.b16 %v219
    %v941 = vunpack.c.l.b16 %v220
    %v942 = vunpack.c.l.b16 %v221
    %v943 = vunpack.c.h.b16 %v221
    %v944 = vunpack.c.l.b16 %v222
    %v945 = vunpack.c.h.b16 %v222
    %v946 = vunpack.c.l.b16 %v223
    %v947 = vunpack.c.h.b16 %v223
    %v948 = vunpack.c.l.b16 %v224
    %v949 = vunpack.c.h.b16 %v224
    %v950 = vunpack.c.l.b16 %v225
    %v951 = vunpack.c.l.b16 %v226
    %v952 = vunpack.c.h.b16 %v226
    %v953 = vunpack.c.l.b16 %v227
    %v954 = vunpack.c.h.b16 %v227
    %v955 = vunpack.c.l.b16 %v228
    %v956 = vunpack.c.h.b16 %v228
    %v957 = vunpack.c.l.b16 %v229
    %v958 = vunpack.c.h.b16 %v229
    %v959 = vunpack.c.l.b16 %v230
    %v960 = vunpack.c.l.b16 %v231
    %v961 = vunpack.c.h.b16 %v231
    %v962 = vunpack.c.l.b16 %v232
    %v963 = vunpack.c.h.b16 %v232
    %v964 = vunpack.c.l.b16 %v233
    %v965 = vunpack.c.h.b16 %v233
    %v966 = vunpack.c.l.b16 %v234
    %v967 = vunpack.c.h.b16 %v234
    %v968 = vunpack.c.l.b16 %v235
    %v969 = vunpack.c.l.b16 %v236
    %v970 = vunpack.c.h.b16 %v236
    %v971 = vunpack.c.l.b16 %v237
    %v972 = vunpack.c.h.b16 %v237
    %v973 = vunpack.c.l.b16 %v238
    %v974 = vunpack.c.h.b16 %v238
    %v975 = vunpack.c.l.b16 %v239
    %v976 = vunpack.c.h.b16 %v239
    %v977 = vunpack.c.l.b16 %v240
    %v978 = vunpack.c.l.b16 %v241
    %v979 = vunpack.c.h.b16 %v241
    %v980 = vunpack.c.l.b16 %v242
    %v981 = vunpack.c.h.b16 %v242
    %v982 = vunpack.c.l.b16 %v243
    %v983 = vunpack.c.h.b16 %v243
    %v984 = vunpack.c.l.b16 %v244
    %v985 = vunpack.c.h.b16 %v244
    %v986 = vunpack.c.l.b16 %v245
    %v987 = vunpack.c.l.b16 %v246
    %v988 = vunpack.c.h.b16 %v246
    %v989 = vunpack.c.l.b16 %v247
    %v990 = vunpack.c.h.b16 %v247
    %v991 = vunpack.c.l.b16 %v248
    %v992 = vunpack.c.h.b16 %v248
    %v993 = vunpack.c.l.b16 %v249
    %v994 = vunpack.c.h.b16 %v249
    %v995 = vunpack.c.l.b16 %v250
    %v996 = vunpack.c.l.b16 %v251
    %v997 = vunpack.c.h.b16 %v251
    %v998 = vunpack.c.l.b16 %v252
    %v999 = vunpack.c.h.b16 %v252
    %v1000 = vunpack.c.l.b16 %v253
    %v1001 = vunpack.c.h.b16 %v253
    %v1002 = vunpack.c.l.b16 %v254
    %v1003 = vunpack.c.h.b16 %v254
    %v1004 = vunpack.c.l.b16 %v255
    %v1005 = vunpack.c.l.b16 %v256
    %v1006 = vunpack.c.h.b16 %v256
    %v1007 = vunpack.c.l.b16 %v257
    %v1008 = vunpack.c.h.b16 %v257
    %v1009 = vunpack.c.l.b16 %v258
    %v1010 = vunpack.c.h.b16 %v258
    %v1011 = vunpack.c.l.b16 %v259
    %v1012 = vunpack.c.h.b16 %v259
    %v1013 = vunpack.c.l.b16 %v260
    %v1014 = vunpack.c.l.b16 %v261
    %v1015 = vunpack.c.h.b16 %v261
    %v1016 = vunpack.c.l.b16 %v262
    %v1017 = vunpack.c.h.b16 %v262
    %v1018 = vunpack.c.l.b16 %v263
    %v1019 = vunpack.c.h.b16 %v263
    %v1020 = vunpack.c.l.b16 %v264
    %v1021 = vunpack.c.h.b16 %v264
    %v1022 = vunpack.c.l.b16 %v265
    %v1023 = vunpack.c.l.b16 %v266
    %v1024 = vunpack.c.h.b16 %v266
    %v1025 = vunpack.c.l.b16 %v267
    %v1026 = vunpack.c.h.b16 %v267
    %v1027 = vunpack.c.l.b16 %v268
    %v1028 = vunpack.c.h.b16 %v268
    %v1029 = vunpack.c.l.b16 %v269
    %v1030 = vunpack.c.h.b16 %v269
    %v1031 = vunpack.c.l.b16 %v270
    %v1032 = vunpack.c.l.b16 %v271
    %v1033 = vunpack.c.h.b16 %v271
    %v1034 = vunpack.c.l.b16 %v272
    %v1035 = vunpack.c.h.b16 %v272
    %v1036 = vunpack.c.l.b16 %v273
    %v1037 = vunpack.c.h.b16 %v273
    %v1038 = vunpack.c.l.b16 %v274
    %v1039 = vunpack.c.h.b16 %v274
    %v1040 = vunpack.c.l.b16 %v275
    %v1041 = vunpack.c.l.b16 %v276
    %v1042 = vunpack.c.h.b16 %v276
    %v1043 = vunpack.c.l.b16 %v277
    %v1044 = vunpack.c.h.b16 %v277
    %v1045 = vunpack.c.l.b16 %v278
    %v1046 = vunpack.c.h.b16 %v278
    %v1047 = vunpack.c.l.b16 %v279
    %v1048 = vunpack.c.h.b16 %v279
    %v1049 = vunpack.c.l.b16 %v280
    %v1050 = vunpack.c.l.b16 %v281
    %v1051 = vunpack.c.h.b16 %v281
    %v1052 = vunpack.c.l.b16 %v282
    %v1053 = vunpack.c.h.b16 %v282
    %v1054 = vunpack.c.l.b16 %v283
    %v1055 = vunpack.c.h.b16 %v283
    %v1056 = vunpack.c.l.b16 %v284
    %v1057 = vunpack.c.h.b16 %v284
    %v1058 = vunpack.c.l.b16 %v285
    %v1059 = vunpack.c.l.b16 %v286
    %v1060 = vunpack.c.h.b16 %v286
    %v1061 = vunpack.c.l.b16 %v287
    %v1062 = vunpack.c.h.b16 %v287
    %v1063 = vunpack.c.l.b16 %v288
    %v1064 = vunpack.c.h.b16 %v288
    %v1065 = vunpack.c.l.b16 %v289
    %v1066 = vunpack.c.h.b16 %v289
    %v1067 = vunpack.c.l.b16 %v290
    %v1068 = vunpack.c.l.b16 %v291
    %v1069 = vunpack.c.h.b16 %v291
    %v1070 = vunpack.c.l.b16 %v292
    %v1071 = vunpack.c.h.b16 %v292
    %v1072 = vunpack.c.l.b16 %v293
    %v1073 = vunpack.c.h.b16 %v293
    %v1074 = vunpack.c.l.b16 %v294
    %v1075 = vunpack.c.h.b16 %v294
    %v1076 = vunpack.c.l.b16 %v295
    %v1077 = vunpack.c.l.b16 %v296
    %v1078 = vunpack.c.h.b16 %v296
    %v1079 = vunpack.c.l.b16 %v297
    %v1080 = vunpack.c.h.b16 %v297
    %v1081 = vunpack.c.l.b16 %v298
    %v1082 = vunpack.c.h.b16 %v298
    %v1083 = vunpack.c.l.b16 %v299
    %v1084 = vunpack.c.h.b16 %v299
    %v1085 = vunpack.c.l.b16 %v300
    %v1086 = vunpack.c.l.b16 %v301
    %v1087 = vunpack.c.h.b16 %v301
    %v1088 = vunpack.c.l.b16 %v302
    %v1089 = vunpack.c.h.b16 %v302
    %v1090 = vunpack.c.l.b16 %v303
    %v1091 = vunpack.c.h.b16 %v303
    %v1092 = vunpack.c.l.b16 %v304
    %v1093 = vunpack.c.h.b16 %v304
    %v1094 = vunpack.c.l.b16 %v305
    %v1095 = vunpack.c.l.b16 %v306
    %v1096 = vunpack.c.h.b16 %v306
    %v1097 = vunpack.c.l.b16 %v307
    %v1098 = vunpack.c.h.b16 %v307
    %v1099 = vunpack.c.l.b16 %v308
    %v1100 = vunpack.c.h.b16 %v308
    %v1101 = vunpack.c.l.b16 %v309
    %v1102 = vunpack.c.h.b16 %v309
    %v1103 = vunpack.c.l.b16 %v310
    %v1104 = vunpack.c.l.b16 %v311
    %v1105 = vunpack.c.h.b16 %v311
    %v1106 = vunpack.c.l.b16 %v312
    %v1107 = vunpack.c.h.b16 %v312
    %v1108 = vunpack.c.l.b16 %v313
    %v1109 = vunpack.c.h.b16 %v313
    %v1110 = vunpack.c.l.b16 %v314
    %v1111 = vunpack.c.h.b16 %v314
    %v1112 = vunpack.c.l.b16 %v315
    %v1113 = vunpack.c.l.b16 %v316
    %v1114 = vunpack.c.h.b16 %v316
    %v1115 = vunpack.c.l.b16 %v317
    %v1116 = vunpack.c.h.b16 %v317
    %v1117 = vunpack.c.l.b16 %v318
    %v1118 = vunpack.c.h.b16 %v318
    %v1119 = vunpack.c.l.b16 %v319
    %v1120 = vunpack.c.h.b16 %v319
    %v1121 = vunpack.c.l.b16 %v320
    %v1122 = vunpack.c.l.b16 %v321
    %v1123 = vunpack.c.h.b16 %v321
    %v1124 = vunpack.c.l.b16 %v322
    %v1125 = vunpack.c.h.b16 %v322
    %v1126 = vunpack.c.l.b16 %v323
    %v1127 = vunpack.c.h.b16 %v323
    %v1128 = vunpack.c.l.b16 %v324
    %v1129 = vunpack.c.h.b16 %v324
    %v1130 = vunpack.c.l.b16 %v325
    %v1131 = vpack.c.b16 %v654, %v645
    %v1132 = vpack.c.b16 %v655, %v646
    %v1133 = vpack.c.b16 %v656, %v647
    %v1134 = vpack.c.b16 %v657, %v648
    %v1135 = vpack.c.b16 %v658, %v649
    %v1136 = vpack.c.b16 %v659, %v650
    %v1137 = vpack.c.b16 %v660, %v651
    %v1138 = vpack.c.b16 %v661, %v652
    %v1139 = vpack.c.b16 %v662, %v653
    %v1140 = vpack.c.b16 %v672, %v663
    %v1141 = vpack.c.b16 %v673, %v664
    %v1142 = vpack.c.b16 %v674, %v665
    %v1143 = vpack.c.b16 %v675, %v666
    %v1144 = vpack.c.b16 %v676, %v667
    %v1145 = vpack.c.b16 %v677, %v668
    %v1146 = vpack.c.b16 %v678, %v669
    %v1147 = vpack.c.b16 %v679, %v670
    %v1148 = vpack.c.b16 %v680, %v671
    %v1149 = vpack.c.b16 %v690, %v681
    %v1150 = vpack.c.b16 %v691, %v682
    %v1151 = vpack.c.b16 %v692, %v683
    %v1152 = vpack.c.b16 %v693, %v684
    %v1153 = vpack.c.b16 %v694, %v685
    %v1154 = vpack.c.b16 %v695, %v686
    %v1155 = vpack.c.b16 %v696, %v687
    %v1156 = vpack.c.b16 %v697, %v688
    %v1157 = vpack.c.b16 %v698, %v689
    %v1158 = vpack.c.b16 %v708, %v699
    %v1159 = vpack.c.b16 %v709, %v700
    %v1160 = vpack.c.b16 %v710, %v701
    %v1161 = vpack.c.b16 %v711, %v702
    %v1162 = vpack.c.b16 %v712, %v703
    %v1163 = vpack.c.b16 %v713, %v704
    %v1164 = vpack.c.b16 %v714, %v705
    %v1165 = vpack.c.b16 %v715, %v706
    %v1166 = vpack.c.b16 %v716, %v707
    %v1167 = vpack.c.b16 %v726, %v717
    %v1168 = vpack.c.b16 %v727, %v718
    %v1169 = vpack.c.b16 %v728, %v719
    %v1170 = vpack.c.b16 %v729, %v720
    %v1171 = vpack.c.b16 %v730, %v721
    %v1172 = vpack.c.b16 %v731, %v722
    %v1173 = vpack.c.b16 %v732, %v723
    %v1174 = vpack.c.b16 %v733, %v724
    %v1175 = vpack.c.b16 %v734, %v725
    %v1176 = vpack.c.b16 %v744, %v735
    %v1177 = vpack.c.b16 %v745, %v736
    %v1178 = vpack.c.b16 %v746, %v737
    %v1179 = vpack.c.b16 %v747, %v738
    %v1180 = vpack.c.b16 %v748, %v739
    %v1181 = vpack.c.b16 %v749, %v740
    %v1182 = vpack.c.b16 %v750, %v741
    %v1183 = vpack.c.b16 %v751, %v742
    %v1184 = vpack.c.b16 %v752, %v743
    %v1185 = vpack.c.b16 %v762, %v753
    %v1186 = vpack.c.b16 %v763, %v754
    %v1187 = vpack.c.b16 %v764, %v755
    %v1188 = vpack.c.b16 %v765, %v756
    %v1189 = vpack.c.b16 %v766, %v757
    %v1190 = vpack.c.b16 %v767, %v758
    %v1191 = vpack.c.b16 %v768, %v759
    %v1192 = vpack.c.b16 %v769, %v760
    %v1193 = vpack.c.b16 %v770, %v761
    %v1194 = vpack.c.b16 %v780, %v771
    %v1195 = vpack.c.b16 %v781, %v772
    %v1196 = vpack.c.b16 %v782, %v773
    %v1197 = vpack.c.b16 %v783, %v774
    %v1198 = vpack.c.b16 %v784, %v775
    %v1199 = vpack.c.b16 %v785, %v776
    %v1200 = vpack.c.b16 %v786, %v777
    %v1201 = vpack.c.b16 %v787, %v778
    %v1202 = vpack.c.b16 %v788, %v779
    %v1203 = vpack.c.b16 %v798, %v789
    %v1204 = vpack.c.b16 %v799, %v790
    %v1205 = vpack.c.b16 %v800, %v791
    %v1206 = vpack.c.b16 %v801, %v792
    %v1207 = vpack.c.b16 %v802, %v793
    %v1208 = vpack.c.b16 %v803, %v794
    %v1209 = vpack.c.b16 %v804, %v795
    %v1210 = vpack.c.b16 %v805, %v796
    %v1211 = vpack.c.b16 %v806, %v797
    %v1212 = vpack.c.b16 %v816, %v807
    %v1213 = vpack.c.b16 %v817, %v808
    %v1214 = vpack.c.b16 %v818, %v809
    %v1215 = vpack.c.b16 %v819, %v810
    %v1216 = vpack.c.b16 %v820, %v811
    %v1217 = vpack.c.b16 %v821, %v812
    %v1218 = vpack.c.b16 %v822, %v813
    %v1219 = vpack.c.b16 %v823, %v814
    %v1220 = vpack.c.b16 %v824, %v815
    %v1221 = vpack.c.b16 %v834, %v825
    %v1222 = vpack.c.b16 %v835, %v826
    %v1223 = vpack.c.b16 %v836, %v827
    %v1224 = vpack.c.b16 %v837, %v828
    %v1225 = vpack.c.b16 %v838, %v829
    %v1226 = vpack.c.b16 %v839, %v830
    %v1227 = vpack.c.b16 %v840, %v831
    %v1228 = vpack.c.b16 %v841, %v832
    %v1229 = vpack.c.b16 %v842, %v833
    %v1230 = vpack.c.b16 %v852, %v843
    %v1231 = vpack.c.b16 %v853, %v844
    %v1232 = vpack.c.b16 %v854, %v845
    %v1233 = vpack.c.b16 %v855, %v846
    %v1234 = vpack.c.b16 %v856, %v847
    %v1235 = vpack.c.b16 %v857, %v848
    %v1236 = vpack.c.b16 %v858, %v849
    %v1237 = vpack.c.b16 %v859, %v850
    %v1238 = vpack.c.b16 %v860, %v851
    %v1239 = vpack.c.b16 %v870, %v861
    %v1240 = vpack.c.b16 %v871, %v862
    %v1241 = vpack.c.b16 %v872, %v863
    %v1242 = vpack.c.b16 %v873, %v864
    %v1243 = vpack.c.b16 %v874, %v865
    %v1244 = vpack.c.b16 %v875, %v866
    %v1245 = vpack.c.b16 %v876, %v867
    %v1246 = vpack.c.b16 %v877, %v868
    %v1247 = vpack.c.b16 %v878, %v869
    %v1248 = vpack.c.b16 %v888, %v879
    %v1249 = vpack.c.b16 %v889, %v880
    %v1250 = vpack.c.b16 %v890, %v881
    %v1251 = vpack.c.b16 %v891, %v882
    %v1252 = vpack.c.b16 %v892, %v883
    %v1253 = vpack.c.b16 %v893, %v884
    %v1254 = vpack.c.b16 %v894, %v885
    %v1255 = vpack.c.b16 %v895, %v886
    %v1256 = vpack.c.b16 %v896, %v887
    %v1257 = vpack.c.b16 %v906, %v897
    %v1258 = vpack.c.b16 %v907, %v898
    %v1259 = vpack.c.b16 %v908, %v899
    %v1260 = vpack.c.b16 %v909, %v900
    %v1261 = vpack.c.b16 %v910, %v901
    %v1262 = vpack.c.b16 %v911, %v902
    %v1263 = vpack.c.b16 %v912, %v903
    %v1264 = vpack.c.b16 %v913, %v904
    %v1265 = vpack.c.b16 %v914, %v905
    %v1266 = vpack.c.b16 %v924, %v915
    %v1267 = vpack.c.b16 %v925, %v916
    %v1268 = vpack.c.b16 %v926, %v917
    %v1269 = vpack.c.b16 %v927, %v918
    %v1270 = vpack.c.b16 %v928, %v919
    %v1271 = vpack.c.b16 %v929, %v920
    %v1272 = vpack.c.b16 %v930, %v921
    %v1273 = vpack.c.b16 %v931, %v922
    %v1274 = vpack.c.b16 %v932, %v923
    %v1275 = vpack.c.b16 %v942, %v933
    %v1276 = vpack.c.b16 %v943, %v934
    %v1277 = vpack.c.b16 %v944, %v935
    %v1278 = vpack.c.b16 %v945, %v936
    %v1279 = vpack.c.b16 %v946, %v937
    %v1280 = vpack.c.b16 %v947, %v938
    %v1281 = vpack.c.b16 %v948, %v939
    %v1282 = vpack.c.b16 %v949, %v940
    %v1283 = vpack.c.b16 %v950, %v941
    %v1284 = vpack.c.b16 %v960, %v951
    %v1285 = vpack.c.b16 %v961, %v952
    %v1286 = vpack.c.b16 %v962, %v953
    %v1287 = vpack.c.b16 %v963, %v954
    %v1288 = vpack.c.b16 %v964, %v955
    %v1289 = vpack.c.b16 %v965, %v956
    %v1290 = vpack.c.b16 %v966, %v957
    %v1291 = vpack.c.b16 %v967, %v958
    %v1292 = vpack.c.b16 %v968, %v959
    %v1293 = vpack.c.b16 %v978, %v969
    %v1294 = vpack.c.b16 %v979, %v970
    %v1295 = vpack.c.b16 %v980, %v971
    %v1296 = vpack.c.b16 %v981, %v972
    %v1297 = vpack.c.b16 %v982, %v973
    %v1298 = vpack.c.b16 %v983, %v974
    %v1299 = vpack.c.b16 %v984, %v975
    %v1300 = vpack.c.b16 %v985, %v976
    %v1301 = vpack.c.b16 %v986, %v977
    %v1302 = vpack.c.b16 %v996, %v987
    %v1303 = vpack.c.b16 %v997, %v988
    %v1304 = vpack.c.b16 %v998, %v989
    %v1305 = vpack.c.b16 %v999, %v990
    %v1306 = vpack.c.b16 %v1000, %v991
    %v1307 = vpack.c.b16 %v1001, %v992
    %v1308 = vpack.c.b16 %v1002, %v993
    %v1309 = vpack.c.b16 %v1003, %v994
    %v1310 = vpack.c.b16 %v1004, %v995
    %v1311 = vpack.c.b16 %v1014, %v1005
    %v1312 = vpack.c.b16 %v1015, %v1006
    %v1313 = vpack.c.b16 %v1016, %v1007
    %v1314 = vpack.c.b16 %v1017, %v1008
    %v1315 = vpack.c.b16 %v1018, %v1009
    %v1316 = vpack.c.b16 %v1019, %v1010
    %v1317 = vpack.c.b16 %v1020, %v1011
    %v1318 = vpack.c.b16 %v1021, %v1012
    %v1319 = vpack.c.b16 %v1022, %v1013
    %v1320 = vpack.c.b16 %v1032, %v1023
    %v1321 = vpack.c.b16 %v1033, %v1024
    %v1322 = vpack.c.b16 %v1034, %v1025
    %v1323 = vpack.c.b16 %v1035, %v1026
    %v1324 = vpack.c.b16 %v1036, %v1027
    %v1325 = vpack.c.b16 %v1037, %v1028
    %v1326 = vpack.c.b16 %v1038, %v1029
    %v1327 = vpack.c.b16 %v1039, %v1030
    %v1328 = vpack.c.b16 %v1040, %v1031
    %v1329 = vpack.c.b16 %v1050, %v1041
    %v1330 = vpack.c.b16 %v1051, %v1042
    %v1331 = vpack.c.b16 %v1052, %v1043
    %v1332 = vpack.c.b16 %v1053, %v1044
    %v1333 = vpack.c.b16 %v1054, %v1045
    %v1334 = vpack.c.b16 %v1055, %v1046
    %v1335 = vpack.c.b16 %v1056, %v1047
    %v1336 = vpack.c.b16 %v1057, %v1048
    %v1337 = vpack.c.b16 %v1058, %v1049
    %v1338 = vpack.c.b16 %v1068, %v1059
    %v1339 = vpack.c.b16 %v1069, %v1060
    %v1340 = vpack.c.b16 %v1070, %v1061
    %v1341 = vpack.c.b16 %v1071, %v1062
    %v1342 = vpack.c.b16 %v1072, %v1063
    %v1343 = vpack.c.b16 %v1073, %v1064
    %v1344 = vpack.c.b16 %v1074, %v1065
    %v1345 = vpack.c.b16 %v1075, %v1066
    %v1346 = vpack.c.b16 %v1076, %v1067
    %v1347 = vpack.c.b16 %v1086, %v1077
    %v1348 = vpack.c.b16 %v1087, %v1078
    %v1349 = vpack.c.b16 %v1088, %v1079
    %v1350 = vpack.c.b16 %v1089, %v1080
    %v1351 = vpack.c.b16 %v1090, %v1081
    %v1352 = vpack.c.b16 %v1091, %v1082
    %v1353 = vpack.c.b16 %v1092, %v1083
    %v1354 = vpack.c.b16 %v1093, %v1084
    %v1355 = vpack.c.b16 %v1094, %v1085
    %v1356 = vpack.c.b16 %v1104, %v1095
    %v1357 = vpack.c.b16 %v1105, %v1096
    %v1358 = vpack.c.b16 %v1106, %v1097
    %v1359 = vpack.c.b16 %v1107, %v1098
    %v1360 = vpack.c.b16 %v1108, %v1099
    %v1361 = vpack.c.b16 %v1109, %v1100
    %v1362 = vpack.c.b16 %v1110, %v1101
    %v1363 = vpack.c.b16 %v1111, %v1102
    %v1364 = vpack.c.b16 %v1112, %v1103
    %v1365 = vpack.c.b16 %v1122, %v1113
    %v1366 = vpack.c.b16 %v1123, %v1114
    %v1367 = vpack.c.b16 %v1124, %v1115
    %v1368 = vpack.c.b16 %v1125, %v1116
    %v1369 = vpack.c.b16 %v1126, %v1117
    %v1370 = vpack.c.b16 %v1127, %v1118
    %v1371 = vpack.c.b16 %v1128, %v1119
    %v1372 = vpack.c.b16 %v1129, %v1120
    %v1373 = vpack.c.b16 %v1130, %v1121
    %vm1617 = vcmask 392192
    %v1619 = vsel %vm1617, %v55, 0
    %1621 = vmatprep.subr.bf16.mxu0 %v1132
    %1622 = vmatpush1.bf16.msra.mxu0 %v1131
    %1623 = vmatprep.subr.bf16.mxu0 %v1141
    %1624 = vmatpush1.bf16.msra.mxu0 %v1140
    %1625 = vmatprep.subr.bf16.mxu0 %v1150
    %1626 = vmatpush1.bf16.msra.mxu0 %v1149
    %1627 = vmatprep.subr.bf16.mxu0 %v1159
    %1628 = vmatpush1.bf16.msra.mxu0 %v1158
    %1629 = vmatprep.subr.bf16.mxu0 %v1168
    %1630 = vmatpush1.bf16.msra.mxu0 %v1167
    %1631 = vmatprep.subr.bf16.mxu0 %v1177
    %1632 = vmatpush1.bf16.msra.mxu0 %v1176
    %1633 = vmatprep.subr.bf16.mxu0 %v1186
    %1634 = vmatpush1.bf16.msra.mxu0 %v1185
    %1635 = vmatprep.subr.bf16.mxu0 %v1195
    %1636 = vmatpush1.bf16.msra.mxu0 %v1194
    %1637 = vmatprep.subr.bf16.mxu0 %v1204
    %1638 = vmatpush1.bf16.msra.mxu0 %v1203
    %1639 = vmatprep.subr.bf16.mxu0 %v1213
    %1640 = vmatpush1.bf16.msra.mxu0 %v1212
    %1641 = vmatprep.subr.bf16.mxu0 %v1222
    %1642 = vmatpush1.bf16.msra.mxu0 %v1221
    %1643 = vmatprep.subr.bf16.mxu0 %v1231
    %1644 = vmatpush1.bf16.msra.mxu0 %v1230
    %1645 = vmatprep.subr.bf16.mxu0 %v1240
    %1646 = vmatpush1.bf16.msra.mxu0 %v1239
    %1647 = vmatprep.subr.bf16.mxu0 %v1249
    %1648 = vmatpush1.bf16.msra.mxu0 %v1248
    %1649 = vmatprep.subr.bf16.mxu0 %v1258
    %1650 = vmatpush1.bf16.msra.mxu0 %v1257
    %1651 = vmatprep.subr.bf16.mxu0 %v1267
    %1652 = vmatpush1.bf16.msra.mxu0 %v1266
    %1653 = vmatprep.mubr.bf16.mxu0 %v53
    %1654 = vmatmul.mubr.bf16.gmra.mrb[0].mxu0 %v52
    %v1655 = vpop.f32.mrb[0].mxu0
    %v1656 = vadd.f32 %v333, %v1655
    %v1657 = vpop.f32.mrb[0].mxu0
    %v1658 = vadd.f32 %v337, %v1657
    %v1659 = vpop.f32.mrb[0].mxu0
    %v1660 = vpop.f32.mrb[0].mxu0
    %1661 = vdwg.mxu0
    %1662 = vmatprep.subr.bf16.mxu0 %v1276
    %1663 = vmatpush1.bf16.msra.mxu0 %v1275
    %1664 = vmatprep.subr.bf16.mxu0 %v1285
    %1665 = vmatpush1.bf16.msra.mxu0 %v1284
    %1666 = vmatprep.subr.bf16.mxu0 %v1294
    %1667 = vmatpush1.bf16.msra.mxu0 %v1293
    %1668 = vmatprep.subr.bf16.mxu0 %v1303
    %1669 = vmatpush1.bf16.msra.mxu0 %v1302
    %1670 = vmatprep.subr.bf16.mxu0 %v1312
    %1671 = vmatpush1.bf16.msra.mxu0 %v1311
    %1672 = vmatprep.subr.bf16.mxu0 %v1321
    %1673 = vmatpush1.bf16.msra.mxu0 %v1320
    %1674 = vmatprep.subr.bf16.mxu0 %v1330
    %1675 = vmatpush1.bf16.msra.mxu0 %v1329
    %1676 = vmatprep.subr.bf16.mxu0 %v1339
    %1677 = vmatpush1.bf16.msra.mxu0 %v1338
    %1678 = vmatprep.subr.bf16.mxu0 %v1348
    %1679 = vmatpush1.bf16.msra.mxu0 %v1347
    %1680 = vmatprep.subr.bf16.mxu0 %v1357
    %1681 = vmatpush1.bf16.msra.mxu0 %v1356
    %1682 = vmatprep.subr.bf16.mxu0 %v1366
    %1683 = vmatpush1.bf16.msra.mxu0 %v1365
    %1684 = vmatprep.subr.bf16.mxu0 0
    %1685 = vmatpush1.bf16.msra.mxu0 0
    %1686 = vmatprep.subr.bf16.mxu0 0
    %1687 = vmatpush1.bf16.msra.mxu0 0
    %1688 = vmatprep.subr.bf16.mxu0 0
    %1689 = vmatpush1.bf16.msra.mxu0 0
    %1690 = vmatprep.subr.bf16.mxu0 0
    %1691 = vmatpush1.bf16.msra.mxu0 0
    %1692 = vmatprep.subr.bf16.mxu0 0
    %1693 = vmatpush1.bf16.msra.mxu0 0
    %1694 = vmatprep.mubr.bf16.mxu0 %v1619
    %1695 = vmatmul.mubr.bf16.gmra.mrb[0].mxu0 %v54
    %v1696 = vpop.f32.mrb[0].mxu0
    %v1697 = vadd.f32 %v1656, %v1696
    %v1698 = vpop.f32.mrb[0].mxu0
    %v1699 = vadd.f32 %v1658, %v1698
    %v1700 = vpop.f32.mrb[0].mxu0
    %v1701 = vpop.f32.mrb[0].mxu0
    %1702 = vdwg.mxu0
    %1703 = vmatprep.subr.bf16.mxu0 %v1134
    %1704 = vmatpush1.bf16.msra.mxu0 %v1133
    %1705 = vmatprep.subr.bf16.mxu0 %v1143
    %1706 = vmatpush1.bf16.msra.mxu0 %v1142
    %1707 = vmatprep.subr.bf16.mxu0 %v1152
    %1708 = vmatpush1.bf16.msra.mxu0 %v1151
    %1709 = vmatprep.subr.bf16.mxu0 %v1161
    %1710 = vmatpush1.bf16.msra.mxu0 %v1160
    %1711 = vmatprep.subr.bf16.mxu0 %v1170
    %1712 = vmatpush1.bf16.msra.mxu0 %v1169
    %1713 = vmatprep.subr.bf16.mxu0 %v1179
    %1714 = vmatpush1.bf16.msra.mxu0 %v1178
    %1715 = vmatprep.subr.bf16.mxu0 %v1188
    %1716 = vmatpush1.bf16.msra.mxu0 %v1187
    %1717 = vmatprep.subr.bf16.mxu0 %v1197
    %1718 = vmatpush1.bf16.msra.mxu0 %v1196
    %1719 = vmatprep.subr.bf16.mxu0 %v1206
    %1720 = vmatpush1.bf16.msra.mxu0 %v1205
    %1721 = vmatprep.subr.bf16.mxu0 %v1215
    %1722 = vmatpush1.bf16.msra.mxu0 %v1214
    %1723 = vmatprep.subr.bf16.mxu0 %v1224
    %1724 = vmatpush1.bf16.msra.mxu0 %v1223
    %1725 = vmatprep.subr.bf16.mxu0 %v1233
    %1726 = vmatpush1.bf16.msra.mxu0 %v1232
    %1727 = vmatprep.subr.bf16.mxu0 %v1242
    %1728 = vmatpush1.bf16.msra.mxu0 %v1241
    %1729 = vmatprep.subr.bf16.mxu0 %v1251
    %1730 = vmatpush1.bf16.msra.mxu0 %v1250
    %1731 = vmatprep.subr.bf16.mxu0 %v1260
    %1732 = vmatpush1.bf16.msra.mxu0 %v1259
    %1733 = vmatprep.subr.bf16.mxu0 %v1269
    %1734 = vmatpush1.bf16.msra.mxu0 %v1268
    %1735 = vmatprep.mubr.bf16.mxu0 %v53
    %1736 = vmatmul.mubr.bf16.gmra.mrb[0].mxu0 %v52
    %v1737 = vpop.f32.mrb[0].mxu0
    %v1738 = vadd.f32 %v341, %v1737
    %v1739 = vpop.f32.mrb[0].mxu0
    %v1740 = vadd.f32 %v345, %v1739
    %v1741 = vpop.f32.mrb[0].mxu0
    %v1742 = vpop.f32.mrb[0].mxu0
    %1743 = vdwg.mxu0
    %1744 = vmatprep.subr.bf16.mxu0 %v1278
    %1745 = vmatpush1.bf16.msra.mxu0 %v1277
    %1746 = vmatprep.subr.bf16.mxu0 %v1287
    %1747 = vmatpush1.bf16.msra.mxu0 %v1286
    %1748 = vmatprep.subr.bf16.mxu0 %v1296
    %1749 = vmatpush1.bf16.msra.mxu0 %v1295
    %1750 = vmatprep.subr.bf16.mxu0 %v1305
    %1751 = vmatpush1.bf16.msra.mxu0 %v1304
    %1752 = vmatprep.subr.bf16.mxu0 %v1314
    %1753 = vmatpush1.bf16.msra.mxu0 %v1313
    %1754 = vmatprep.subr.bf16.mxu0 %v1323
    %1755 = vmatpush1.bf16.msra.mxu0 %v1322
    %1756 = vmatprep.subr.bf16.mxu0 %v1332
    %1757 = vmatpush1.bf16.msra.mxu0 %v1331
    %1758 = vmatprep.subr.bf16.mxu0 %v1341
    %1759 = vmatpush1.bf16.msra.mxu0 %v1340
    %1760 = vmatprep.subr.bf16.mxu0 %v1350
    %1761 = vmatpush1.bf16.msra.mxu0 %v1349
    %1762 = vmatprep.subr.bf16.mxu0 %v1359
    %1763 = vmatpush1.bf16.msra.mxu0 %v1358
    %1764 = vmatprep.subr.bf16.mxu0 %v1368
    %1765 = vmatpush1.bf16.msra.mxu0 %v1367
    %1766 = vmatprep.subr.bf16.mxu0 0
    %1767 = vmatpush1.bf16.msra.mxu0 0
    %1768 = vmatprep.subr.bf16.mxu0 0
    %1769 = vmatpush1.bf16.msra.mxu0 0
    %1770 = vmatprep.subr.bf16.mxu0 0
    %1771 = vmatpush1.bf16.msra.mxu0 0
    %1772 = vmatprep.subr.bf16.mxu0 0
    %1773 = vmatpush1.bf16.msra.mxu0 0
    %1774 = vmatprep.subr.bf16.mxu0 0
    %1775 = vmatpush1.bf16.msra.mxu0 0
    %1776 = vmatprep.mubr.bf16.mxu0 %v1619
    %1777 = vmatmul.mubr.bf16.gmra.mrb[0].mxu0 %v54
    %v1778 = vpop.f32.mrb[0].mxu0
    %v1779 = vadd.f32 %v1738, %v1778
    %v1780 = vpop.f32.mrb[0].mxu0
    %v1781 = vadd.f32 %v1740, %v1780
    %v1782 = vpop.f32.mrb[0].mxu0
    %v1783 = vpop.f32.mrb[0].mxu0
    %1784 = vdwg.mxu0
    %1785 = vmatprep.subr.bf16.mxu0 %v1136
    %1786 = vmatpush1.bf16.msra.mxu0 %v1135
    %1787 = vmatprep.subr.bf16.mxu0 %v1145
    %1788 = vmatpush1.bf16.msra.mxu0 %v1144
    %1789 = vmatprep.subr.bf16.mxu0 %v1154
    %1790 = vmatpush1.bf16.msra.mxu0 %v1153
    %1791 = vmatprep.subr.bf16.mxu0 %v1163
    %1792 = vmatpush1.bf16.msra.mxu0 %v1162
    %1793 = vmatprep.subr.bf16.mxu0 %v1172
    %1794 = vmatpush1.bf16.msra.mxu0 %v1171
    %1795 = vmatprep.subr.bf16.mxu0 %v1181
    %1796 = vmatpush1.bf16.msra.mxu0 %v1180
    %1797 = vmatprep.subr.bf16.mxu0 %v1190
    %1798 = vmatpush1.bf16.msra.mxu0 %v1189
    %1799 = vmatprep.subr.bf16.mxu0 %v1199
    %1800 = vmatpush1.bf16.msra.mxu0 %v1198
    %1801 = vmatprep.subr.bf16.mxu0 %v1208
    %1802 = vmatpush1.bf16.msra.mxu0 %v1207
    %1803 = vmatprep.subr.bf16.mxu0 %v1217
    %1804 = vmatpush1.bf16.msra.mxu0 %v1216
    %1805 = vmatprep.subr.bf16.mxu0 %v1226
    %1806 = vmatpush1.bf16.msra.mxu0 %v1225
    %1807 = vmatprep.subr.bf16.mxu0 %v1235
    %1808 = vmatpush1.bf16.msra.mxu0 %v1234
    %1809 = vmatprep.subr.bf16.mxu0 %v1244
    %1810 = vmatpush1.bf16.msra.mxu0 %v1243
    %1811 = vmatprep.subr.bf16.mxu0 %v1253
    %1812 = vmatpush1.bf16.msra.mxu0 %v1252
    %1813 = vmatprep.subr.bf16.mxu0 %v1262
    %1814 = vmatpush1.bf16.msra.mxu0 %v1261
    %1815 = vmatprep.subr.bf16.mxu0 %v1271
    %1816 = vmatpush1.bf16.msra.mxu0 %v1270
    %1817 = vmatprep.mubr.bf16.mxu0 %v53
    %1818 = vmatmul.mubr.bf16.gmra.mrb[0].mxu0 %v52
    %v1819 = vpop.f32.mrb[0].mxu0
    %v1820 = vadd.f32 %v349, %v1819
    %v1821 = vpop.f32.mrb[0].mxu0
    %v1822 = vadd.f32 %v353, %v1821
    %v1823 = vpop.f32.mrb[0].mxu0
    %v1824 = vpop.f32.mrb[0].mxu0
    %1825 = vdwg.mxu0
    %1826 = vmatprep.subr.bf16.mxu0 %v1280
    %1827 = vmatpush1.bf16.msra.mxu0 %v1279
    %1828 = vmatprep.subr.bf16.mxu0 %v1289
    %1829 = vmatpush1.bf16.msra.mxu0 %v1288
    %1830 = vmatprep.subr.bf16.mxu0 %v1298
    %1831 = vmatpush1.bf16.msra.mxu0 %v1297
    %1832 = vmatprep.subr.bf16.mxu0 %v1307
    %1833 = vmatpush1.bf16.msra.mxu0 %v1306
    %1834 = vmatprep.subr.bf16.mxu0 %v1316
    %1835 = vmatpush1.bf16.msra.mxu0 %v1315
    %1836 = vmatprep.subr.bf16.mxu0 %v1325
    %1837 = vmatpush1.bf16.msra.mxu0 %v1324
    %1838 = vmatprep.subr.bf16.mxu0 %v1334
    %1839 = vmatpush1.bf16.msra.mxu0 %v1333
    %1840 = vmatprep.subr.bf16.mxu0 %v1343
    %1841 = vmatpush1.bf16.msra.mxu0 %v1342
    %1842 = vmatprep.subr.bf16.mxu0 %v1352
    %1843 = vmatpush1.bf16.msra.mxu0 %v1351
    %1844 = vmatprep.subr.bf16.mxu0 %v1361
    %1845 = vmatpush1.bf16.msra.mxu0 %v1360
    %1846 = vmatprep.subr.bf16.mxu0 %v1370
    %1847 = vmatpush1.bf16.msra.mxu0 %v1369
    %1848 = vmatprep.subr.bf16.mxu0 0
    %1849 = vmatpush1.bf16.msra.mxu0 0
    %1850 = vmatprep.subr.bf16.mxu0 0
    %1851 = vmatpush1.bf16.msra.mxu0 0
    %1852 = vmatprep.subr.bf16.mxu0 0
    %1853 = vmatpush1.bf16.msra.mxu0 0
    %1854 = vmatprep.subr.bf16.mxu0 0
    %1855 = vmatpush1.bf16.msra.mxu0 0
    %1856 = vmatprep.subr.bf16.mxu0 0
    %1857 = vmatpush1.bf16.msra.mxu0 0
    %1858 = vmatprep.mubr.bf16.mxu0 %v1619
    %1859 = vmatmul.mubr.bf16.gmra.mrb[0].mxu0 %v54
    %v1860 = vpop.f32.mrb[0].mxu0
    %v1861 = vadd.f32 %v1820, %v1860
    %v1862 = vpop.f32.mrb[0].mxu0
    %v1863 = vadd.f32 %v1822, %v1862
    %v1864 = vpop.f32.mrb[0].mxu0
    %v1865 = vpop.f32.mrb[0].mxu0
    %1866 = vdwg.mxu0
    %1867 = vmatprep.subr.bf16.mxu0 %v1138
    %1868 = vmatpush1.bf16.msra.mxu0 %v1137
    %1869 = vmatprep.subr.bf16.mxu0 %v1147
    %1870 = vmatpush1.bf16.msra.mxu0 %v1146
    %1871 = vmatprep.subr.bf16.mxu0 %v1156
    %1872 = vmatpush1.bf16.msra.mxu0 %v1155
    %1873 = vmatprep.subr.bf16.mxu0 %v1165
    %1874 = vmatpush1.bf16.msra.mxu0 %v1164
    %1875 = vmatprep.subr.bf16.mxu0 %v1174
    %1876 = vmatpush1.bf16.msra.mxu0 %v1173
    %1877 = vmatprep.subr.bf16.mxu0 %v1183
    %1878 = vmatpush1.bf16.msra.mxu0 %v1182
    %1879 = vmatprep.subr.bf16.mxu0 %v1192
    %1880 = vmatpush1.bf16.msra.mxu0 %v1191
    %1881 = vmatprep.subr.bf16.mxu0 %v1201
    %1882 = vmatpush1.bf16.msra.mxu0 %v1200
    %1883 = vmatprep.subr.bf16.mxu0 %v1210
    %1884 = vmatpush1.bf16.msra.mxu0 %v1209
    %1885 = vmatprep.subr.bf16.mxu0 %v1219
    %1886 = vmatpush1.bf16.msra.mxu0 %v1218
    %1887 = vmatprep.subr.bf16.mxu0 %v1228
    %1888 = vmatpush1.bf16.msra.mxu0 %v1227
    %1889 = vmatprep.subr.bf16.mxu0 %v1237
    %1890 = vmatpush1.bf16.msra.mxu0 %v1236
    %1891 = vmatprep.subr.bf16.mxu0 %v1246
    %1892 = vmatpush1.bf16.msra.mxu0 %v1245
    %1893 = vmatprep.subr.bf16.mxu0 %v1255
    %1894 = vmatpush1.bf16.msra.mxu0 %v1254
    %1895 = vmatprep.subr.bf16.mxu0 %v1264
    %1896 = vmatpush1.bf16.msra.mxu0 %v1263
    %1897 = vmatprep.subr.bf16.mxu0 %v1273
    %1898 = vmatpush1.bf16.msra.mxu0 %v1272
    %1899 = vmatprep.mubr.bf16.mxu0 %v53
    %1900 = vmatmul.mubr.bf16.gmra.mrb[0].mxu0 %v52
    %v1901 = vpop.f32.mrb[0].mxu0
    %v1902 = vadd.f32 %v357, %v1901
    %v1903 = vpop.f32.mrb[0].mxu0
    %v1904 = vadd.f32 %v361, %v1903
    %v1905 = vpop.f32.mrb[0].mxu0
    %v1906 = vpop.f32.mrb[0].mxu0
    %1907 = vdwg.mxu0
    %1908 = vmatprep.subr.bf16.mxu0 %v1282
    %1909 = vmatpush1.bf16.msra.mxu0 %v1281
    %1910 = vmatprep.subr.bf16.mxu0 %v1291
    %1911 = vmatpush1.bf16.msra.mxu0 %v1290
    %1912 = vmatprep.subr.bf16.mxu0 %v1300
    %1913 = vmatpush1.bf16.msra.mxu0 %v1299
    %1914 = vmatprep.subr.bf16.mxu0 %v1309
    %1915 = vmatpush1.bf16.msra.mxu0 %v1308
    %1916 = vmatprep.subr.bf16.mxu0 %v1318
    %1917 = vmatpush1.bf16.msra.mxu0 %v1317
    %1918 = vmatprep.subr.bf16.mxu0 %v1327
    %1919 = vmatpush1.bf16.msra.mxu0 %v1326
    %1920 = vmatprep.subr.bf16.mxu0 %v1336
    %1921 = vmatpush1.bf16.msra.mxu0 %v1335
    %1922 = vmatprep.subr.bf16.mxu0 %v1345
    %1923 = vmatpush1.bf16.msra.mxu0 %v1344
    %1924 = vmatprep.subr.bf16.mxu0 %v1354
    %1925 = vmatpush1.bf16.msra.mxu0 %v1353
    %1926 = vmatprep.subr.bf16.mxu0 %v1363
    %1927 = vmatpush1.bf16.msra.mxu0 %v1362
    %1928 = vmatprep.subr.bf16.mxu0 %v1372
    %1929 = vmatpush1.bf16.msra.mxu0 %v1371
    %1930 = vmatprep.subr.bf16.mxu0 0
    %1931 = vmatpush1.bf16.msra.mxu0 0
    %1932 = vmatprep.subr.bf16.mxu0 0
    %1933 = vmatpush1.bf16.msra.mxu0 0
    %1934 = vmatprep.subr.bf16.mxu0 0
    %1935 = vmatpush1.bf16.msra.mxu0 0
    %1936 = vmatprep.subr.bf16.mxu0 0
    %1937 = vmatpush1.bf16.msra.mxu0 0
    %1938 = vmatprep.subr.bf16.mxu0 0
    %1939 = vmatpush1.bf16.msra.mxu0 0
    %1940 = vmatprep.mubr.bf16.mxu0 %v1619
    %1941 = vmatmul.mubr.bf16.gmra.mrb[0].mxu0 %v54
    %v1942 = vpop.f32.mrb[0].mxu0
    %v1943 = vadd.f32 %v1902, %v1942
    %v1944 = vpop.f32.mrb[0].mxu0
    %v1945 = vadd.f32 %v1904, %v1944
    %v1946 = vpop.f32.mrb[0].mxu0
    %v1947 = vpop.f32.mrb[0].mxu0
    %1948 = vdwg.mxu0
    %1949 = vmatprep.subr.bf16.mxu0 0
    %1950 = vmatpush1.bf16.msra.mxu0 %v1139
    %1951 = vmatprep.subr.bf16.mxu0 0
    %1952 = vmatpush1.bf16.msra.mxu0 %v1148
    %1953 = vmatprep.subr.bf16.mxu0 0
    %1954 = vmatpush1.bf16.msra.mxu0 %v1157
    %1955 = vmatprep.subr.bf16.mxu0 0
    %1956 = vmatpush1.bf16.msra.mxu0 %v1166
    %1957 = vmatprep.subr.bf16.mxu0 0
    %1958 = vmatpush1.bf16.msra.mxu0 %v1175
    %1959 = vmatprep.subr.bf16.mxu0 0
    %1960 = vmatpush1.bf16.msra.mxu0 %v1184
    %1961 = vmatprep.subr.bf16.mxu0 0
    %1962 = vmatpush1.bf16.msra.mxu0 %v1193
    %1963 = vmatprep.subr.bf16.mxu0 0
    %1964 = vmatpush1.bf16.msra.mxu0 %v1202
    %1965 = vmatprep.subr.bf16.mxu0 0
    %1966 = vmatpush1.bf16.msra.mxu0 %v1211
    %1967 = vmatprep.subr.bf16.mxu0 0
    %1968 = vmatpush1.bf16.msra.mxu0 %v1220
    %1969 = vmatprep.subr.bf16.mxu0 0
    %1970 = vmatpush1.bf16.msra.mxu0 %v1229
    %1971 = vmatprep.subr.bf16.mxu0 0
    %1972 = vmatpush1.bf16.msra.mxu0 %v1238
    %1973 = vmatprep.subr.bf16.mxu0 0
    %1974 = vmatpush1.bf16.msra.mxu0 %v1247
    %1975 = vmatprep.subr.bf16.mxu0 0
    %1976 = vmatpush1.bf16.msra.mxu0 %v1256
    %1977 = vmatprep.subr.bf16.mxu0 0
    %1978 = vmatpush1.bf16.msra.mxu0 %v1265
    %1979 = vmatprep.subr.bf16.mxu0 0
    %1980 = vmatpush1.bf16.msra.mxu0 %v1274
    %1981 = vmatprep.mubr.bf16.mxu0 %v53
    %1982 = vmatmul.mubr.bf16.gmra.mrb[0].mxu0 %v52
    %v1983 = vpop.f32.mrb[0].mxu0
    %v1984 = vadd.f32 %v365, %v1983
    %v1985 = vpop.f32.mrb[0].mxu0
    %v1986 = vpop.f32.mrb[0].mxu0
    %v1987 = vpop.f32.mrb[0].mxu0
    %1988 = vdwg.mxu0
    %1989 = vmatprep.subr.bf16.mxu0 0
    %1990 = vmatpush1.bf16.msra.mxu0 %v1283
    %1991 = vmatprep.subr.bf16.mxu0 0
    %1992 = vmatpush1.bf16.msra.mxu0 %v1292
    %1993 = vmatprep.subr.bf16.mxu0 0
    %1994 = vmatpush1.bf16.msra.mxu0 %v1301
    %1995 = vmatprep.subr.bf16.mxu0 0
    %1996 = vmatpush1.bf16.msra.mxu0 %v1310
    %1997 = vmatprep.subr.bf16.mxu0 0
    %1998 = vmatpush1.bf16.msra.mxu0 %v1319
    %1999 = vmatprep.subr.bf16.mxu0 0
    %2000 = vmatpush1.bf16.msra.mxu0 %v1328
    %2001 = vmatprep.subr.bf16.mxu0 0
    %2002 = vmatpush1.bf16.msra.mxu0 %v1337
    %2003 = vmatprep.subr.bf16.mxu0 0
    %2004 = vmatpush1.bf16.msra.mxu0 %v1346
    %2005 = vmatprep.subr.bf16.mxu0 0
    %2006 = vmatpush1.bf16.msra.mxu0 %v1355
    %2007 = vmatprep.subr.bf16.mxu0 0
    %2008 = vmatpush1.bf16.msra.mxu0 %v1364
    %2009 = vmatprep.subr.bf16.mxu0 0
    %2010 = vmatpush1.bf16.msra.mxu0 %v1373
    %2011 = vmatprep.subr.bf16.mxu0 0
    %2012 = vmatpush1.bf16.msra.mxu0 0
    %2013 = vmatprep.subr.bf16.mxu0 0
    %2014 = vmatpush1.bf16.msra.mxu0 0
    %2015 = vmatprep.subr.bf16.mxu0 0
    %2016 = vmatpush1.bf16.msra.mxu0 0
    %2017 = vmatprep.subr.bf16.mxu0 0
    %2018 = vmatpush1.bf16.msra.mxu0 0
    %2019 = vmatprep.subr.bf16.mxu0 0
    %2020 = vmatpush1.bf16.msra.mxu0 0
    %2021 = vmatprep.mubr.bf16.mxu0 %v1619
    %2022 = vmatmul.mubr.bf16.gmra.mrb[0].mxu0 %v54
    %v2023 = vpop.f32.mrb[0].mxu0
    %v2024 = vadd.f32 %v1984, %v2023
    %v2025 = vpop.f32.mrb[0].mxu0
    %v2026 = vpop.f32.mrb[0].mxu0
    %v2027 = vpop.f32.mrb[0].mxu0
    %2028 = vdwg.mxu0
    %v2029 = vmax.f32 %v1697, 0.0
    %v2030 = vmax.f32 %v1699, 0.0
    %v2031 = vmax.f32 %v1779, 0.0
    %v2032 = vmax.f32 %v1781, 0.0
    %v2033 = vmax.f32 %v1861, 0.0
    %v2034 = vmax.f32 %v1863, 0.0
    %v2035 = vmax.f32 %v1943, 0.0
    %v2036 = vmax.f32 %v1945, 0.0
    %v2037 = vmax.f32 %v2024, 0.0
    %v2038 = vld [vmem:[%s8] sm:$0xf]
    %v2039 = vld [vmem:[%s2] sm:$0xff]
    %v2040 = vld [vmem:[%s2 + $0x8] sm:$0x1]
    %v2041 = vld [vmem:[%s3] sm:$0xf]
    %v2042 = vld [vmem:[%s3 + $0x4] sm:$0xf]
    %v2043 = vld [vmem:[%s3 + $0x8] sm:$0xf]
    %v2044 = vld [vmem:[%s3 + $0xc] sm:$0xf]
    %v2045 = vld [vmem:[%s3 + $0x10] sm:$0xf]
    %v2046 = vld [vmem:[%s3 + $0x14] sm:$0xf]
    %v2047 = vld [vmem:[%s3 + $0x18] sm:$0xf]
    %v2048 = vld [vmem:[%s3 + $0x1c] sm:$0xf]
    %v2049 = vld [vmem:[%s3 + $0x20] sm:$0xf]
    %v2050 = vld [vmem:[%s3 + $0x24] sm:$0xf]
    %v2051 = vld [vmem:[%s3 + $0x28] sm:$0xf]
    %v2052 = vld [vmem:[%s3 + $0x2c] sm:$0xf]
    %v2053 = vld [vmem:[%s3 + $0x30] sm:$0xf]
    %v2054 = vld [vmem:[%s3 + $0x34] sm:$0xf]
    %v2055 = vld [vmem:[%s3 + $0x38] sm:$0xf]
    %v2056 = vld [vmem:[%s3 + $0x3c] sm:$0xf]
    %v2057 = vld [vmem:[%s3 + $0x40] sm:$0xf]
    %v2058 = vld [vmem:[%s3 + $0x44] sm:$0xf]
    %v2059 = vld [vmem:[%s3 + $0x48] sm:$0xf]
    %v2060 = vld [vmem:[%s3 + $0x4c] sm:$0xf]
    %v2061 = vld [vmem:[%s3 + $0x50] sm:$0xf]
    %v2062 = vld [vmem:[%s3 + $0x54] sm:$0xf]
    %v2063 = vld [vmem:[%s3 + $0x58] sm:$0xf]
    %v2064 = vld [vmem:[%s3 + $0x5c] sm:$0xf]
    %v2065 = vld [vmem:[%s3 + $0x60] sm:$0xf]
    %v2066 = vld [vmem:[%s3 + $0x64] sm:$0xf]
    %v2067 = vld [vmem:[%s3 + $0x68] sm:$0xf]
    %v2068 = vld [vmem:[%s3 + $0x6c] sm:$0xf]
    %v2069 = vld [vmem:[%s3 + $0x70] sm:$0xf]
    %v2070 = vld [vmem:[%s3 + $0x74] sm:$0xf]
    %v2071 = vld [vmem:[%s3 + $0x78] sm:$0xf]
    %v2072 = vld [vmem:[%s3 + $0x7c] sm:$0xf]
    %v2073 = vld [vmem:[%s3 + $0x80] sm:$0xf]
    %v2074 = vld [vmem:[%s3 + $0x84] sm:$0xf]
    %v2075 = vld [vmem:[%s3 + $0x88] sm:$0xf]
    %v2076 = vld [vmem:[%s3 + $0x8c] sm:$0xf]
    %v2077 = vld [vmem:[%s3 + $0x90] sm:$0xf]
    %v2078 = vld [vmem:[%s3 + $0x94] sm:$0xf]
    %v2079 = vld [vmem:[%s3 + $0x98] sm:$0xf]
    %v2080 = vld [vmem:[%s3 + $0x9c] sm:$0xf]
    %v2081 = vld [vmem:[%s3 + $0xa0] sm:$0xf]
    %v2082 = vld [vmem:[%s3 + $0xa4] sm:$0xf]
    %v2083 = vld [vmem:[%s3 + $0xa8] sm:$0xf]
    %v2084 = vld [vmem:[%s3 + $0xac] sm:$0xf]
    %v2085 = vld [vmem:[%s3 + $0xb0] sm:$0xf]
    %v2086 = vld [vmem:[%s3 + $0xb4] sm:$0xf]
    %v2087 = vld [vmem:[%s3 + $0xb8] sm:$0xf]
    %v2088 = vld [vmem:[%s3 + $0xbc] sm:$0xf]
    %v2089 = vld [vmem:[%s3 + $0xc0] sm:$0xf]
    %v2090 = vld [vmem:[%s3 + $0xc4] sm:$0xf]
    %v2091 = vld [vmem:[%s3 + $0xc8] sm:$0xf]
    %v2092 = vld [vmem:[%s3 + $0xcc] sm:$0xf]
    %v2093 = vld [vmem:[%s3 + $0xd0] sm:$0xf]
    %v2094 = vld [vmem:[%s3 + $0xd4] sm:$0xf]
    %v2095 = vlaneseq
    %v2096 = vshrl.u32 %v2095, 7
    %v2097 = vsub.s32 4, %v2096
    %v2098 = vrot.slane %v2039, %v2097
    %v2099 = vmul.f32 %v2029, %v2098
    %v2100 = vlaneseq
    %v2101 = vshrl.u32 %v2100, 7
    %v2102 = vsub.s32 5, %v2101
    %v2103 = vrot.slane %v2039, %v2102
    %v2104 = vmul.f32 %v2030, %v2103
    %v2105 = vadd.f32 %v2099, %v2104
    %v2106 = vlaneseq
    %v2107 = vshrl.u32 %v2106, 7
    %v2108 = vsub.s32 7, %v2107
    %v2109 = vrot.slane %v2039, %v2108
    %v2110 = vmul.f32 %v2032, %v2109
    %v2111 = vadd.f32 %v2105, %v2110
    %v2112 = vlaneseq
    %v2113 = vshrl.u32 %v2112, 7
    %v2114 = vsub.s32 0, %v2113
    %v2115 = vrot.slane %v2040, %v2114
    %v2116 = vmul.f32 %v2033, %v2115
    %v2117 = vadd.f32 %v2111, %v2116
    %v2118 = vlaneseq
    %v2119 = vshrl.u32 %v2118, 7
    %v2120 = vsub.s32 0, %v2119
    %v2121 = vrot.slane %v2038, %v2120
    %v2122 = vadd.f32 %v2117, %v2121
    %v2123 = vmax.f32 %v2122, 0.0
    %v2124 = vpack.c.bf16 %v2123, %v2123
    %v2125 = vld [vmem:[%s4] sm:$0xf]
    %v2126 = vld [vmem:[%s4 + $0x4] sm:$0xf]
    %v2127 = vld [vmem:[%s4 + $0x8] sm:$0xf]
    %v2128 = vld [vmem:[%s4 + $0xc] sm:$0xf]
    %v2129 = vld [vmem:[%s4 + $0x10] sm:$0xf]
    %v2130 = vld [vmem:[%s4 + $0x14] sm:$0xf]
    %v2131 = vld [vmem:[%s4 + $0x18] sm:$0xf]
    %v2132 = vld [vmem:[%s4 + $0x1c] sm:$0xf]
    %v2133 = vld [vmem:[%s4 + $0x20] sm:$0xf]
    %v2134 = vld [vmem:[%s4 + $0x24] sm:$0xf]
    %v2135 = vld [vmem:[%s4 + $0x28] sm:$0xf]
    %v2136 = vld [vmem:[%s4 + $0x2c] sm:$0xf]
    %v2137 = vld [vmem:[%s4 + $0x30] sm:$0xf]
    %v2138 = vld [vmem:[%s4 + $0x34] sm:$0xf]
    %v2139 = vld [vmem:[%s4 + $0x38] sm:$0xf]
    %v2140 = vld [vmem:[%s4 + $0x3c] sm:$0xf]
    %v2157 = vunpack.c.l.b16 %v2125
    %v2158 = vunpack.c.l.b16 %v2126
    %v2159 = vunpack.c.l.b16 %v2127
    %v2160 = vunpack.c.l.b16 %v2128
    %v2161 = vunpack.c.l.b16 %v2129
    %v2162 = vunpack.c.l.b16 %v2130
    %v2163 = vunpack.c.l.b16 %v2131
    %v2164 = vunpack.c.l.b16 %v2132
    %v2165 = vunpack.c.l.b16 %v2133
    %v2166 = vunpack.c.l.b16 %v2134
    %v2167 = vunpack.c.l.b16 %v2135
    %v2168 = vunpack.c.l.b16 %v2136
    %v2169 = vunpack.c.l.b16 %v2137
    %v2170 = vunpack.c.l.b16 %v2138
    %v2171 = vunpack.c.l.b16 %v2139
    %v2172 = vunpack.c.l.b16 %v2140
    %v2173 = vpack.c.b16 %v2158, %v2157
    %v2174 = vpack.c.b16 %v2160, %v2159
    %v2175 = vpack.c.b16 %v2162, %v2161
    %v2176 = vpack.c.b16 %v2164, %v2163
    %v2177 = vpack.c.b16 %v2166, %v2165
    %v2178 = vpack.c.b16 %v2168, %v2167
    %v2179 = vpack.c.b16 %v2170, %v2169
    %v2180 = vpack.c.b16 %v2172, %v2171
    %2189 = vmatprep.subr.bf16.mxu0 0
    %2190 = vmatpush1.bf16.msra.mxu0 %v2173
    %2191 = vmatprep.subr.bf16.mxu0 0
    %2192 = vmatpush1.bf16.msra.mxu0 %v2174
    %2193 = vmatprep.subr.bf16.mxu0 0
    %2194 = vmatpush1.bf16.msra.mxu0 %v2175
    %2195 = vmatprep.subr.bf16.mxu0 0
    %2196 = vmatpush1.bf16.msra.mxu0 %v2176
    %2197 = vmatprep.subr.bf16.mxu0 0
    %2198 = vmatpush1.bf16.msra.mxu0 %v2177
    %2199 = vmatprep.subr.bf16.mxu0 0
    %2200 = vmatpush1.bf16.msra.mxu0 %v2178
    %2201 = vmatprep.subr.bf16.mxu0 0
    %2202 = vmatpush1.bf16.msra.mxu0 %v2179
    %2203 = vmatprep.subr.bf16.mxu0 0
    %2204 = vmatpush1.bf16.msra.mxu0 %v2180
    %2205 = vmatprep.subr.bf16.mxu0 0
    %2206 = vmatpush1.bf16.msra.mxu0 0
    %2207 = vmatprep.subr.bf16.mxu0 0
    %2208 = vmatpush1.bf16.msra.mxu0 0
    %2209 = vmatprep.subr.bf16.mxu0 0
    %2210 = vmatpush1.bf16.msra.mxu0 0
    %2211 = vmatprep.subr.bf16.mxu0 0
    %2212 = vmatpush1.bf16.msra.mxu0 0
    %2213 = vmatprep.subr.bf16.mxu0 0
    %2214 = vmatpush1.bf16.msra.mxu0 0
    %2215 = vmatprep.subr.bf16.mxu0 0
    %2216 = vmatpush1.bf16.msra.mxu0 0
    %2217 = vmatprep.subr.bf16.mxu0 0
    %2218 = vmatpush1.bf16.msra.mxu0 0
    %2219 = vmatprep.subr.bf16.mxu0 0
    %2220 = vmatpush1.bf16.msra.mxu0 0
    %2221 = vmatprep.mubr.bf16.mxu0 0
    %2222 = vmatmul.mubr.bf16.gmra.mrb[0].mxu0 %v2124
    %v2223 = vpop.f32.mrb[0].mxu0
    %v2224 = vadd.f32 0.0, %v2223
    %v2225 = vpop.f32.mrb[0].mxu0
    %v2226 = vpop.f32.mrb[0].mxu0
    %v2227 = vpop.f32.mrb[0].mxu0
    %2228 = vdwg.mxu0
    %v2283 = vunpack.c.l.b16 %v2041
    %v2284 = vunpack.c.l.b16 %v2042
    %v2285 = vunpack.c.l.b16 %v2043
    %v2286 = vunpack.c.l.b16 %v2044
    %v2287 = vunpack.c.l.b16 %v2045
    %v2288 = vunpack.c.l.b16 %v2046
    %v2289 = vunpack.c.l.b16 %v2047
    %v2290 = vunpack.c.l.b16 %v2048
    %v2291 = vunpack.c.l.b16 %v2049
    %v2292 = vunpack.c.l.b16 %v2050
    %v2293 = vunpack.c.l.b16 %v2051
    %v2294 = vunpack.c.l.b16 %v2052
    %v2295 = vunpack.c.l.b16 %v2053
    %v2296 = vunpack.c.l.b16 %v2054
    %v2297 = vunpack.c.l.b16 %v2055
    %v2298 = vunpack.c.l.b16 %v2056
    %v2299 = vunpack.c.l.b16 %v2057
    %v2300 = vunpack.c.l.b16 %v2058
    %v2301 = vunpack.c.l.b16 %v2059
    %v2302 = vunpack.c.l.b16 %v2060
    %v2303 = vunpack.c.l.b16 %v2061
    %v2304 = vunpack.c.l.b16 %v2062
    %v2305 = vunpack.c.l.b16 %v2063
    %v2306 = vunpack.c.l.b16 %v2064
    %v2307 = vunpack.c.l.b16 %v2065
    %v2308 = vunpack.c.l.b16 %v2066
    %v2309 = vunpack.c.l.b16 %v2067
    %v2310 = vunpack.c.l.b16 %v2068
    %v2311 = vunpack.c.l.b16 %v2069
    %v2312 = vunpack.c.l.b16 %v2070
    %v2313 = vunpack.c.l.b16 %v2071
    %v2314 = vunpack.c.l.b16 %v2072
    %v2315 = vunpack.c.l.b16 %v2073
    %v2316 = vunpack.c.l.b16 %v2074
    %v2317 = vunpack.c.l.b16 %v2075
    %v2318 = vunpack.c.l.b16 %v2076
    %v2319 = vunpack.c.l.b16 %v2077
    %v2320 = vunpack.c.l.b16 %v2078
    %v2321 = vunpack.c.l.b16 %v2079
    %v2322 = vunpack.c.l.b16 %v2080
    %v2323 = vunpack.c.l.b16 %v2081
    %v2324 = vunpack.c.l.b16 %v2082
    %v2325 = vunpack.c.l.b16 %v2083
    %v2326 = vunpack.c.l.b16 %v2084
    %v2327 = vunpack.c.l.b16 %v2085
    %v2328 = vunpack.c.l.b16 %v2086
    %v2329 = vunpack.c.l.b16 %v2087
    %v2330 = vunpack.c.l.b16 %v2088
    %v2331 = vunpack.c.l.b16 %v2089
    %v2332 = vunpack.c.l.b16 %v2090
    %v2333 = vunpack.c.l.b16 %v2091
    %v2334 = vunpack.c.l.b16 %v2092
    %v2335 = vunpack.c.l.b16 %v2093
    %v2336 = vunpack.c.l.b16 %v2094
    %v2337 = vpack.c.b16 %v2284, %v2283
    %v2338 = vpack.c.b16 %v2286, %v2285
    %v2339 = vpack.c.b16 %v2288, %v2287
    %v2340 = vpack.c.b16 %v2290, %v2289
    %v2341 = vpack.c.b16 %v2292, %v2291
    %v2342 = vpack.c.b16 %v2294, %v2293
    %v2343 = vpack.c.b16 %v2296, %v2295
    %v2344 = vpack.c.b16 %v2298, %v2297
    %v2345 = vpack.c.b16 %v2300, %v2299
    %v2346 = vpack.c.b16 %v2302, %v2301
    %v2347 = vpack.c.b16 %v2304, %v2303
    %v2348 = vpack.c.b16 %v2306, %v2305
    %v2349 = vpack.c.b16 %v2308, %v2307
    %v2350 = vpack.c.b16 %v2310, %v2309
    %v2351 = vpack.c.b16 %v2312, %v2311
    %v2352 = vpack.c.b16 %v2314, %v2313
    %v2353 = vpack.c.b16 %v2316, %v2315
    %v2354 = vpack.c.b16 %v2318, %v2317
    %v2355 = vpack.c.b16 %v2320, %v2319
    %v2356 = vpack.c.b16 %v2322, %v2321
    %v2357 = vpack.c.b16 %v2324, %v2323
    %v2358 = vpack.c.b16 %v2326, %v2325
    %v2359 = vpack.c.b16 %v2328, %v2327
    %v2360 = vpack.c.b16 %v2330, %v2329
    %v2361 = vpack.c.b16 %v2332, %v2331
    %v2362 = vpack.c.b16 %v2334, %v2333
    %v2363 = vpack.c.b16 %v2336, %v2335
    %2391 = vmatprep.subr.bf16.mxu0 0
    %2392 = vmatpush1.bf16.msra.mxu0 %v2337
    %2393 = vmatprep.subr.bf16.mxu0 0
    %2394 = vmatpush1.bf16.msra.mxu0 %v2338
    %2395 = vmatprep.subr.bf16.mxu0 0
    %2396 = vmatpush1.bf16.msra.mxu0 %v2339
    %2397 = vmatprep.subr.bf16.mxu0 0
    %2398 = vmatpush1.bf16.msra.mxu0 %v2340
    %2399 = vmatprep.subr.bf16.mxu0 0
    %2400 = vmatpush1.bf16.msra.mxu0 %v2341
    %2401 = vmatprep.subr.bf16.mxu0 0
    %2402 = vmatpush1.bf16.msra.mxu0 %v2342
    %2403 = vmatprep.subr.bf16.mxu0 0
    %2404 = vmatpush1.bf16.msra.mxu0 %v2343
    %2405 = vmatprep.subr.bf16.mxu0 0
    %2406 = vmatpush1.bf16.msra.mxu0 %v2344
    %2407 = vmatprep.subr.bf16.mxu0 0
    %2408 = vmatpush1.bf16.msra.mxu0 %v2345
    %2409 = vmatprep.subr.bf16.mxu0 0
    %2410 = vmatpush1.bf16.msra.mxu0 %v2346
    %2411 = vmatprep.subr.bf16.mxu0 0
    %2412 = vmatpush1.bf16.msra.mxu0 %v2347
    %2413 = vmatprep.subr.bf16.mxu0 0
    %2414 = vmatpush1.bf16.msra.mxu0 %v2348
    %2415 = vmatprep.subr.bf16.mxu0 0
    %2416 = vmatpush1.bf16.msra.mxu0 %v2349
    %2417 = vmatprep.subr.bf16.mxu0 0
    %2418 = vmatpush1.bf16.msra.mxu0 %v2350
    %2419 = vmatprep.subr.bf16.mxu0 0
    %2420 = vmatpush1.bf16.msra.mxu0 %v2351
    %2421 = vmatprep.subr.bf16.mxu0 0
    %2422 = vmatpush1.bf16.msra.mxu0 %v2352
    %2423 = vmatprep.mubr.bf16.mxu0 %v53
    %2424 = vmatmul.mubr.bf16.gmra.mrb[0].mxu0 %v52
    %v2425 = vpop.f32.mrb[0].mxu0
    %v2426 = vadd.f32 %v2224, %v2425
    %v2427 = vpop.f32.mrb[0].mxu0
    %v2428 = vpop.f32.mrb[0].mxu0
    %v2429 = vpop.f32.mrb[0].mxu0
    %2430 = vdwg.mxu0
    %2431 = vmatprep.subr.bf16.mxu0 0
    %2432 = vmatpush1.bf16.msra.mxu0 %v2353
    %2433 = vmatprep.subr.bf16.mxu0 0
    %2434 = vmatpush1.bf16.msra.mxu0 %v2354
    %2435 = vmatprep.subr.bf16.mxu0 0
    %2436 = vmatpush1.bf16.msra.mxu0 %v2355
    %2437 = vmatprep.subr.bf16.mxu0 0
    %2438 = vmatpush1.bf16.msra.mxu0 %v2356
    %2439 = vmatprep.subr.bf16.mxu0 0
    %2440 = vmatpush1.bf16.msra.mxu0 %v2357
    %2441 = vmatprep.subr.bf16.mxu0 0
    %2442 = vmatpush1.bf16.msra.mxu0 %v2358
    %2443 = vmatprep.subr.bf16.mxu0 0
    %2444 = vmatpush1.bf16.msra.mxu0 %v2359
    %2445 = vmatprep.subr.bf16.mxu0 0
    %2446 = vmatpush1.bf16.msra.mxu0 %v2360
    %2447 = vmatprep.subr.bf16.mxu0 0
    %2448 = vmatpush1.bf16.msra.mxu0 %v2361
    %2449 = vmatprep.subr.bf16.mxu0 0
    %2450 = vmatpush1.bf16.msra.mxu0 %v2362
    %2451 = vmatprep.subr.bf16.mxu0 0
    %2452 = vmatpush1.bf16.msra.mxu0 %v2363
    %2453 = vmatprep.subr.bf16.mxu0 0
    %2454 = vmatpush1.bf16.msra.mxu0 0
    %2455 = vmatprep.subr.bf16.mxu0 0
    %2456 = vmatpush1.bf16.msra.mxu0 0
    %2457 = vmatprep.subr.bf16.mxu0 0
    %2458 = vmatpush1.bf16.msra.mxu0 0
    %2459 = vmatprep.subr.bf16.mxu0 0
    %2460 = vmatpush1.bf16.msra.mxu0 0
    %2461 = vmatprep.subr.bf16.mxu0 0
    %2462 = vmatpush1.bf16.msra.mxu0 0
    %2463 = vmatprep.mubr.bf16.mxu0 %v1619
    %2464 = vmatmul.mubr.bf16.gmra.mrb[0].mxu0 %v54
    %v2465 = vpop.f32.mrb[0].mxu0
    %v2466 = vadd.f32 %v2426, %v2465
    %v2467 = vpop.f32.mrb[0].mxu0
    %v2468 = vpop.f32.mrb[0].mxu0
    %v2469 = vpop.f32.mrb[0].mxu0
    %2470 = vdwg.mxu0
    %v2471 = vlaneseq
    %v2472 = vshrl.u32 %v2471, 7
    %v2473 = vsub.s32 3, %v2472
    %v2474 = vrot.slane %v2039, %v2473
    %v2475 = vmul.f32 %v2029, %v2474
    %v2476 = vmul.f32 %v2030, %v2098
    %v2477 = vadd.f32 %v2475, %v2476
    %v2478 = vmul.f32 %v2031, %v2103
    %v2479 = vadd.f32 %v2477, %v2478
    %v2480 = vlaneseq
    %v2481 = vshrl.u32 %v2480, 7
    %v2482 = vsub.s32 6, %v2481
    %v2483 = vrot.slane %v2039, %v2482
    %v2484 = vmul.f32 %v2032, %v2483
    %v2485 = vadd.f32 %v2479, %v2484
    %v2486 = vmul.f32 %v2033, %v2109
    %v2487 = vadd.f32 %v2485, %v2486
    %v2488 = vmul.f32 %v2034, %v2115
    %v2489 = vadd.f32 %v2487, %v2488
    %v2490 = vadd.f32 %v2489, %v2121
    %v2491 = vmax.f32 %v2490, 0.0
    %v2492 = vpack.c.bf16 %v2491, %v2491
    %s2493 = scalar_lea.vmem %s4, 64
    %v2494 = vld [vmem:[%s2493] sm:$0xf]
    %v2495 = vld [vmem:[%s2493 + $0x4] sm:$0xf]
    %v2496 = vld [vmem:[%s2493 + $0x8] sm:$0xf]
    %v2497 = vld [vmem:[%s2493 + $0xc] sm:$0xf]
    %v2498 = vld [vmem:[%s2493 + $0x10] sm:$0xf]
    %v2499 = vld [vmem:[%s2493 + $0x14] sm:$0xf]
    %v2500 = vld [vmem:[%s2493 + $0x18] sm:$0xf]
    %v2501 = vld [vmem:[%s2493 + $0x1c] sm:$0xf]
    %v2502 = vld [vmem:[%s2493 + $0x20] sm:$0xf]
    %v2503 = vld [vmem:[%s2493 + $0x24] sm:$0xf]
    %v2504 = vld [vmem:[%s2493 + $0x28] sm:$0xf]
    %v2505 = vld [vmem:[%s2493 + $0x2c] sm:$0xf]
    %v2506 = vld [vmem:[%s2493 + $0x30] sm:$0xf]
    %v2507 = vld [vmem:[%s2493 + $0x34] sm:$0xf]
    %v2508 = vld [vmem:[%s2493 + $0x38] sm:$0xf]
    %v2509 = vld [vmem:[%s2493 + $0x3c] sm:$0xf]
    %v2526 = vunpack.c.l.b16 %v2494
    %v2527 = vunpack.c.l.b16 %v2495
    %v2528 = vunpack.c.l.b16 %v2496
    %v2529 = vunpack.c.l.b16 %v2497
    %v2530 = vunpack.c.l.b16 %v2498
    %v2531 = vunpack.c.l.b16 %v2499
    %v2532 = vunpack.c.l.b16 %v2500
    %v2533 = vunpack.c.l.b16 %v2501
    %v2534 = vunpack.c.l.b16 %v2502
    %v2535 = vunpack.c.l.b16 %v2503
    %v2536 = vunpack.c.l.b16 %v2504
    %v2537 = vunpack.c.l.b16 %v2505
    %v2538 = vunpack.c.l.b16 %v2506
    %v2539 = vunpack.c.l.b16 %v2507
    %v2540 = vunpack.c.l.b16 %v2508
    %v2541 = vunpack.c.l.b16 %v2509
    %v2542 = vpack.c.b16 %v2527, %v2526
    %v2543 = vpack.c.b16 %v2529, %v2528
    %v2544 = vpack.c.b16 %v2531, %v2530
    %v2545 = vpack.c.b16 %v2533, %v2532
    %v2546 = vpack.c.b16 %v2535, %v2534
    %v2547 = vpack.c.b16 %v2537, %v2536
    %v2548 = vpack.c.b16 %v2539, %v2538
    %v2549 = vpack.c.b16 %v2541, %v2540
    %2558 = vmatprep.subr.bf16.mxu0 0
    %2559 = vmatpush1.bf16.msra.mxu0 %v2542
    %2560 = vmatprep.subr.bf16.mxu0 0
    %2561 = vmatpush1.bf16.msra.mxu0 %v2543
    %2562 = vmatprep.subr.bf16.mxu0 0
    %2563 = vmatpush1.bf16.msra.mxu0 %v2544
    %2564 = vmatprep.subr.bf16.mxu0 0
    %2565 = vmatpush1.bf16.msra.mxu0 %v2545
    %2566 = vmatprep.subr.bf16.mxu0 0
    %2567 = vmatpush1.bf16.msra.mxu0 %v2546
    %2568 = vmatprep.subr.bf16.mxu0 0
    %2569 = vmatpush1.bf16.msra.mxu0 %v2547
    %2570 = vmatprep.subr.bf16.mxu0 0
    %2571 = vmatpush1.bf16.msra.mxu0 %v2548
    %2572 = vmatprep.subr.bf16.mxu0 0
    %2573 = vmatpush1.bf16.msra.mxu0 %v2549
    %2574 = vmatprep.subr.bf16.mxu0 0
    %2575 = vmatpush1.bf16.msra.mxu0 0
    %2576 = vmatprep.subr.bf16.mxu0 0
    %2577 = vmatpush1.bf16.msra.mxu0 0
    %2578 = vmatprep.subr.bf16.mxu0 0
    %2579 = vmatpush1.bf16.msra.mxu0 0
    %2580 = vmatprep.subr.bf16.mxu0 0
    %2581 = vmatpush1.bf16.msra.mxu0 0
    %2582 = vmatprep.subr.bf16.mxu0 0
    %2583 = vmatpush1.bf16.msra.mxu0 0
    %2584 = vmatprep.subr.bf16.mxu0 0
    %2585 = vmatpush1.bf16.msra.mxu0 0
    %2586 = vmatprep.subr.bf16.mxu0 0
    %2587 = vmatpush1.bf16.msra.mxu0 0
    %2588 = vmatprep.subr.bf16.mxu0 0
    %2589 = vmatpush1.bf16.msra.mxu0 0
    %2590 = vmatprep.mubr.bf16.mxu0 0
    %2591 = vmatmul.mubr.bf16.gmra.mrb[0].mxu0 %v2492
    %v2592 = vpop.f32.mrb[0].mxu0
    %v2593 = vadd.f32 0.0, %v2592
    %v2594 = vpop.f32.mrb[0].mxu0
    %v2595 = vpop.f32.mrb[0].mxu0
    %v2596 = vpop.f32.mrb[0].mxu0
    %2597 = vdwg.mxu0
    %v2598 = vadd.f32 %v2466, %v2593
    %v2599 = vmul.f32 %v2030, %v2474
    %v2600 = vmul.f32 %v2031, %v2098
    %v2601 = vadd.f32 %v2599, %v2600
    %v2602 = vmul.f32 %v2033, %v2483
    %v2603 = vadd.f32 %v2601, %v2602
    %v2604 = vmul.f32 %v2034, %v2109
    %v2605 = vadd.f32 %v2603, %v2604
    %v2606 = vadd.f32 %v2605, %v2121
    %v2607 = vmax.f32 %v2606, 0.0
    %v2608 = vpack.c.bf16 %v2607, %v2607
    %s2609 = scalar_lea.vmem %s4, 128
    %v2610 = vld [vmem:[%s2609] sm:$0xf]
    %v2611 = vld [vmem:[%s2609 + $0x4] sm:$0xf]
    %v2612 = vld [vmem:[%s2609 + $0x8] sm:$0xf]
    %v2613 = vld [vmem:[%s2609 + $0xc] sm:$0xf]
    %v2614 = vld [vmem:[%s2609 + $0x10] sm:$0xf]
    %v2615 = vld [vmem:[%s2609 + $0x14] sm:$0xf]
    %v2616 = vld [vmem:[%s2609 + $0x18] sm:$0xf]
    %v2617 = vld [vmem:[%s2609 + $0x1c] sm:$0xf]
    %v2618 = vld [vmem:[%s2609 + $0x20] sm:$0xf]
    %v2619 = vld [vmem:[%s2609 + $0x24] sm:$0xf]
    %v2620 = vld [vmem:[%s2609 + $0x28] sm:$0xf]
    %v2621 = vld [vmem:[%s2609 + $0x2c] sm:$0xf]
    %v2622 = vld [vmem:[%s2609 + $0x30] sm:$0xf]
    %v2623 = vld [vmem:[%s2609 + $0x34] sm:$0xf]
    %v2624 = vld [vmem:[%s2609 + $0x38] sm:$0xf]
    %v2625 = vld [vmem:[%s2609 + $0x3c] sm:$0xf]
    %v2642 = vunpack.c.l.b16 %v2610
    %v2643 = vunpack.c.l.b16 %v2611
    %v2644 = vunpack.c.l.b16 %v2612
    %v2645 = vunpack.c.l.b16 %v2613
    %v2646 = vunpack.c.l.b16 %v2614
    %v2647 = vunpack.c.l.b16 %v2615
    %v2648 = vunpack.c.l.b16 %v2616
    %v2649 = vunpack.c.l.b16 %v2617
    %v2650 = vunpack.c.l.b16 %v2618
    %v2651 = vunpack.c.l.b16 %v2619
    %v2652 = vunpack.c.l.b16 %v2620
    %v2653 = vunpack.c.l.b16 %v2621
    %v2654 = vunpack.c.l.b16 %v2622
    %v2655 = vunpack.c.l.b16 %v2623
    %v2656 = vunpack.c.l.b16 %v2624
    %v2657 = vunpack.c.l.b16 %v2625
    %v2658 = vpack.c.b16 %v2643, %v2642
    %v2659 = vpack.c.b16 %v2645, %v2644
    %v2660 = vpack.c.b16 %v2647, %v2646
    %v2661 = vpack.c.b16 %v2649, %v2648
    %v2662 = vpack.c.b16 %v2651, %v2650
    %v2663 = vpack.c.b16 %v2653, %v2652
    %v2664 = vpack.c.b16 %v2655, %v2654
    %v2665 = vpack.c.b16 %v2657, %v2656
    %2674 = vmatprep.subr.bf16.mxu0 0
    %2675 = vmatpush1.bf16.msra.mxu0 %v2658
    %2676 = vmatprep.subr.bf16.mxu0 0
    %2677 = vmatpush1.bf16.msra.mxu0 %v2659
    %2678 = vmatprep.subr.bf16.mxu0 0
    %2679 = vmatpush1.bf16.msra.mxu0 %v2660
    %2680 = vmatprep.subr.bf16.mxu0 0
    %2681 = vmatpush1.bf16.msra.mxu0 %v2661
    %2682 = vmatprep.subr.bf16.mxu0 0
    %2683 = vmatpush1.bf16.msra.mxu0 %v2662
    %2684 = vmatprep.subr.bf16.mxu0 0
    %2685 = vmatpush1.bf16.msra.mxu0 %v2663
    %2686 = vmatprep.subr.bf16.mxu0 0
    %2687 = vmatpush1.bf16.msra.mxu0 %v2664
    %2688 = vmatprep.subr.bf16.mxu0 0
    %2689 = vmatpush1.bf16.msra.mxu0 %v2665
    %2690 = vmatprep.subr.bf16.mxu0 0
    %2691 = vmatpush1.bf16.msra.mxu0 0
    %2692 = vmatprep.subr.bf16.mxu0 0
    %2693 = vmatpush1.bf16.msra.mxu0 0
    %2694 = vmatprep.subr.bf16.mxu0 0
    %2695 = vmatpush1.bf16.msra.mxu0 0
    %2696 = vmatprep.subr.bf16.mxu0 0
    %2697 = vmatpush1.bf16.msra.mxu0 0
    %2698 = vmatprep.subr.bf16.mxu0 0
    %2699 = vmatpush1.bf16.msra.mxu0 0
    %2700 = vmatprep.subr.bf16.mxu0 0
    %2701 = vmatpush1.bf16.msra.mxu0 0
    %2702 = vmatprep.subr.bf16.mxu0 0
    %2703 = vmatpush1.bf16.msra.mxu0 0
    %2704 = vmatprep.subr.bf16.mxu0 0
    %2705 = vmatpush1.bf16.msra.mxu0 0
    %2706 = vmatprep.mubr.bf16.mxu0 0
    %2707 = vmatmul.mubr.bf16.gmra.mrb[0].mxu0 %v2608
    %v2708 = vpop.f32.mrb[0].mxu0
    %v2709 = vadd.f32 0.0, %v2708
    %v2710 = vpop.f32.mrb[0].mxu0
    %v2711 = vpop.f32.mrb[0].mxu0
    %v2712 = vpop.f32.mrb[0].mxu0
    %2713 = vdwg.mxu0
    %v2714 = vadd.f32 %v2598, %v2709
    %v2715 = vlaneseq
    %v2716 = vshrl.u32 %v2715, 7
    %v2717 = vsub.s32 1, %v2716
    %v2718 = vrot.slane %v2039, %v2717
    %v2719 = vmul.f32 %v2029, %v2718
    %v2720 = vlaneseq
    %v2721 = vshrl.u32 %v2720, 7
    %v2722 = vsub.s32 2, %v2721
    %v2723 = vrot.slane %v2039, %v2722
    %v2724 = vmul.f32 %v2030, %v2723
    %v2725 = vadd.f32 %v2719, %v2724
    %v2726 = vmul.f32 %v2032, %v2098
    %v2727 = vadd.f32 %v2725, %v2726
    %v2728 = vmul.f32 %v2033, %v2103
    %v2729 = vadd.f32 %v2727, %v2728
    %v2730 = vmul.f32 %v2035, %v2109
    %v2731 = vadd.f32 %v2729, %v2730
    %v2732 = vmul.f32 %v2036, %v2115
    %v2733 = vadd.f32 %v2731, %v2732
    %v2734 = vadd.f32 %v2733, %v2121
    %v2735 = vmax.f32 %v2734, 0.0
    %v2736 = vpack.c.bf16 %v2735, %v2735
    %s2737 = scalar_lea.vmem %s4, 192
    %v2738 = vld [vmem:[%s2737] sm:$0xf]
    %v2739 = vld [vmem:[%s2737 + $0x4] sm:$0xf]
    %v2740 = vld [vmem:[%s2737 + $0x8] sm:$0xf]
    %v2741 = vld [vmem:[%s2737 + $0xc] sm:$0xf]
    %v2742 = vld [vmem:[%s2737 + $0x10] sm:$0xf]
    %v2743 = vld [vmem:[%s2737 + $0x14] sm:$0xf]
    %v2744 = vld [vmem:[%s2737 + $0x18] sm:$0xf]
    %v2745 = vld [vmem:[%s2737 + $0x1c] sm:$0xf]
    %v2746 = vld [vmem:[%s2737 + $0x20] sm:$0xf]
    %v2747 = vld [vmem:[%s2737 + $0x24] sm:$0xf]
    %v2748 = vld [vmem:[%s2737 + $0x28] sm:$0xf]
    %v2749 = vld [vmem:[%s2737 + $0x2c] sm:$0xf]
    %v2750 = vld [vmem:[%s2737 + $0x30] sm:$0xf]
    %v2751 = vld [vmem:[%s2737 + $0x34] sm:$0xf]
    %v2752 = vld [vmem:[%s2737 + $0x38] sm:$0xf]
    %v2753 = vld [vmem:[%s2737 + $0x3c] sm:$0xf]
    %v2770 = vunpack.c.l.b16 %v2738
    %v2771 = vunpack.c.l.b16 %v2739
    %v2772 = vunpack.c.l.b16 %v2740
    %v2773 = vunpack.c.l.b16 %v2741
    %v2774 = vunpack.c.l.b16 %v2742
    %v2775 = vunpack.c.l.b16 %v2743
    %v2776 = vunpack.c.l.b16 %v2744
    %v2777 = vunpack.c.l.b16 %v2745
    %v2778 = vunpack.c.l.b16 %v2746
    %v2779 = vunpack.c.l.b16 %v2747
    %v2780 = vunpack.c.l.b16 %v2748
    %v2781 = vunpack.c.l.b16 %v2749
    %v2782 = vunpack.c.l.b16 %v2750
    %v2783 = vunpack.c.l.b16 %v2751
    %v2784 = vunpack.c.l.b16 %v2752
    %v2785 = vunpack.c.l.b16 %v2753
    %v2786 = vpack.c.b16 %v2771, %v2770
    %v2787 = vpack.c.b16 %v2773, %v2772
    %v2788 = vpack.c.b16 %v2775, %v2774
    %v2789 = vpack.c.b16 %v2777, %v2776
    %v2790 = vpack.c.b16 %v2779, %v2778
    %v2791 = vpack.c.b16 %v2781, %v2780
    %v2792 = vpack.c.b16 %v2783, %v2782
    %v2793 = vpack.c.b16 %v2785, %v2784
    %2802 = vmatprep.subr.bf16.mxu0 0
    %2803 = vmatpush1.bf16.msra.mxu0 %v2786
    %2804 = vmatprep.subr.bf16.mxu0 0
    %2805 = vmatpush1.bf16.msra.mxu0 %v2787
    %2806 = vmatprep.subr.bf16.mxu0 0
    %2807 = vmatpush1.bf16.msra.mxu0 %v2788
    %2808 = vmatprep.subr.bf16.mxu0 0
    %2809 = vmatpush1.bf16.msra.mxu0 %v2789
    %2810 = vmatprep.subr.bf16.mxu0 0
    %2811 = vmatpush1.bf16.msra.mxu0 %v2790
    %2812 = vmatprep.subr.bf16.mxu0 0
    %2813 = vmatpush1.bf16.msra.mxu0 %v2791
    %2814 = vmatprep.subr.bf16.mxu0 0
    %2815 = vmatpush1.bf16.msra.mxu0 %v2792
    %2816 = vmatprep.subr.bf16.mxu0 0
    %2817 = vmatpush1.bf16.msra.mxu0 %v2793
    %2818 = vmatprep.subr.bf16.mxu0 0
    %2819 = vmatpush1.bf16.msra.mxu0 0
    %2820 = vmatprep.subr.bf16.mxu0 0
    %2821 = vmatpush1.bf16.msra.mxu0 0
    %2822 = vmatprep.subr.bf16.mxu0 0
    %2823 = vmatpush1.bf16.msra.mxu0 0
    %2824 = vmatprep.subr.bf16.mxu0 0
    %2825 = vmatpush1.bf16.msra.mxu0 0
    %2826 = vmatprep.subr.bf16.mxu0 0
    %2827 = vmatpush1.bf16.msra.mxu0 0
    %2828 = vmatprep.subr.bf16.mxu0 0
    %2829 = vmatpush1.bf16.msra.mxu0 0
    %2830 = vmatprep.subr.bf16.mxu0 0
    %2831 = vmatpush1.bf16.msra.mxu0 0
    %2832 = vmatprep.subr.bf16.mxu0 0
    %2833 = vmatpush1.bf16.msra.mxu0 0
    %2834 = vmatprep.mubr.bf16.mxu0 0
    %2835 = vmatmul.mubr.bf16.gmra.mrb[0].mxu0 %v2736
    %v2836 = vpop.f32.mrb[0].mxu0
    %v2837 = vadd.f32 0.0, %v2836
    %v2838 = vpop.f32.mrb[0].mxu0
    %v2839 = vpop.f32.mrb[0].mxu0
    %v2840 = vpop.f32.mrb[0].mxu0
    %2841 = vdwg.mxu0
    %v2842 = vadd.f32 %v2714, %v2837
    %v2843 = vlaneseq
    %v2844 = vshrl.u32 %v2843, 7
    %v2845 = vsub.s32 0, %v2844
    %v2846 = vrot.slane %v2039, %v2845
    %v2847 = vmul.f32 %v2029, %v2846
    %v2848 = vmul.f32 %v2030, %v2718
    %v2849 = vadd.f32 %v2847, %v2848
    %v2850 = vmul.f32 %v2031, %v2723
    %v2851 = vadd.f32 %v2849, %v2850
    %v2852 = vmul.f32 %v2032, %v2474
    %v2853 = vadd.f32 %v2851, %v2852
    %v2854 = vmul.f32 %v2033, %v2098
    %v2855 = vadd.f32 %v2853, %v2854
    %v2856 = vmul.f32 %v2034, %v2103
    %v2857 = vadd.f32 %v2855, %v2856
    %v2858 = vmul.f32 %v2035, %v2483
    %v2859 = vadd.f32 %v2857, %v2858
    %v2860 = vmul.f32 %v2036, %v2109
    %v2861 = vadd.f32 %v2859, %v2860
    %v2862 = vmul.f32 %v2037, %v2115
    %v2863 = vadd.f32 %v2861, %v2862
    %v2864 = vadd.f32 %v2863, %v2121
    %v2865 = vmax.f32 %v2864, 0.0
    %v2866 = vpack.c.bf16 %v2865, %v2865
    %s2867 = scalar_lea.vmem %s4, 256
    %v2868 = vld [vmem:[%s2867] sm:$0xf]
    %v2869 = vld [vmem:[%s2867 + $0x4] sm:$0xf]
    %v2870 = vld [vmem:[%s2867 + $0x8] sm:$0xf]
    %v2871 = vld [vmem:[%s2867 + $0xc] sm:$0xf]
    %v2872 = vld [vmem:[%s2867 + $0x10] sm:$0xf]
    %v2873 = vld [vmem:[%s2867 + $0x14] sm:$0xf]
    %v2874 = vld [vmem:[%s2867 + $0x18] sm:$0xf]
    %v2875 = vld [vmem:[%s2867 + $0x1c] sm:$0xf]
    %v2876 = vld [vmem:[%s2867 + $0x20] sm:$0xf]
    %v2877 = vld [vmem:[%s2867 + $0x24] sm:$0xf]
    %v2878 = vld [vmem:[%s2867 + $0x28] sm:$0xf]
    %v2879 = vld [vmem:[%s2867 + $0x2c] sm:$0xf]
    %v2880 = vld [vmem:[%s2867 + $0x30] sm:$0xf]
    %v2881 = vld [vmem:[%s2867 + $0x34] sm:$0xf]
    %v2882 = vld [vmem:[%s2867 + $0x38] sm:$0xf]
    %v2883 = vld [vmem:[%s2867 + $0x3c] sm:$0xf]
    %v2900 = vunpack.c.l.b16 %v2868
    %v2901 = vunpack.c.l.b16 %v2869
    %v2902 = vunpack.c.l.b16 %v2870
    %v2903 = vunpack.c.l.b16 %v2871
    %v2904 = vunpack.c.l.b16 %v2872
    %v2905 = vunpack.c.l.b16 %v2873
    %v2906 = vunpack.c.l.b16 %v2874
    %v2907 = vunpack.c.l.b16 %v2875
    %v2908 = vunpack.c.l.b16 %v2876
    %v2909 = vunpack.c.l.b16 %v2877
    %v2910 = vunpack.c.l.b16 %v2878
    %v2911 = vunpack.c.l.b16 %v2879
    %v2912 = vunpack.c.l.b16 %v2880
    %v2913 = vunpack.c.l.b16 %v2881
    %v2914 = vunpack.c.l.b16 %v2882
    %v2915 = vunpack.c.l.b16 %v2883
    %v2916 = vpack.c.b16 %v2901, %v2900
    %v2917 = vpack.c.b16 %v2903, %v2902
    %v2918 = vpack.c.b16 %v2905, %v2904
    %v2919 = vpack.c.b16 %v2907, %v2906
    %v2920 = vpack.c.b16 %v2909, %v2908
    %v2921 = vpack.c.b16 %v2911, %v2910
    %v2922 = vpack.c.b16 %v2913, %v2912
    %v2923 = vpack.c.b16 %v2915, %v2914
    %2932 = vmatprep.subr.bf16.mxu0 0
    %2933 = vmatpush1.bf16.msra.mxu0 %v2916
    %2934 = vmatprep.subr.bf16.mxu0 0
    %2935 = vmatpush1.bf16.msra.mxu0 %v2917
    %2936 = vmatprep.subr.bf16.mxu0 0
    %2937 = vmatpush1.bf16.msra.mxu0 %v2918
    %2938 = vmatprep.subr.bf16.mxu0 0
    %2939 = vmatpush1.bf16.msra.mxu0 %v2919
    %2940 = vmatprep.subr.bf16.mxu0 0
    %2941 = vmatpush1.bf16.msra.mxu0 %v2920
    %2942 = vmatprep.subr.bf16.mxu0 0
    %2943 = vmatpush1.bf16.msra.mxu0 %v2921
    %2944 = vmatprep.subr.bf16.mxu0 0
    %2945 = vmatpush1.bf16.msra.mxu0 %v2922
    %2946 = vmatprep.subr.bf16.mxu0 0
    %2947 = vmatpush1.bf16.msra.mxu0 %v2923
    %2948 = vmatprep.subr.bf16.mxu0 0
    %2949 = vmatpush1.bf16.msra.mxu0 0
    %2950 = vmatprep.subr.bf16.mxu0 0
    %2951 = vmatpush1.bf16.msra.mxu0 0
    %2952 = vmatprep.subr.bf16.mxu0 0
    %2953 = vmatpush1.bf16.msra.mxu0 0
    %2954 = vmatprep.subr.bf16.mxu0 0
    %2955 = vmatpush1.bf16.msra.mxu0 0
    %2956 = vmatprep.subr.bf16.mxu0 0
    %2957 = vmatpush1.bf16.msra.mxu0 0
    %2958 = vmatprep.subr.bf16.mxu0 0
    %2959 = vmatpush1.bf16.msra.mxu0 0
    %2960 = vmatprep.subr.bf16.mxu0 0
    %2961 = vmatpush1.bf16.msra.mxu0 0
    %2962 = vmatprep.subr.bf16.mxu0 0
    %2963 = vmatpush1.bf16.msra.mxu0 0
    %2964 = vmatprep.mubr.bf16.mxu0 0
    %2965 = vmatmul.mubr.bf16.gmra.mrb[0].mxu0 %v2866
    %v2966 = vpop.f32.mrb[0].mxu0
    %v2967 = vadd.f32 0.0, %v2966
    %v2968 = vpop.f32.mrb[0].mxu0
    %v2969 = vpop.f32.mrb[0].mxu0
    %v2970 = vpop.f32.mrb[0].mxu0
    %2971 = vdwg.mxu0
    %v2972 = vadd.f32 %v2842, %v2967
    %v2973 = vmul.f32 %v2030, %v2846
    %v2974 = vmul.f32 %v2031, %v2718
    %v2975 = vadd.f32 %v2973, %v2974
    %v2976 = vmul.f32 %v2033, %v2474
    %v2977 = vadd.f32 %v2975, %v2976
    %v2978 = vmul.f32 %v2034, %v2098
    %v2979 = vadd.f32 %v2977, %v2978
    %v2980 = vmul.f32 %v2036, %v2483
    %v2981 = vadd.f32 %v2979, %v2980
    %v2982 = vmul.f32 %v2037, %v2109
    %v2983 = vadd.f32 %v2981, %v2982
    %v2984 = vadd.f32 %v2983, %v2121
    %v2985 = vmax.f32 %v2984, 0.0
    %v2986 = vpack.c.bf16 %v2985, %v2985
    %s2987 = scalar_lea.vmem %s4, 320
    %v2988 = vld [vmem:[%s2987] sm:$0xf]
    %v2989 = vld [vmem:[%s2987 + $0x4] sm:$0xf]
    %v2990 = vld [vmem:[%s2987 + $0x8] sm:$0xf]
    %v2991 = vld [vmem:[%s2987 + $0xc] sm:$0xf]
    %v2992 = vld [vmem:[%s2987 + $0x10] sm:$0xf]
    %v2993 = vld [vmem:[%s2987 + $0x14] sm:$0xf]
    %v2994 = vld [vmem:[%s2987 + $0x18] sm:$0xf]
    %v2995 = vld [vmem:[%s2987 + $0x1c] sm:$0xf]
    %v2996 = vld [vmem:[%s2987 + $0x20] sm:$0xf]
    %v2997 = vld [vmem:[%s2987 + $0x24] sm:$0xf]
    %v2998 = vld [vmem:[%s2987 + $0x28] sm:$0xf]
    %v2999 = vld [vmem:[%s2987 + $0x2c] sm:$0xf]
    %v3000 = vld [vmem:[%s2987 + $0x30] sm:$0xf]
    %v3001 = vld [vmem:[%s2987 + $0x34] sm:$0xf]
    %v3002 = vld [vmem:[%s2987 + $0x38] sm:$0xf]
    %v3003 = vld [vmem:[%s2987 + $0x3c] sm:$0xf]
    %v3020 = vunpack.c.l.b16 %v2988
    %v3021 = vunpack.c.l.b16 %v2989
    %v3022 = vunpack.c.l.b16 %v2990
    %v3023 = vunpack.c.l.b16 %v2991
    %v3024 = vunpack.c.l.b16 %v2992
    %v3025 = vunpack.c.l.b16 %v2993
    %v3026 = vunpack.c.l.b16 %v2994
    %v3027 = vunpack.c.l.b16 %v2995
    %v3028 = vunpack.c.l.b16 %v2996
    %v3029 = vunpack.c.l.b16 %v2997
    %v3030 = vunpack.c.l.b16 %v2998
    %v3031 = vunpack.c.l.b16 %v2999
    %v3032 = vunpack.c.l.b16 %v3000
    %v3033 = vunpack.c.l.b16 %v3001
    %v3034 = vunpack.c.l.b16 %v3002
    %v3035 = vunpack.c.l.b16 %v3003
    %v3036 = vpack.c.b16 %v3021, %v3020
    %v3037 = vpack.c.b16 %v3023, %v3022
    %v3038 = vpack.c.b16 %v3025, %v3024
    %v3039 = vpack.c.b16 %v3027, %v3026
    %v3040 = vpack.c.b16 %v3029, %v3028
    %v3041 = vpack.c.b16 %v3031, %v3030
    %v3042 = vpack.c.b16 %v3033, %v3032
    %v3043 = vpack.c.b16 %v3035, %v3034
    %3052 = vmatprep.subr.bf16.mxu0 0
    %3053 = vmatpush1.bf16.msra.mxu0 %v3036
    %3054 = vmatprep.subr.bf16.mxu0 0
    %3055 = vmatpush1.bf16.msra.mxu0 %v3037
    %3056 = vmatprep.subr.bf16.mxu0 0
    %3057 = vmatpush1.bf16.msra.mxu0 %v3038
    %3058 = vmatprep.subr.bf16.mxu0 0
    %3059 = vmatpush1.bf16.msra.mxu0 %v3039
    %3060 = vmatprep.subr.bf16.mxu0 0
    %3061 = vmatpush1.bf16.msra.mxu0 %v3040
    %3062 = vmatprep.subr.bf16.mxu0 0
    %3063 = vmatpush1.bf16.msra.mxu0 %v3041
    %3064 = vmatprep.subr.bf16.mxu0 0
    %3065 = vmatpush1.bf16.msra.mxu0 %v3042
    %3066 = vmatprep.subr.bf16.mxu0 0
    %3067 = vmatpush1.bf16.msra.mxu0 %v3043
    %3068 = vmatprep.subr.bf16.mxu0 0
    %3069 = vmatpush1.bf16.msra.mxu0 0
    %3070 = vmatprep.subr.bf16.mxu0 0
    %3071 = vmatpush1.bf16.msra.mxu0 0
    %3072 = vmatprep.subr.bf16.mxu0 0
    %3073 = vmatpush1.bf16.msra.mxu0 0
    %3074 = vmatprep.subr.bf16.mxu0 0
    %3075 = vmatpush1.bf16.msra.mxu0 0
    %3076 = vmatprep.subr.bf16.mxu0 0
    %3077 = vmatpush1.bf16.msra.mxu0 0
    %3078 = vmatprep.subr.bf16.mxu0 0
    %3079 = vmatpush1.bf16.msra.mxu0 0
    %3080 = vmatprep.subr.bf16.mxu0 0
    %3081 = vmatpush1.bf16.msra.mxu0 0
    %3082 = vmatprep.subr.bf16.mxu0 0
    %3083 = vmatpush1.bf16.msra.mxu0 0
    %3084 = vmatprep.mubr.bf16.mxu0 0
    %3085 = vmatmul.mubr.bf16.gmra.mrb[0].mxu0 %v2986
    %v3086 = vpop.f32.mrb[0].mxu0
    %v3087 = vadd.f32 0.0, %v3086
    %v3088 = vpop.f32.mrb[0].mxu0
    %v3089 = vpop.f32.mrb[0].mxu0
    %v3090 = vpop.f32.mrb[0].mxu0
    %3091 = vdwg.mxu0
    %v3092 = vadd.f32 %v2972, %v3087
    %v3093 = vmul.f32 %v2032, %v2718
    %v3094 = vmul.f32 %v2033, %v2723
    %v3095 = vadd.f32 %v3093, %v3094
    %v3096 = vmul.f32 %v2035, %v2098
    %v3097 = vadd.f32 %v3095, %v3096
    %v3098 = vmul.f32 %v2036, %v2103
    %v3099 = vadd.f32 %v3097, %v3098
    %v3100 = vadd.f32 %v3099, %v2121
    %v3101 = vmax.f32 %v3100, 0.0
    %v3102 = vpack.c.bf16 %v3101, %v3101
    %s3103 = scalar_lea.vmem %s4, 384
    %v3104 = vld [vmem:[%s3103] sm:$0xf]
    %v3105 = vld [vmem:[%s3103 + $0x4] sm:$0xf]
    %v3106 = vld [vmem:[%s3103 + $0x8] sm:$0xf]
    %v3107 = vld [vmem:[%s3103 + $0xc] sm:$0xf]
    %v3108 = vld [vmem:[%s3103 + $0x10] sm:$0xf]
    %v3109 = vld [vmem:[%s3103 + $0x14] sm:$0xf]
    %v3110 = vld [vmem:[%s3103 + $0x18] sm:$0xf]
    %v3111 = vld [vmem:[%s3103 + $0x1c] sm:$0xf]
    %v3112 = vld [vmem:[%s3103 + $0x20] sm:$0xf]
    %v3113 = vld [vmem:[%s3103 + $0x24] sm:$0xf]
    %v3114 = vld [vmem:[%s3103 + $0x28] sm:$0xf]
    %v3115 = vld [vmem:[%s3103 + $0x2c] sm:$0xf]
    %v3116 = vld [vmem:[%s3103 + $0x30] sm:$0xf]
    %v3117 = vld [vmem:[%s3103 + $0x34] sm:$0xf]
    %v3118 = vld [vmem:[%s3103 + $0x38] sm:$0xf]
    %v3119 = vld [vmem:[%s3103 + $0x3c] sm:$0xf]
    %v3136 = vunpack.c.l.b16 %v3104
    %v3137 = vunpack.c.l.b16 %v3105
    %v3138 = vunpack.c.l.b16 %v3106
    %v3139 = vunpack.c.l.b16 %v3107
    %v3140 = vunpack.c.l.b16 %v3108
    %v3141 = vunpack.c.l.b16 %v3109
    %v3142 = vunpack.c.l.b16 %v3110
    %v3143 = vunpack.c.l.b16 %v3111
    %v3144 = vunpack.c.l.b16 %v3112
    %v3145 = vunpack.c.l.b16 %v3113
    %v3146 = vunpack.c.l.b16 %v3114
    %v3147 = vunpack.c.l.b16 %v3115
    %v3148 = vunpack.c.l.b16 %v3116
    %v3149 = vunpack.c.l.b16 %v3117
    %v3150 = vunpack.c.l.b16 %v3118
    %v3151 = vunpack.c.l.b16 %v3119
    %v3152 = vpack.c.b16 %v3137, %v3136
    %v3153 = vpack.c.b16 %v3139, %v3138
    %v3154 = vpack.c.b16 %v3141, %v3140
    %v3155 = vpack.c.b16 %v3143, %v3142
    %v3156 = vpack.c.b16 %v3145, %v3144
    %v3157 = vpack.c.b16 %v3147, %v3146
    %v3158 = vpack.c.b16 %v3149, %v3148
    %v3159 = vpack.c.b16 %v3151, %v3150
    %3168 = vmatprep.subr.bf16.mxu0 0
    %3169 = vmatpush1.bf16.msra.mxu0 %v3152
    %3170 = vmatprep.subr.bf16.mxu0 0
    %3171 = vmatpush1.bf16.msra.mxu0 %v3153
    %3172 = vmatprep.subr.bf16.mxu0 0
    %3173 = vmatpush1.bf16.msra.mxu0 %v3154
    %3174 = vmatprep.subr.bf16.mxu0 0
    %3175 = vmatpush1.bf16.msra.mxu0 %v3155
    %3176 = vmatprep.subr.bf16.mxu0 0
    %3177 = vmatpush1.bf16.msra.mxu0 %v3156
    %3178 = vmatprep.subr.bf16.mxu0 0
    %3179 = vmatpush1.bf16.msra.mxu0 %v3157
    %3180 = vmatprep.subr.bf16.mxu0 0
    %3181 = vmatpush1.bf16.msra.mxu0 %v3158
    %3182 = vmatprep.subr.bf16.mxu0 0
    %3183 = vmatpush1.bf16.msra.mxu0 %v3159
    %3184 = vmatprep.subr.bf16.mxu0 0
    %3185 = vmatpush1.bf16.msra.mxu0 0
    %3186 = vmatprep.subr.bf16.mxu0 0
    %3187 = vmatpush1.bf16.msra.mxu0 0
    %3188 = vmatprep.subr.bf16.mxu0 0
    %3189 = vmatpush1.bf16.msra.mxu0 0
    %3190 = vmatprep.subr.bf16.mxu0 0
    %3191 = vmatpush1.bf16.msra.mxu0 0
    %3192 = vmatprep.subr.bf16.mxu0 0
    %3193 = vmatpush1.bf16.msra.mxu0 0
    %3194 = vmatprep.subr.bf16.mxu0 0
    %3195 = vmatpush1.bf16.msra.mxu0 0
    %3196 = vmatprep.subr.bf16.mxu0 0
    %3197 = vmatpush1.bf16.msra.mxu0 0
    %3198 = vmatprep.subr.bf16.mxu0 0
    %3199 = vmatpush1.bf16.msra.mxu0 0
    %3200 = vmatprep.mubr.bf16.mxu0 0
    %3201 = vmatmul.mubr.bf16.gmra.mrb[0].mxu0 %v3102
    %v3202 = vpop.f32.mrb[0].mxu0
    %v3203 = vadd.f32 0.0, %v3202
    %v3204 = vpop.f32.mrb[0].mxu0
    %v3205 = vpop.f32.mrb[0].mxu0
    %v3206 = vpop.f32.mrb[0].mxu0
    %3207 = vdwg.mxu0
    %v3208 = vadd.f32 %v3092, %v3203
    %v3209 = vmul.f32 %v2032, %v2846
    %v3210 = vmul.f32 %v2033, %v2718
    %v3211 = vadd.f32 %v3209, %v3210
    %v3212 = vmul.f32 %v2034, %v2723
    %v3213 = vadd.f32 %v3211, %v3212
    %v3214 = vmul.f32 %v2035, %v2474
    %v3215 = vadd.f32 %v3213, %v3214
    %v3216 = vmul.f32 %v2036, %v2098
    %v3217 = vadd.f32 %v3215, %v3216
    %v3218 = vmul.f32 %v2037, %v2103
    %v3219 = vadd.f32 %v3217, %v3218
    %v3220 = vadd.f32 %v3219, %v2121
    %v3221 = vmax.f32 %v3220, 0.0
    %v3222 = vpack.c.bf16 %v3221, %v3221
    %s3223 = scalar_lea.vmem %s4, 448
    %v3224 = vld [vmem:[%s3223] sm:$0xf]
    %v3225 = vld [vmem:[%s3223 + $0x4] sm:$0xf]
    %v3226 = vld [vmem:[%s3223 + $0x8] sm:$0xf]
    %v3227 = vld [vmem:[%s3223 + $0xc] sm:$0xf]
    %v3228 = vld [vmem:[%s3223 + $0x10] sm:$0xf]
    %v3229 = vld [vmem:[%s3223 + $0x14] sm:$0xf]
    %v3230 = vld [vmem:[%s3223 + $0x18] sm:$0xf]
    %v3231 = vld [vmem:[%s3223 + $0x1c] sm:$0xf]
    %v3232 = vld [vmem:[%s3223 + $0x20] sm:$0xf]
    %v3233 = vld [vmem:[%s3223 + $0x24] sm:$0xf]
    %v3234 = vld [vmem:[%s3223 + $0x28] sm:$0xf]
    %v3235 = vld [vmem:[%s3223 + $0x2c] sm:$0xf]
    %v3236 = vld [vmem:[%s3223 + $0x30] sm:$0xf]
    %v3237 = vld [vmem:[%s3223 + $0x34] sm:$0xf]
    %v3238 = vld [vmem:[%s3223 + $0x38] sm:$0xf]
    %v3239 = vld [vmem:[%s3223 + $0x3c] sm:$0xf]
    %v3256 = vunpack.c.l.b16 %v3224
    %v3257 = vunpack.c.l.b16 %v3225
    %v3258 = vunpack.c.l.b16 %v3226
    %v3259 = vunpack.c.l.b16 %v3227
    %v3260 = vunpack.c.l.b16 %v3228
    %v3261 = vunpack.c.l.b16 %v3229
    %v3262 = vunpack.c.l.b16 %v3230
    %v3263 = vunpack.c.l.b16 %v3231
    %v3264 = vunpack.c.l.b16 %v3232
    %v3265 = vunpack.c.l.b16 %v3233
    %v3266 = vunpack.c.l.b16 %v3234
    %v3267 = vunpack.c.l.b16 %v3235
    %v3268 = vunpack.c.l.b16 %v3236
    %v3269 = vunpack.c.l.b16 %v3237
    %v3270 = vunpack.c.l.b16 %v3238
    %v3271 = vunpack.c.l.b16 %v3239
    %v3272 = vpack.c.b16 %v3257, %v3256
    %v3273 = vpack.c.b16 %v3259, %v3258
    %v3274 = vpack.c.b16 %v3261, %v3260
    %v3275 = vpack.c.b16 %v3263, %v3262
    %v3276 = vpack.c.b16 %v3265, %v3264
    %v3277 = vpack.c.b16 %v3267, %v3266
    %v3278 = vpack.c.b16 %v3269, %v3268
    %v3279 = vpack.c.b16 %v3271, %v3270
    %3288 = vmatprep.subr.bf16.mxu0 0
    %3289 = vmatpush1.bf16.msra.mxu0 %v3272
    %3290 = vmatprep.subr.bf16.mxu0 0
    %3291 = vmatpush1.bf16.msra.mxu0 %v3273
    %3292 = vmatprep.subr.bf16.mxu0 0
    %3293 = vmatpush1.bf16.msra.mxu0 %v3274
    %3294 = vmatprep.subr.bf16.mxu0 0
    %3295 = vmatpush1.bf16.msra.mxu0 %v3275
    %3296 = vmatprep.subr.bf16.mxu0 0
    %3297 = vmatpush1.bf16.msra.mxu0 %v3276
    %3298 = vmatprep.subr.bf16.mxu0 0
    %3299 = vmatpush1.bf16.msra.mxu0 %v3277
    %3300 = vmatprep.subr.bf16.mxu0 0
    %3301 = vmatpush1.bf16.msra.mxu0 %v3278
    %3302 = vmatprep.subr.bf16.mxu0 0
    %3303 = vmatpush1.bf16.msra.mxu0 %v3279
    %3304 = vmatprep.subr.bf16.mxu0 0
    %3305 = vmatpush1.bf16.msra.mxu0 0
    %3306 = vmatprep.subr.bf16.mxu0 0
    %3307 = vmatpush1.bf16.msra.mxu0 0
    %3308 = vmatprep.subr.bf16.mxu0 0
    %3309 = vmatpush1.bf16.msra.mxu0 0
    %3310 = vmatprep.subr.bf16.mxu0 0
    %3311 = vmatpush1.bf16.msra.mxu0 0
    %3312 = vmatprep.subr.bf16.mxu0 0
    %3313 = vmatpush1.bf16.msra.mxu0 0
    %3314 = vmatprep.subr.bf16.mxu0 0
    %3315 = vmatpush1.bf16.msra.mxu0 0
    %3316 = vmatprep.subr.bf16.mxu0 0
    %3317 = vmatpush1.bf16.msra.mxu0 0
    %3318 = vmatprep.subr.bf16.mxu0 0
    %3319 = vmatpush1.bf16.msra.mxu0 0
    %3320 = vmatprep.mubr.bf16.mxu0 0
    %3321 = vmatmul.mubr.bf16.gmra.mrb[0].mxu0 %v3222
    %v3322 = vpop.f32.mrb[0].mxu0
    %v3323 = vadd.f32 0.0, %v3322
    %v3324 = vpop.f32.mrb[0].mxu0
    %v3325 = vpop.f32.mrb[0].mxu0
    %v3326 = vpop.f32.mrb[0].mxu0
    %3327 = vdwg.mxu0
    %v3328 = vadd.f32 %v3208, %v3323
    %v3329 = vmul.f32 %v2033, %v2846
    %v3330 = vmul.f32 %v2034, %v2718
    %v3331 = vadd.f32 %v3329, %v3330
    %v3332 = vmul.f32 %v2036, %v2474
    %v3333 = vadd.f32 %v3331, %v3332
    %v3334 = vmul.f32 %v2037, %v2098
    %v3335 = vadd.f32 %v3333, %v3334
    %v3336 = vadd.f32 %v3335, %v2121
    %v3337 = vmax.f32 %v3336, 0.0
    %v3338 = vpack.c.bf16 %v3337, %v3337
    %s3339 = scalar_lea.vmem %s4, 512
    %v3340 = vld [vmem:[%s3339] sm:$0xf]
    %v3341 = vld [vmem:[%s3339 + $0x4] sm:$0xf]
    %v3342 = vld [vmem:[%s3339 + $0x8] sm:$0xf]
    %v3343 = vld [vmem:[%s3339 + $0xc] sm:$0xf]
    %v3344 = vld [vmem:[%s3339 + $0x10] sm:$0xf]
    %v3345 = vld [vmem:[%s3339 + $0x14] sm:$0xf]
    %v3346 = vld [vmem:[%s3339 + $0x18] sm:$0xf]
    %v3347 = vld [vmem:[%s3339 + $0x1c] sm:$0xf]
    %v3348 = vld [vmem:[%s3339 + $0x20] sm:$0xf]
    %v3349 = vld [vmem:[%s3339 + $0x24] sm:$0xf]
    %v3350 = vld [vmem:[%s3339 + $0x28] sm:$0xf]
    %v3351 = vld [vmem:[%s3339 + $0x2c] sm:$0xf]
    %v3352 = vld [vmem:[%s3339 + $0x30] sm:$0xf]
    %v3353 = vld [vmem:[%s3339 + $0x34] sm:$0xf]
    %v3354 = vld [vmem:[%s3339 + $0x38] sm:$0xf]
    %v3355 = vld [vmem:[%s3339 + $0x3c] sm:$0xf]
    %v3372 = vunpack.c.l.b16 %v3340
    %v3373 = vunpack.c.l.b16 %v3341
    %v3374 = vunpack.c.l.b16 %v3342
    %v3375 = vunpack.c.l.b16 %v3343
    %v3376 = vunpack.c.l.b16 %v3344
    %v3377 = vunpack.c.l.b16 %v3345
    %v3378 = vunpack.c.l.b16 %v3346
    %v3379 = vunpack.c.l.b16 %v3347
    %v3380 = vunpack.c.l.b16 %v3348
    %v3381 = vunpack.c.l.b16 %v3349
    %v3382 = vunpack.c.l.b16 %v3350
    %v3383 = vunpack.c.l.b16 %v3351
    %v3384 = vunpack.c.l.b16 %v3352
    %v3385 = vunpack.c.l.b16 %v3353
    %v3386 = vunpack.c.l.b16 %v3354
    %v3387 = vunpack.c.l.b16 %v3355
    %v3388 = vpack.c.b16 %v3373, %v3372
    %v3389 = vpack.c.b16 %v3375, %v3374
    %v3390 = vpack.c.b16 %v3377, %v3376
    %v3391 = vpack.c.b16 %v3379, %v3378
    %v3392 = vpack.c.b16 %v3381, %v3380
    %v3393 = vpack.c.b16 %v3383, %v3382
    %v3394 = vpack.c.b16 %v3385, %v3384
    %v3395 = vpack.c.b16 %v3387, %v3386
    %3404 = vmatprep.subr.bf16.mxu0 0
    %3405 = vmatpush1.bf16.msra.mxu0 %v3388
    %3406 = vmatprep.subr.bf16.mxu0 0
    %3407 = vmatpush1.bf16.msra.mxu0 %v3389
    %3408 = vmatprep.subr.bf16.mxu0 0
    %3409 = vmatpush1.bf16.msra.mxu0 %v3390
    %3410 = vmatprep.subr.bf16.mxu0 0
    %3411 = vmatpush1.bf16.msra.mxu0 %v3391
    %3412 = vmatprep.subr.bf16.mxu0 0
    %3413 = vmatpush1.bf16.msra.mxu0 %v3392
    %3414 = vmatprep.subr.bf16.mxu0 0
    %3415 = vmatpush1.bf16.msra.mxu0 %v3393
    %3416 = vmatprep.subr.bf16.mxu0 0
    %3417 = vmatpush1.bf16.msra.mxu0 %v3394
    %3418 = vmatprep.subr.bf16.mxu0 0
    %3419 = vmatpush1.bf16.msra.mxu0 %v3395
    %3420 = vmatprep.subr.bf16.mxu0 0
    %3421 = vmatpush1.bf16.msra.mxu0 0
    %3422 = vmatprep.subr.bf16.mxu0 0
    %3423 = vmatpush1.bf16.msra.mxu0 0
    %3424 = vmatprep.subr.bf16.mxu0 0
    %3425 = vmatpush1.bf16.msra.mxu0 0
    %3426 = vmatprep.subr.bf16.mxu0 0
    %3427 = vmatpush1.bf16.msra.mxu0 0
    %3428 = vmatprep.subr.bf16.mxu0 0
    %3429 = vmatpush1.bf16.msra.mxu0 0
    %3430 = vmatprep.subr.bf16.mxu0 0
    %3431 = vmatpush1.bf16.msra.mxu0 0
    %3432 = vmatprep.subr.bf16.mxu0 0
    %3433 = vmatpush1.bf16.msra.mxu0 0
    %3434 = vmatprep.subr.bf16.mxu0 0
    %3435 = vmatpush1.bf16.msra.mxu0 0
    %3436 = vmatprep.mubr.bf16.mxu0 0
    %3437 = vmatmul.mubr.bf16.gmra.mrb[0].mxu0 %v3338
    %v3438 = vpop.f32.mrb[0].mxu0
    %v3439 = vadd.f32 0.0, %v3438
    %v3440 = vpop.f32.mrb[0].mxu0
    %v3441 = vpop.f32.mrb[0].mxu0
    %v3442 = vpop.f32.mrb[0].mxu0
    %3443 = vdwg.mxu0
    %v3444 = vadd.f32 %v3328, %v3439
    %v3445 = vlaneseq
    %v3446 = vshrl.u32 %v3445, 7
    %v3447 = vsub.s32 1, %v3446
    %v3448 = vrot.slane %v2038, %v3447
    %v3449 = vadd.f32 %v3444, %v3448
    %v3450 = vmax.f32 %v3449, 0.0
    %v3451 = vpack.c.bf16 %v3450, %v3450
    %v3452 = vld [vmem:[%s5] sm:$0xf]
    %v3453 = vld [vmem:[%s5 + $0x4] sm:$0xf]
    %v3454 = vld [vmem:[%s5 + $0x8] sm:$0xf]
    %v3455 = vld [vmem:[%s5 + $0xc] sm:$0xf]
    %v3456 = vld [vmem:[%s5 + $0x10] sm:$0xf]
    %v3457 = vld [vmem:[%s5 + $0x14] sm:$0xf]
    %v3458 = vlaneseq
    %v3459 = vshrl.u32 %v3458, 7
    %v3460 = vsub.s32 2, %v3459
    %v3461 = vrot.slane %v2038, %v3460
    %v3468 = vunpack.c.l.b16 %v3452
    %v3469 = vunpack.c.l.b16 %v3453
    %v3470 = vunpack.c.l.b16 %v3454
    %v3471 = vunpack.c.l.b16 %v3455
    %v3472 = vunpack.c.l.b16 %v3456
    %v3473 = vunpack.c.l.b16 %v3457
    %v3474 = vpack.c.b16 %v3469, %v3468
    %v3475 = vpack.c.b16 %v3471, %v3470
    %v3476 = vpack.c.b16 %v3473, %v3472
    %v3481 = vsel %vm1617, %v3451, 0
    %3483 = vmatprep.subr.bf16.mxu0 0
    %3484 = vmatpush1.bf16.msra.mxu0 %v3474
    %3485 = vmatprep.subr.bf16.mxu0 0
    %3486 = vmatpush1.bf16.msra.mxu0 %v3475
    %3487 = vmatprep.subr.bf16.mxu0 0
    %3488 = vmatpush1.bf16.msra.mxu0 %v3476
    %3489 = vmatprep.subr.bf16.mxu0 0
    %3490 = vmatpush1.bf16.msra.mxu0 0
    %3491 = vmatprep.subr.bf16.mxu0 0
    %3492 = vmatpush1.bf16.msra.mxu0 0
    %3493 = vmatprep.subr.bf16.mxu0 0
    %3494 = vmatpush1.bf16.msra.mxu0 0
    %3495 = vmatprep.subr.bf16.mxu0 0
    %3496 = vmatpush1.bf16.msra.mxu0 0
    %3497 = vmatprep.subr.bf16.mxu0 0
    %3498 = vmatpush1.bf16.msra.mxu0 0
    %3499 = vmatprep.subr.bf16.mxu0 0
    %3500 = vmatpush1.bf16.msra.mxu0 0
    %3501 = vmatprep.subr.bf16.mxu0 0
    %3502 = vmatpush1.bf16.msra.mxu0 0
    %3503 = vmatprep.subr.bf16.mxu0 0
    %3504 = vmatpush1.bf16.msra.mxu0 0
    %3505 = vmatprep.subr.bf16.mxu0 0
    %3506 = vmatpush1.bf16.msra.mxu0 0
    %3507 = vmatprep.subr.bf16.mxu0 0
    %3508 = vmatpush1.bf16.msra.mxu0 0
    %3509 = vmatprep.subr.bf16.mxu0 0
    %3510 = vmatpush1.bf16.msra.mxu0 0
    %3511 = vmatprep.subr.bf16.mxu0 0
    %3512 = vmatpush1.bf16.msra.mxu0 0
    %3513 = vmatprep.subr.bf16.mxu0 0
    %3514 = vmatpush1.bf16.msra.mxu0 0
    %3515 = vmatprep.mubr.bf16.mxu0 0
    %3516 = vmatmul.mubr.bf16.gmra.mrb[0].mxu0 %v3481
    %v3517 = vpop.f32.mrb[0].mxu0
    %v3518 = vadd.f32 %v3461, %v3517
    %v3519 = vpop.f32.mrb[0].mxu0
    %v3520 = vpop.f32.mrb[0].mxu0
    %v3521 = vpop.f32.mrb[0].mxu0
    %3522 = vdwg.mxu0
    %v3523 = vmax.f32 %v3518, 0.0
    %v3524 = vpack.c.bf16 %v3523, %v3523
    %v3525 = vld [vmem:[%s6] sm:$0xf]
    %v3526 = vld [vmem:[%s6 + $0x4] sm:$0xf]
    %v3527 = vld [vmem:[%s6 + $0x8] sm:$0xf]
    %v3528 = vld [vmem:[%s6 + $0xc] sm:$0xf]
    %v3529 = vld [vmem:[%s6 + $0x10] sm:$0xf]
    %v3530 = vld [vmem:[%s6 + $0x14] sm:$0xf]
    %v3531 = vlaneseq
    %v3532 = vshrl.u32 %v3531, 7
    %v3533 = vsub.s32 3, %v3532
    %v3534 = vrot.slane %v2038, %v3533
    %v3541 = vunpack.c.l.b16 %v3525
    %v3542 = vunpack.c.l.b16 %v3526
    %v3543 = vunpack.c.l.b16 %v3527
    %v3544 = vunpack.c.l.b16 %v3528
    %v3545 = vunpack.c.l.b16 %v3529
    %v3546 = vunpack.c.l.b16 %v3530
    %v3547 = vpack.c.b16 %v3542, %v3541
    %v3548 = vpack.c.b16 %v3544, %v3543
    %v3549 = vpack.c.b16 %v3546, %v3545
    %v3554 = vsel %vm1617, %v3524, 0
    %3556 = vmatprep.subr.bf16.mxu0 0
    %3557 = vmatpush1.bf16.msra.mxu0 %v3547
    %3558 = vmatprep.subr.bf16.mxu0 0
    %3559 = vmatpush1.bf16.msra.mxu0 %v3548
    %3560 = vmatprep.subr.bf16.mxu0 0
    %3561 = vmatpush1.bf16.msra.mxu0 %v3549
    %3562 = vmatprep.subr.bf16.mxu0 0
    %3563 = vmatpush1.bf16.msra.mxu0 0
    %3564 = vmatprep.subr.bf16.mxu0 0
    %3565 = vmatpush1.bf16.msra.mxu0 0
    %3566 = vmatprep.subr.bf16.mxu0 0
    %3567 = vmatpush1.bf16.msra.mxu0 0
    %3568 = vmatprep.subr.bf16.mxu0 0
    %3569 = vmatpush1.bf16.msra.mxu0 0
    %3570 = vmatprep.subr.bf16.mxu0 0
    %3571 = vmatpush1.bf16.msra.mxu0 0
    %3572 = vmatprep.subr.bf16.mxu0 0
    %3573 = vmatpush1.bf16.msra.mxu0 0
    %3574 = vmatprep.subr.bf16.mxu0 0
    %3575 = vmatpush1.bf16.msra.mxu0 0
    %3576 = vmatprep.subr.bf16.mxu0 0
    %3577 = vmatpush1.bf16.msra.mxu0 0
    %3578 = vmatprep.subr.bf16.mxu0 0
    %3579 = vmatpush1.bf16.msra.mxu0 0
    %3580 = vmatprep.subr.bf16.mxu0 0
    %3581 = vmatpush1.bf16.msra.mxu0 0
    %3582 = vmatprep.subr.bf16.mxu0 0
    %3583 = vmatpush1.bf16.msra.mxu0 0
    %3584 = vmatprep.subr.bf16.mxu0 0
    %3585 = vmatpush1.bf16.msra.mxu0 0
    %3586 = vmatprep.subr.bf16.mxu0 0
    %3587 = vmatpush1.bf16.msra.mxu0 0
    %3588 = vmatprep.mubr.bf16.mxu0 0
    %3589 = vmatmul.mubr.bf16.gmra.mrb[0].mxu0 %v3554
    %v3590 = vpop.f32.mrb[0].mxu0
    %v3591 = vadd.f32 %v3534, %v3590
    %v3592 = vpop.f32.mrb[0].mxu0
    %v3593 = vpop.f32.mrb[0].mxu0
    %v3594 = vpop.f32.mrb[0].mxu0
    %3595 = vdwg.mxu0
    %3596 = vst [vmem:[#allocation5] sm:$0xff] %v3591
    // Predicated region
    $region42: #{tpu_custom_call.1} parent=1 // pred_check
      _
    $region43: #{tpu_custom_call.1} parent=1 // pred_check_branch
      %3598 = sbr.rel (0) target = $region45
    $region44: #{tpu_custom_call.1} parent=1 // pred_region
      %s3600 = ssub.s32 128, 128
      %3601 = vsyncadd [#allocation4], %s3600
      %s3603 = sshll.u32 [#allocation5], 4
      %s3604 = int_to_ptr.vmem [resolvable:$true] %s3603
      %3606 = dma.vmem_to_hbm [thread:$0]  %s3604, 128, %s9, [#allocation4]
    $region45: #{tpu_custom_call.1} parent=1 // pred_fallthru
      _
    // Predicated region
    $region46: #{tpu_custom_call.1} parent=1 // pred_check
      _
    $region47: #{tpu_custom_call.1} parent=1 // pred_check_branch
      %3608 = sbr.rel (0) target = $region49
    $region48: #{tpu_custom_call.1} parent=1 // pred_region
      %3609 = dma.done [#allocation4], 128
    $region49: #{tpu_custom_call.1} parent=1 // pred_fallthru
      _
    %3610 = vsyncpa [#allocation3], 1
    %3611 = vsyncpa [#allocation4], 1

</llo_original>
